<compile_context>
chip_gen: v5e
topology: v5e:2x2
jax: 0.10.0
libtpu: 0.0.40
codegen_flags: <defaults>
</compile_context>

<pallas_src>
import functools

import jax
import jax.numpy as jnp
from jax.experimental import pallas as pl
from jax.experimental.pallas import tpu as pltpu


_VMEM_LIMIT = 48 * 1024 * 1024   # <= ~48 MiB: leaves headroom on v7x (64 MiB VMEM)


def _round_up(n, m):
    return ((n + m - 1) // m) * m


def _cparams(*sem):
    return pltpu.CompilerParams(dimension_semantics=sem,
                                vmem_limit_bytes=_VMEM_LIMIT)


# ----------------------------------------------------------------------------
# Row-tiled fused linear kernel: y = x @ w + b  [optionally LeakyReLU(0.1)]
# bf16 MXU operands, f32 accumulation / epilogue.
# ----------------------------------------------------------------------------
def _linear_kernel(x_ref, w_ref, b_ref, o_ref, *, leaky):
    y = jnp.dot(x_ref[...], w_ref[...],
                preferred_element_type=jnp.float32) + b_ref[...]
    if leaky:
        # LeakyReLU(0.1): the module explicitly constructs nn.LeakyReLU(0.1)
        y = jnp.where(y >= 0.0, y, 0.1 * y)
    o_ref[...] = y


def _pallas_linear(x, w, b, *, leaky, max_row_tile=512):
    """x [N,K] f32, w [K,M] f32, b [1,M] f32 -> [N,M] f32."""
    N, K = x.shape
    M = w.shape[1]
    tile = min(max_row_tile, _round_up(N, 8))
    Np = _round_up(N, tile)
    xb = x.astype(jnp.bfloat16)
    if Np != N:
        xb = jnp.pad(xb, ((0, Np - N), (0, 0)))
    out = pl.pallas_call(
        functools.partial(_linear_kernel, leaky=leaky),
        out_shape=jax.ShapeDtypeStruct((Np, M), jnp.float32),
        grid=(Np // tile,),
        in_specs=[pl.BlockSpec((tile, K), lambda i: (i, 0)),
                  pl.BlockSpec((K, M), lambda i: (0, 0)),
                  pl.BlockSpec((1, M), lambda i: (0, 0))],
        out_specs=pl.BlockSpec((tile, M), lambda i: (i, 0)),
        compiler_params=_cparams("parallel"),
    )(xb, w.astype(jnp.bfloat16), b)
    return out[:N] if Np != N else out


# ----------------------------------------------------------------------------
# Fused bidirectional LSTM layer: grid over time ("arbitrary"); forward cell at
# step t, backward cell at S-1-t.  One fused (B,H)@(H,4Hg) bf16 matmul per
# direction per step; gate columns live at 128-aligned offsets so the gate
# slices are lane-tile aligned.  Bias is folded into the input projection.
# ----------------------------------------------------------------------------
def _bilstm_kernel(lens_ref, pf_ref, pb_ref, whh_ref, of_ref, ob_ref,
                   hf_scr, cf_scr, hb_scr, cb_scr):
    t = pl.program_id(0)
    T = pl.num_programs(0)

    @pl.when(t == 0)
    def _init():
        hf_scr[...] = jnp.zeros_like(hf_scr)
        cf_scr[...] = jnp.zeros_like(cf_scr)
        hb_scr[...] = jnp.zeros_like(hb_scr)
        cb_scr[...] = jnp.zeros_like(cb_scr)

    lens = lens_ref[...]                      # (B, 1) int32, resident in VMEM
    H = hf_scr.shape[-1]
    Hg = whh_ref.shape[-1] // 4               # gate stride (multiple of 128)

    def cell(h_scr, c_scr, proj, w, valid, out_ref):
        h = h_scr[...]
        c = c_scr[...]
        # recurrence kept in f32; MXU operands bf16, f32 accumulation
        z = proj + jnp.dot(h.astype(jnp.bfloat16), w,
                           preferred_element_type=jnp.float32)
        i_g = jax.nn.sigmoid(z[:, 0 * Hg:0 * Hg + H])
        f_g = jax.nn.sigmoid(z[:, 1 * Hg:1 * Hg + H])
        g_g = jnp.tanh(z[:, 2 * Hg:2 * Hg + H])
        o_g = jax.nn.sigmoid(z[:, 3 * Hg:3 * Hg + H])
        c_new = i_g * g_g + f_g * c
        h_new = o_g * jnp.tanh(c_new)
        # emulates packed sequences: padded steps output 0 and carry state
        out_ref[0] = jnp.where(valid, h_new, 0.0)
        h_scr[...] = jnp.where(valid, h_new, h)
        c_scr[...] = jnp.where(valid, c_new, c)

    cell(hf_scr, cf_scr, pf_ref[0], whh_ref[0], t < lens, of_ref)
    cell(hb_scr, cb_scr, pb_ref[0], whh_ref[1], (T - 1 - t) < lens, ob_ref)


def bilstm_layer(x_tm, lengths_col, lp):
    """x_tm [S, B, D] time-major -> [S, B, 2H] time-major."""
    S, B, D = x_tm.shape
    G = lp["w_ih_f"].shape[1]
    H = lp["whh"].shape[1]
    flat = x_tm.reshape(S * B, D)
    # bias (b_ih + b_hh) is folded into the input projection -> no per-step add
    proj_f = _pallas_linear(flat, lp["w_ih_f"], lp["b_f"], leaky=False).reshape(S, B, G)
    proj_b = _pallas_linear(flat, lp["w_ih_b"], lp["b_b"], leaky=False).reshape(S, B, G)

    out_f, out_b = pl.pallas_call(
        _bilstm_kernel,
        out_shape=(jax.ShapeDtypeStruct((S, B, H), jnp.float32),
                   jax.ShapeDtypeStruct((S, B, H), jnp.float32)),
        grid=(S,),
        in_specs=[pl.BlockSpec((B, 1), lambda t: (0, 0)),
                  pl.BlockSpec((1, B, G), lambda t: (t, 0, 0)),
                  pl.BlockSpec((1, B, G), lambda t: (S - 1 - t, 0, 0)),   # reversed stream
                  pl.BlockSpec((2, H, G), lambda t: (0, 0, 0))],
        out_specs=(pl.BlockSpec((1, B, H), lambda t: (t, 0, 0)),
                   pl.BlockSpec((1, B, H), lambda t: (S - 1 - t, 0, 0))),  # reversed writeback
        scratch_shapes=[pltpu.VMEM((B, H), jnp.float32) for _ in range(4)],
        compiler_params=_cparams("arbitrary"),
    )(lengths_col, proj_f, proj_b, lp["whh"])
    return jnp.concatenate([out_f, out_b], axis=-1)                        # (S, B, 2H)


def stacked_bilstm(x_btd, lengths_col, layer_params):
    x_tm = jnp.transpose(x_btd, (1, 0, 2))    # time-major once for the whole stack
    for lp in layer_params:
        x_tm = bilstm_layer(x_tm, lengths_col, lp)
    return jnp.transpose(x_tm, (1, 0, 2))     # back to (B, S, 2H) once


# ----------------------------------------------------------------------------
# Unidirectional LSTM returning only the final hidden state (char RNN):
# no per-step HBM writes; h_fin stored once on the last grid step.
# ----------------------------------------------------------------------------
def _lstm_final_kernel(lens_ref, p_ref, whh_ref, hfin_ref, h_scr, c_scr):
    t = pl.program_id(0)

    @pl.when(t == 0)
    def _init():
        h_scr[...] = jnp.zeros_like(h_scr)
        c_scr[...] = jnp.zeros_like(c_scr)

    H = h_scr.shape[-1]
    Hg = whh_ref.shape[-1] // 4
    h = h_scr[...]
    c = c_scr[...]
    z = p_ref[0] + jnp.dot(h.astype(jnp.bfloat16), whh_ref[...],
                           preferred_element_type=jnp.float32)
    i_g = jax.nn.sigmoid(z[:, 0 * Hg:0 * Hg + H])
    f_g = jax.nn.sigmoid(z[:, 1 * Hg:1 * Hg + H])
    g_g = jnp.tanh(z[:, 2 * Hg:2 * Hg + H])
    o_g = jax.nn.sigmoid(z[:, 3 * Hg:3 * Hg + H])
    c_new = i_g * g_g + f_g * c
    h_new = o_g * jnp.tanh(c_new)
    valid = t < lens_ref[...]
    h_scr[...] = jnp.where(valid, h_new, h)
    c_scr[...] = jnp.where(valid, c_new, c)

    @pl.when(t == pl.num_programs(0) - 1)
    def _fin():
        hfin_ref[...] = h_scr[...]


def char_rnn(params, char_ids):
    """char_ids [B, T, C] -> [B, T, word_embed] (char LSTM final state + projection)."""
    B, T, C = char_ids.shape
    N = B * T
    flat = char_ids.reshape(N, C)
    ce = params["char_emb"][flat]                                   # (N, C, E)
    clens = jnp.sum((flat != 0).astype(jnp.int32), axis=1)[:, None]  # (N, 1)
    E = ce.shape[-1]
    G = params["char_w_ih"].shape[1]
    H = params["char_whh"].shape[0]

    ce_tm = jnp.transpose(ce, (1, 0, 2)).reshape(C * N, E)          # time-major
    proj = _pallas_linear(ce_tm, params["char_w_ih"], params["char_b"],
                          leaky=False).reshape(C, N, G)

    h_fin = pl.pallas_call(
        _lstm_final_kernel,
        out_shape=jax.ShapeDtypeStruct((N, H), jnp.float32),
        grid=(C,),
        in_specs=[pl.BlockSpec((N, 1), lambda t: (0, 0)),
                  pl.BlockSpec((1, N, G), lambda t: (t, 0, 0)),
                  pl.BlockSpec((H, G), lambda t: (0, 0))],
        out_specs=pl.BlockSpec((N, H), lambda t: (0, 0)),
        scratch_shapes=[pltpu.VMEM((N, H), jnp.float32),
                        pltpu.VMEM((N, H), jnp.float32)],
        compiler_params=_cparams("arbitrary"),
    )(clens, proj, params["char_whh"])

    # TODO(synk): Char_RNN source not provided; final state -> linear projection assumed.
    out = _pallas_linear(h_fin, params["char_proj_w"], params["char_proj_b"], leaky=False)
    return out.reshape(B, T, -1)


# ----------------------------------------------------------------------------
# Fused arc + label biaffine scoring, grid=(B,).
# Head/dep affine terms and biases are folded into the padded biaffine weights
# via "ones" feature columns; the relation axis R is unrolled inside the body.
# Tolerance note: both matmul stages use bf16 MXU operands (f32 accumulation);
# the intermediate `aff` is re-rounded to bf16 before the second matmul.
# ----------------------------------------------------------------------------
def _biaffine_scores_kernel(feat_ref, arc_w_ref, label_wcat_ref, arc_o_ref, lab_o_ref):
    Ap = arc_w_ref.shape[0]
    Mtot = feat_ref.shape[-1]
    Lp = (Mtot - 2 * Ap) // 2
    R = label_wcat_ref.shape[1] // Lp

    feat = feat_ref[0]                               # (Sp, Mtot) bf16, lane-aligned slices
    arc_head = feat[:, 0:Ap]
    arc_dep = feat[:, Ap:2 * Ap]
    lab_head = feat[:, 2 * Ap:2 * Ap + Lp]
    lab_dep = feat[:, 2 * Ap + Lp:2 * Ap + 2 * Lp]

    # arc: o[dep, head] = dep_aug . (head @ W_aug)
    aff = jnp.dot(arc_head, arc_w_ref[...], preferred_element_type=jnp.float32)
    arc_o_ref[0] = jax.lax.dot_general(
        arc_dep, aff.astype(jnp.bfloat16), (((1,), (1,)), ((), ())),
        preferred_element_type=jnp.float32)

    # label: one lane-dense (Sp,Lp)@(Lp,R*Lp) matmul, then R lane-aligned slices
    laff = jnp.dot(lab_head, label_wcat_ref[...],
                   preferred_element_type=jnp.float32).astype(jnp.bfloat16)
    for r in range(R):                               # static unroll, no extra grid steps
        lab_o_ref[0, r] = jax.lax.dot_general(
            lab_dep, laff[:, r * Lp:(r + 1) * Lp], (((1,), (1,)), ((), ())),
            preferred_element_type=jnp.float32)


def pallas_biaffine_scores(feat_bf16, arc_w, label_wcat):
    """feat [B, Sp, Mtot] bf16 -> arc [B, Sp, Sp], label [B, R, Sp, Sp] (both f32)."""
    B, Sp, Mtot = feat_bf16.shape
    Ap = arc_w.shape[0]
    Lp = (Mtot - 2 * Ap) // 2
    R = label_wcat.shape[1] // Lp
    return pl.pallas_call(
        _biaffine_scores_kernel,
        out_shape=(jax.ShapeDtypeStruct((B, Sp, Sp), jnp.float32),
                   jax.ShapeDtypeStruct((B, R, Sp, Sp), jnp.float32)),
        grid=(B,),
        in_specs=[pl.BlockSpec((1, Sp, Mtot), lambda b: (b, 0, 0)),
                  pl.BlockSpec((Ap, Ap), lambda b: (0, 0)),
                  pl.BlockSpec((Lp, R * Lp), lambda b: (0, 0))],
        out_specs=(pl.BlockSpec((1, Sp, Sp), lambda b: (b, 0, 0)),
                   pl.BlockSpec((1, R, Sp, Sp), lambda b: (b, 0, 0, 0))),
        compiler_params=_cparams("parallel"),
    )(feat_bf16, arc_w.astype(jnp.bfloat16), label_wcat.astype(jnp.bfloat16))


# ----------------------------------------------------------------------------
# Full forward pass (eval mode)
# ----------------------------------------------------------------------------
def rnn_forward(params, word_tensor, ext_word_ids, char_ids, pos_tensor, xpos_tensor,
                seq_lengths):
    x_embed = params["word_emb"][word_tensor]                     # [B, T, We]
    char_embed = char_rnn(params, char_ids)                       # [B, T, We]
    ext_embed = params["ext_emb"][ext_word_ids]                   # [B, T, We]
    x_embed = x_embed + ext_embed + char_embed

    pos_xpos = params["pos_emb"][pos_tensor] + params["xpos_emb"][xpos_tensor]
    input_embed = jnp.concatenate([x_embed, pos_xpos], axis=2)    # [B, T, We+Pe]
    B = input_embed.shape[0]
    root = jnp.broadcast_to(params["ROOT"][None, None, :], (B, 1, input_embed.shape[2]))
    input_embed = jnp.concatenate([root, input_embed], axis=1)    # [B, S, D]
    S = input_embed.shape[1]

    lengths_col = (seq_lengths + 1).astype(jnp.int32)[:, None]    # (B, 1), +1 for ROOT
    out_rnn = stacked_bilstm(input_embed, lengths_col, params["lstm"])   # [B, S, 2H]

    # One fused, lane-dense LeakyReLU matmul for all four MLP projections.
    flat = out_rnn.reshape(B * S, out_rnn.shape[-1])
    fused = _pallas_linear(flat, params["W_mlp_fused"], params["b_mlp_fused"], leaky=True)
    Mtot = fused.shape[-1]
    fused = fused.reshape(B, S, Mtot)

    # Pad S to a multiple of 128 so all (Sp, Sp) score stores are lane-dense.
    Sp = _round_up(S, 128)
    if Sp != S:
        fused = jnp.pad(fused, ((0, 0), (0, Sp - S), (0, 0)))
    # NOTE: the "ones" augmentation columns (arc_dep/label_head/label_dep last
    # column of each section) are produced by a 1.0 bias on an all-zero W column
    # (LeakyReLU(1)=1); padded rows lose them but are sliced away below.
    feat = fused.astype(jnp.bfloat16)

    arc_full, lab_full = pallas_biaffine_scores(
        feat, params["arc_W_aug"], params["label_W_cat"])

    arc_scores = arc_full[:, :S, :S]                               # [b, dep, head]
    label_scores = jnp.transpose(lab_full[:, :, :S, :S], (0, 2, 3, 1))  # [b, dep, head, r]
    return arc_scores, label_scores


# ----------------------------------------------------------------------------
# Deterministic parameters, pre-laid-out / pre-padded for the kernels
# ----------------------------------------------------------------------------
def make_params(key, *, word_vocab, ext_vocab, char_vocab, pos_vocab, xpos_vocab,
                word_embed, pos_embed, char_embed, char_hidden, hidden, num_layers,
                mlp_arc, mlp_label, rels):
    keys = iter(jax.random.split(key, 128))

    def rnd(shape, scale=0.1):
        return scale * jax.random.normal(next(keys), shape, dtype=jnp.float32)

    def lstm_dir(in_dim, H):
        # Gate columns at 128-aligned offsets [g*Hg, g*Hg+H); pad columns are
        # zero so the padded gate lanes stay inert.  Gate order: i, f, g, o.
        Hg = _round_up(H, 128)
        w_ih = jnp.zeros((in_dim, 4 * Hg), jnp.float32)
        w_hh = jnp.zeros((H, 4 * Hg), jnp.float32)
        for g in range(4):
            w_ih = w_ih.at[:, g * Hg:g * Hg + H].set(rnd((in_dim, H)))
            w_hh = w_hh.at[:, g * Hg:g * Hg + H].set(rnd((H, H)))
        # Combined bias: when loading real torch weights this must be b_ih + b_hh.
        b = jnp.zeros((1, 4 * Hg), jnp.float32)
        return w_ih, w_hh, b

    p = {}
    p["word_emb"] = rnd((word_vocab, word_embed)).at[0].set(0.0)
    p["ext_emb"] = rnd((ext_vocab, word_embed)).at[0].set(0.0)
    p["pos_emb"] = rnd((pos_vocab, pos_embed)).at[0].set(0.0)
    p["xpos_emb"] = rnd((xpos_vocab, pos_embed)).at[0].set(0.0)
    p["ROOT"] = rnd((word_embed + pos_embed,), 0.001)

    # char LSTM (final-state only) + projection
    p["char_emb"] = rnd((char_vocab, char_embed)).at[0].set(0.0)
    cw_ih, cw_hh, cb = lstm_dir(char_embed, char_hidden)
    p["char_w_ih"] = cw_ih
    p["char_whh"] = cw_hh.astype(jnp.bfloat16)          # resident bf16 MXU operand
    p["char_b"] = cb
    p["char_proj_w"] = rnd((char_hidden, word_embed))
    p["char_proj_b"] = jnp.zeros((1, word_embed), jnp.float32)

    # stacked BiLSTM: fused-gate weights, stacked (fwd, bwd) recurrent weights
    lstm_layers = []
    in_dim = word_embed + pos_embed
    for _ in range(num_layers):
        wf_ih, wf_hh, bf_ = lstm_dir(in_dim, hidden)
        wb_ih, wb_hh, bb_ = lstm_dir(in_dim, hidden)
        lstm_layers.append({
            "w_ih_f": wf_ih, "w_ih_b": wb_ih,
            "whh": jnp.stack([wf_hh, wb_hh], axis=0).astype(jnp.bfloat16),
            "b_f": bf_, "b_b": bb_,
        })
        in_dim = 2 * hidden
    p["lstm"] = lstm_layers

    # ---- raw (torch-layout) MLP / biaffine parameters ----------------------
    A, L, R = mlp_arc, mlp_label, rels
    H2 = 2 * hidden
    W_arc_head = rnd((A, H2)); b_arc_head = jnp.zeros((A,), jnp.float32)
    W_arc_dep = rnd((A, H2));  b_arc_dep = jnp.zeros((A,), jnp.float32)
    W_label_head = rnd((L, H2)); b_label_head = jnp.zeros((L,), jnp.float32)
    W_label_dep = rnd((L, H2));  b_label_dep = jnp.zeros((L,), jnp.float32)
    # PyTorch inits these to zero; use small random so the kernel path is exercised
    arc_biaf = rnd((A, A))
    W_arc_head_aff = rnd((1, A))
    label_biaf = rnd((L, L, R))
    W_label_head_aff = rnd((R, L))
    W_label_dep_aff = rnd((R, L))
    label_bias = rnd((R,))

    # ---- derived kernel-friendly (padded / fused / folded) layouts ---------
    Ap = _round_up(A + 1, 128)     # column Ap-1 of the arc_dep section is the ones col
    Lp = _round_up(L + 1, 128)     # column Lp-1 of the label sections is the ones col

    Mtot = 2 * Ap + 2 * Lp
    Wf = jnp.zeros((H2, Mtot), jnp.float32)
    Wf = Wf.at[:, 0:A].set(W_arc_head.T)
    Wf = Wf.at[:, Ap:Ap + A].set(W_arc_dep.T)
    Wf = Wf.at[:, 2 * Ap:2 * Ap + L].set(W_label_head.T)
    Wf = Wf.at[:, 2 * Ap + Lp:2 * Ap + Lp + L].set(W_label_dep.T)
    bfu = jnp.zeros((1, Mtot), jnp.float32)
    bfu = bfu.at[0, 0:A].set(b_arc_head)
    bfu = bfu.at[0, Ap:Ap + A].set(b_arc_dep)
    bfu = bfu.at[0, 2 * Ap:2 * Ap + L].set(b_label_head)
    bfu = bfu.at[0, 2 * Ap + Lp:2 * Ap + Lp + L].set(b_label_dep)
    # "ones" feature columns via bias=1.0 on zero weight columns (LeakyReLU(1)=1).
    # These positions must stay zero in Wf and must keep LeakyReLU as activation.
    bfu = bfu.at[0, 2 * Ap - 1].set(1.0)                 # arc_dep ones column
    bfu = bfu.at[0, 2 * Ap + Lp - 1].set(1.0)            # label_head ones column
    bfu = bfu.at[0, 2 * Ap + 2 * Lp - 1].set(1.0)        # label_dep ones column
    p["W_mlp_fused"] = Wf
    p["b_mlp_fused"] = bfu

    # arc biaffine with the head-affine folded into the last (padded) column
    Wa = jnp.zeros((Ap, Ap), jnp.float32)
    Wa = Wa.at[:A, :A].set(arc_biaf)
    Wa = Wa.at[:A, Ap - 1].set(W_arc_head_aff[0])
    p["arc_W_aug"] = Wa                                  # (Ap, Ap)

    # label biaffine: exact replication of the module's label_biaf.view(L, R*L)
    # indexing, with head-affine / dep-affine / bias folded into row/col Lp-1,
    # concatenated along columns per relation -> (Lp, R*Lp) for one big matmul.
    biaf2d = label_biaf.reshape(L, R * L)
    wbiaf_rll = biaf2d.reshape(L, R, L).transpose(1, 0, 2)        # (R, L, L)
    Wl = jnp.zeros((R, Lp, Lp), jnp.float32)
    Wl = Wl.at[:, :L, :L].set(wbiaf_rll)
    Wl = Wl.at[:, :L, Lp - 1].set(W_label_head_aff)               # * lh, via dep ones col
    Wl = Wl.at[:, Lp - 1, :L].set(W_label_dep_aff)                # * ld, via head ones col
    Wl = Wl.at[:, Lp - 1, Lp - 1].set(label_bias)                 # bias, via both ones
    p["label_W_cat"] = jnp.transpose(Wl, (1, 0, 2)).reshape(Lp, R * Lp)
    return p


# ----------------------------------------------------------------------------
if __name__ == "__main__":
    B, T, Cmax = 2, 8, 6
    word_vocab, ext_vocab, char_vocab, pos_vocab, xpos_vocab = 20, 20, 16, 6, 6
    word_embed, pos_embed = 32, 16
    char_embed, char_hidden = 16, 16
    hidden, num_layers = 32, 2
    mlp_arc, mlp_label, rels = 64, 32, 8

    key = jax.random.PRNGKey(0)
    kp, k1, k2, k3, k4, k5 = jax.random.split(key, 6)

    params = make_params(
        kp, word_vocab=word_vocab, ext_vocab=ext_vocab, char_vocab=char_vocab,
        pos_vocab=pos_vocab, xpos_vocab=xpos_vocab, word_embed=word_embed,
        pos_embed=pos_embed, char_embed=char_embed, char_hidden=char_hidden,
        hidden=hidden, num_layers=num_layers, mlp_arc=mlp_arc,
        mlp_label=mlp_label, rels=rels)

    seq_lengths = jnp.array([8, 6], dtype=jnp.int32)              # sorted, descending
    tmask = (jnp.arange(T)[None, :] < seq_lengths[:, None]).astype(jnp.int32)

    word_tensor = jax.random.randint(k1, (B, T), 1, word_vocab, dtype=jnp.int32) * tmask
    ext_word_ids = jax.random.randint(k2, (B, T), 1, ext_vocab, dtype=jnp.int32) * tmask
    pos_tensor = jax.random.randint(k3, (B, T), 1, pos_vocab, dtype=jnp.int32) * tmask
    xpos_tensor = jax.random.randint(k4, (B, T), 1, xpos_vocab, dtype=jnp.int32) * tmask
    char_ids = jax.random.randint(k5, (B, T, Cmax), 1, char_vocab, dtype=jnp.int32)
    char_ids = char_ids * tmask[:, :, None]
    # variable char lengths (pad the last chars for every other word)
    char_ids = char_ids.at[:, :, Cmax - 2:].multiply(
        (jnp.arange(T)[None, :, None] % 2).astype(jnp.int32))

    fwd = jax.jit(functools.partial(rnn_forward, params))
    arc_scores, label_scores = fwd(word_tensor, ext_word_ids, char_ids,
                                   pos_tensor, xpos_tensor, seq_lengths)
    jax.block_until_ready((arc_scores, label_scores))

    S = T + 1
    assert arc_scores.shape == (B, S, S), arc_scores.shape
    assert label_scores.shape == (B, S, S, rels), label_scores.shape
    assert bool(jnp.all(jnp.isfinite(arc_scores)))
    assert bool(jnp.all(jnp.isfinite(label_scores)))
    print("KERNEL_OK")
</pallas_src>

<mosaic_0001>
module attributes {stable_mosaic.version = 11 : i64} {
  func.func @_linear_kernel(%arg0: i32, %arg1: memref<96x16xbf16, #tpu.memory_space<vmem>>, %arg2: memref<16x512xbf16, #tpu.memory_space<vmem>>, %arg3: memref<1x512xf32, #tpu.memory_space<vmem>>, %arg4: memref<96x512xf32, #tpu.memory_space<vmem>>) attributes {dimension_semantics = [#tpu.dimension_semantics<parallel>], iteration_bounds = array<i64: 1>, scalar_prefetch = 0 : i64, scratch_operands = 0 : i64, tpu.core_type = #tpu.core_type<tc>, window_params = [{transform_indices = @transform_0, window_bounds = array<i64: 96, 16>}, {pipeline_mode = #tpu.pipeline_mode<synchronous>, transform_indices = @transform_1, window_bounds = array<i64: 16, 512>}, {pipeline_mode = #tpu.pipeline_mode<synchronous>, transform_indices = @transform_2, window_bounds = array<i64: 1, 512>}, {transform_indices = @transform_3, window_bounds = array<i64: 96, 512>}]} {
    %c0 = arith.constant 0 : index
    %c0_0 = arith.constant 0 : index
    %0 = vector.load %arg1[%c0, %c0_0] : memref<96x16xbf16, #tpu.memory_space<vmem>>, vector<96x16xbf16>
    %c0_1 = arith.constant 0 : index
    %c0_2 = arith.constant 0 : index
    %1 = vector.load %arg2[%c0_1, %c0_2] : memref<16x512xbf16, #tpu.memory_space<vmem>>, vector<16x512xbf16>
    %cst = arith.constant dense<0.000000e+00> : vector<96x512xf32>
    %2 = tpu.matmul %0, %1, %cst {dimension_numbers = #tpu.dot_dimension_numbers<[1], [0], [0], [1], [0, 0, 1, 1], [], []>} : vector<96x16xbf16>, vector<16x512xbf16>, vector<96x512xf32> -> vector<96x512xf32>
    %c0_3 = arith.constant 0 : index
    %c0_4 = arith.constant 0 : index
    %3 = vector.load %arg3[%c0_3, %c0_4] : memref<1x512xf32, #tpu.memory_space<vmem>>, vector<1x512xf32>
    %4 = vector.broadcast %3 : vector<1x512xf32> to vector<96x512xf32>
    %5 = arith.addf %2, %4 : vector<96x512xf32>
    %c0_5 = arith.constant 0 : index
    %c0_6 = arith.constant 0 : index
    %6 = vector.load %arg4[%c0_5, %c0_6] : memref<96x512xf32, #tpu.memory_space<vmem>>, vector<96x512xf32>
    tpu.vector_store %arg4[%c0_5, %c0_6], %5 {strides = array<i32>} : memref<96x512xf32, #tpu.memory_space<vmem>>, vector<96x512xf32>,
    return
  }
  func.func @transform_0(%arg0: i32) -> (i32, i32) {
    %c0_i32 = arith.constant 0 : i32
    %c0_i32_0 = arith.constant 0 : i32
    return %arg0, %c0_i32 : i32, i32
  }
  func.func @transform_1(%arg0: i32) -> (i32, i32) {
    %c0_i32 = arith.constant 0 : i32
    %c0_i32_0 = arith.constant 0 : i32
    %c0_i32_1 = arith.constant 0 : i32
    return %c0_i32, %c0_i32_0 : i32, i32
  }
  func.func @transform_2(%arg0: i32) -> (i32, i32) {
    %c0_i32 = arith.constant 0 : i32
    %c0_i32_0 = arith.constant 0 : i32
    %c0_i32_1 = arith.constant 0 : i32
    return %c0_i32, %c0_i32_0 : i32, i32
  }
  func.func @transform_3(%arg0: i32) -> (i32, i32) {
    %c0_i32 = arith.constant 0 : i32
    %c0_i32_0 = arith.constant 0 : i32
    return %arg0, %c0_i32 : i32, i32
  }
}

module attributes {stable_mosaic.version = 11 : i64} {
  func.func @_lstm_final_kernel(%arg0: i32, %arg1: memref<16x1xi32, #tpu.memory_space<vmem>>, %arg2: memref<1x16x512xf32, #tpu.memory_space<vmem>>, %arg3: memref<16x512xbf16, #tpu.memory_space<vmem>>, %arg4: memref<16x16xf32, #tpu.memory_space<vmem>>, %arg5: memref<16x16xf32, #tpu.memory_space<vmem>>, %arg6: memref<16x16xf32, #tpu.memory_space<vmem>>) attributes {dimension_semantics = [#tpu.dimension_semantics<arbitrary>], iteration_bounds = array<i64: 6>, scalar_prefetch = 0 : i64, scratch_operands = 2 : i64, tpu.core_type = #tpu.core_type<tc>, window_params = [{pipeline_mode = #tpu.pipeline_mode<synchronous>, transform_indices = @transform_0, window_bounds = array<i64: 16, 1>}, {transform_indices = @transform_1, window_bounds = array<i64: 1, 16, 512>}, {pipeline_mode = #tpu.pipeline_mode<synchronous>, transform_indices = @transform_2, window_bounds = array<i64: 16, 512>}, {pipeline_mode = #tpu.pipeline_mode<synchronous>, transform_indices = @transform_3, window_bounds = array<i64: 16, 16>}]} {
    %c0_i32 = arith.constant 0 : i32
    %0 = arith.cmpi eq, %arg0, %c0_i32 : i32
    %1 = arith.extui %0 : i1 to i32
    %c0_i32_0 = arith.constant 0 : i32
    %2 = arith.cmpi ne, %1, %c0_i32_0 : i32
    scf.if %2 {
      %cst_19 = arith.constant 0.000000e+00 : f32
      %50 = vector.broadcast %cst_19 : f32 to vector<16x16xf32>
      %c0_20 = arith.constant 0 : index
      %c0_21 = arith.constant 0 : index
      %51 = vector.load %arg5[%c0_20, %c0_21] : memref<16x16xf32, #tpu.memory_space<vmem>>, vector<16x16xf32>
      tpu.vector_store %arg5[%c0_20, %c0_21], %50 {strides = array<i32>} : memref<16x16xf32, #tpu.memory_space<vmem>>, vector<16x16xf32>,
      %cst_22 = arith.constant 0.000000e+00 : f32
      %52 = vector.broadcast %cst_22 : f32 to vector<16x16xf32>
      %c0_23 = arith.constant 0 : index
      %c0_24 = arith.constant 0 : index
      %53 = vector.load %arg6[%c0_23, %c0_24] : memref<16x16xf32, #tpu.memory_space<vmem>>, vector<16x16xf32>
      tpu.vector_store %arg6[%c0_23, %c0_24], %52 {strides = array<i32>} : memref<16x16xf32, #tpu.memory_space<vmem>>, vector<16x16xf32>,
    } else {
    }
    %c0 = arith.constant 0 : index
    %c0_1 = arith.constant 0 : index
    %3 = vector.load %arg5[%c0, %c0_1] : memref<16x16xf32, #tpu.memory_space<vmem>>, vector<16x16xf32>
    %c0_2 = arith.constant 0 : index
    %c0_3 = arith.constant 0 : index
    %4 = vector.load %arg6[%c0_2, %c0_3] : memref<16x16xf32, #tpu.memory_space<vmem>>, vector<16x16xf32>
    %c0_4 = arith.constant 0 : index
    %c0_5 = arith.constant 0 : index
    %c0_6 = arith.constant 0 : index
    %5 = vector.load %arg2[%c0_4, %c0_5, %c0_6] : memref<1x16x512xf32, #tpu.memory_space<vmem>>, vector<1x16x512xf32>
    %6 = vector.shape_cast %5 : vector<1x16x512xf32> to vector<16x512xf32>
    %7 = arith.truncf %3 : vector<16x16xf32> to vector<16x16xbf16>
    %c0_7 = arith.constant 0 : index
    %c0_8 = arith.constant 0 : index
    %8 = vector.load %arg3[%c0_7, %c0_8] : memref<16x512xbf16, #tpu.memory_space<vmem>>, vector<16x512xbf16>
    %cst = arith.constant dense<0.000000e+00> : vector<16x512xf32>
    %9 = tpu.matmul %7, %8, %cst {dimension_numbers = #tpu.dot_dimension_numbers<[1], [0], [0], [1], [0, 0, 1, 1], [], []>} : vector<16x16xbf16>, vector<16x512xbf16>, vector<16x512xf32> -> vector<16x512xf32>
    %10 = arith.addf %6, %9 : vector<16x512xf32>
    %11 = vector.extract_strided_slice %10 {offsets = [0, 0], sizes = [16, 16], strides = [1, 1]} : vector<16x512xf32> to vector<16x16xf32>
    %12 = arith.negf %11 : vector<16x16xf32>
    %13 = math.exp %12 : vector<16x16xf32>
    %cst_9 = arith.constant 1.000000e+00 : f32
    %14 = vector.broadcast %cst_9 : f32 to vector<16x16xf32>
    %15 = arith.addf %14, %13 : vector<16x16xf32>
    %16 = arith.divf %14, %15 : vector<16x16xf32>
    %17 = vector.extract_strided_slice %10 {offsets = [0, 128], sizes = [16, 16], strides = [1, 1]} : vector<16x512xf32> to vector<16x16xf32>
    %18 = arith.negf %17 : vector<16x16xf32>
    %19 = math.exp %18 : vector<16x16xf32>
    %cst_10 = arith.constant 1.000000e+00 : f32
    %20 = vector.broadcast %cst_10 : f32 to vector<16x16xf32>
    %21 = arith.addf %20, %19 : vector<16x16xf32>
    %22 = arith.divf %20, %21 : vector<16x16xf32>
    %23 = vector.extract_strided_slice %10 {offsets = [0, 256], sizes = [16, 16], strides = [1, 1]} : vector<16x512xf32> to vector<16x16xf32>
    %24 = math.tanh %23 : vector<16x16xf32>
    %25 = vector.extract_strided_slice %10 {offsets = [0, 384], sizes = [16, 16], strides = [1, 1]} : vector<16x512xf32> to vector<16x16xf32>
    %26 = arith.negf %25 : vector<16x16xf32>
    %27 = math.exp %26 : vector<16x16xf32>
    %cst_11 = arith.constant 1.000000e+00 : f32
    %28 = vector.broadcast %cst_11 : f32 to vector<16x16xf32>
    %29 = arith.addf %28, %27 : vector<16x16xf32>
    %30 = arith.divf %28, %29 : vector<16x16xf32>
    %31 = arith.mulf %16, %24 : vector<16x16xf32>
    %32 = arith.mulf %22, %4 : vector<16x16xf32>
    %33 = arith.addf %31, %32 : vector<16x16xf32>
    %34 = math.tanh %33 : vector<16x16xf32>
    %35 = arith.mulf %30, %34 : vector<16x16xf32>
    %c0_12 = arith.constant 0 : index
    %c0_13 = arith.constant 0 : index
    %36 = vector.load %arg1[%c0_12, %c0_13] : memref<16x1xi32, #tpu.memory_space<vmem>>, vector<16x1xi32>
    %37 = vector.broadcast %arg0 : i32 to vector<16x1xi32>
    %38 = arith.cmpi slt, %37, %36 : vector<16x1xi32>
    %39 = vector.shape_cast %38 : vector<16x1xi1> to vector<16x1xi1>
    %40 = vector.broadcast %39 : vector<16x1xi1> to vector<16x16xi1>
    %41 = arith.select %40, %35, %3 : vector<16x16xi1>, vector<16x16xf32>
    %c0_14 = arith.constant 0 : index
    %c0_15 = arith.constant 0 : index
    %42 = vector.load %arg5[%c0_14, %c0_15] : memref<16x16xf32, #tpu.memory_space<vmem>>, vector<16x16xf32>
    tpu.vector_store %arg5[%c0_14, %c0_15], %41 {strides = array<i32>} : memref<16x16xf32, #tpu.memory_space<vmem>>, vector<16x16xf32>,
    %43 = vector.shape_cast %38 : vector<16x1xi1> to vector<16x1xi1>
    %44 = vector.broadcast %43 : vector<16x1xi1> to vector<16x16xi1>
    %45 = arith.select %44, %33, %4 : vector<16x16xi1>, vector<16x16xf32>
    %c0_16 = arith.constant 0 : index
    %c0_17 = arith.constant 0 : index
    %46 = vector.load %arg6[%c0_16, %c0_17] : memref<16x16xf32, #tpu.memory_space<vmem>>, vector<16x16xf32>
    tpu.vector_store %arg6[%c0_16, %c0_17], %45 {strides = array<i32>} : memref<16x16xf32, #tpu.memory_space<vmem>>, vector<16x16xf32>,
    %c5_i32 = arith.constant 5 : i32
    %47 = arith.cmpi eq, %arg0, %c5_i32 : i32
    %48 = arith.extui %47 : i1 to i32
    %c0_i32_18 = arith.constant 0 : i32
    %49 = arith.cmpi ne, %48, %c0_i32_18 : i32
    scf.if %49 {
      %c0_19 = arith.constant 0 : index
      %c0_20 = arith.constant 0 : index
      %50 = vector.load %arg5[%c0_19, %c0_20] : memref<16x16xf32, #tpu.memory_space<vmem>>, vector<16x16xf32>
      %c0_21 = arith.constant 0 : index
      %c0_22 = arith.constant 0 : index
      %51 = vector.load %arg4[%c0_21, %c0_22] : memref<16x16xf32, #tpu.memory_space<vmem>>, vector<16x16xf32>
      tpu.vector_store %arg4[%c0_21, %c0_22], %50 {strides = array<i32>} : memref<16x16xf32, #tpu.memory_space<vmem>>, vector<16x16xf32>,
    } else {
    }
    return
  }
  func.func @transform_0(%arg0: i32) -> (i32, i32) {
    %c0_i32 = arith.constant 0 : i32
    %c0_i32_0 = arith.constant 0 : i32
    %c0_i32_1 = arith.constant 0 : i32
    return %c0_i32, %c0_i32_0 : i32, i32
  }
  func.func @transform_1(%arg0: i32) -> (i32, i32, i32) {
    %c0_i32 = arith.constant 0 : i32
    %c0_i32_0 = arith.constant 0 : i32
    %c0_i32_1 = arith.constant 0 : i32
    return %arg0, %c0_i32, %c0_i32_0 : i32, i32, i32
  }
  func.func @transform_2(%arg0: i32) -> (i32, i32) {
    %c0_i32 = arith.constant 0 : i32
    %c0_i32_0 = arith.constant 0 : i32
    %c0_i32_1 = arith.constant 0 : i32
    return %c0_i32, %c0_i32_0 : i32, i32
  }
  func.func @transform_3(%arg0: i32) -> (i32, i32) {
    %c0_i32 = arith.constant 0 : i32
    %c0_i32_0 = arith.constant 0 : i32
    %c0_i32_1 = arith.constant 0 : i32
    return %c0_i32, %c0_i32_0 : i32, i32
  }
}

module attributes {stable_mosaic.version = 11 : i64} {
  func.func @_linear_kernel(%arg0: i32, %arg1: memref<16x16xbf16, #tpu.memory_space<vmem>>, %arg2: memref<16x32xbf16, #tpu.memory_space<vmem>>, %arg3: memref<1x32xf32, #tpu.memory_space<vmem>>, %arg4: memref<16x32xf32, #tpu.memory_space<vmem>>) attributes {dimension_semantics = [#tpu.dimension_semantics<parallel>], iteration_bounds = array<i64: 1>, scalar_prefetch = 0 : i64, scratch_operands = 0 : i64, tpu.core_type = #tpu.core_type<tc>, window_params = [{transform_indices = @transform_0, window_bounds = array<i64: 16, 16>}, {pipeline_mode = #tpu.pipeline_mode<synchronous>, transform_indices = @transform_1, window_bounds = array<i64: 16, 32>}, {pipeline_mode = #tpu.pipeline_mode<synchronous>, transform_indices = @transform_2, window_bounds = array<i64: 1, 32>}, {transform_indices = @transform_3, window_bounds = array<i64: 16, 32>}]} {
    %c0 = arith.constant 0 : index
    %c0_0 = arith.constant 0 : index
    %0 = vector.load %arg1[%c0, %c0_0] : memref<16x16xbf16, #tpu.memory_space<vmem>>, vector<16x16xbf16>
    %c0_1 = arith.constant 0 : index
    %c0_2 = arith.constant 0 : index
    %1 = vector.load %arg2[%c0_1, %c0_2] : memref<16x32xbf16, #tpu.memory_space<vmem>>, vector<16x32xbf16>
    %cst = arith.constant dense<0.000000e+00> : vector<16x32xf32>
    %2 = tpu.matmul %0, %1, %cst {dimension_numbers = #tpu.dot_dimension_numbers<[1], [0], [0], [1], [0, 0, 1, 1], [], []>} : vector<16x16xbf16>, vector<16x32xbf16>, vector<16x32xf32> -> vector<16x32xf32>
    %c0_3 = arith.constant 0 : index
    %c0_4 = arith.constant 0 : index
    %3 = vector.load %arg3[%c0_3, %c0_4] : memref<1x32xf32, #tpu.memory_space<vmem>>, vector<1x32xf32>
    %4 = vector.broadcast %3 : vector<1x32xf32> to vector<16x32xf32>
    %5 = arith.addf %2, %4 : vector<16x32xf32>
    %c0_5 = arith.constant 0 : index
    %c0_6 = arith.constant 0 : index
    %6 = vector.load %arg4[%c0_5, %c0_6] : memref<16x32xf32, #tpu.memory_space<vmem>>, vector<16x32xf32>
    tpu.vector_store %arg4[%c0_5, %c0_6], %5 {strides = array<i32>} : memref<16x32xf32, #tpu.memory_space<vmem>>, vector<16x32xf32>,
    return
  }
  func.func @transform_0(%arg0: i32) -> (i32, i32) {
    %c0_i32 = arith.constant 0 : i32
    %c0_i32_0 = arith.constant 0 : i32
    return %arg0, %c0_i32 : i32, i32
  }
  func.func @transform_1(%arg0: i32) -> (i32, i32) {
    %c0_i32 = arith.constant 0 : i32
    %c0_i32_0 = arith.constant 0 : i32
    %c0_i32_1 = arith.constant 0 : i32
    return %c0_i32, %c0_i32_0 : i32, i32
  }
  func.func @transform_2(%arg0: i32) -> (i32, i32) {
    %c0_i32 = arith.constant 0 : i32
    %c0_i32_0 = arith.constant 0 : i32
    %c0_i32_1 = arith.constant 0 : i32
    return %c0_i32, %c0_i32_0 : i32, i32
  }
  func.func @transform_3(%arg0: i32) -> (i32, i32) {
    %c0_i32 = arith.constant 0 : i32
    %c0_i32_0 = arith.constant 0 : i32
    return %arg0, %c0_i32 : i32, i32
  }
}

module attributes {stable_mosaic.version = 11 : i64} {
  func.func @_linear_kernel(%arg0: i32, %arg1: memref<24x48xbf16, #tpu.memory_space<vmem>>, %arg2: memref<48x512xbf16, #tpu.memory_space<vmem>>, %arg3: memref<1x512xf32, #tpu.memory_space<vmem>>, %arg4: memref<24x512xf32, #tpu.memory_space<vmem>>) attributes {dimension_semantics = [#tpu.dimension_semantics<parallel>], iteration_bounds = array<i64: 1>, scalar_prefetch = 0 : i64, scratch_operands = 0 : i64, tpu.core_type = #tpu.core_type<tc>, window_params = [{transform_indices = @transform_0, window_bounds = array<i64: 24, 48>}, {pipeline_mode = #tpu.pipeline_mode<synchronous>, transform_indices = @transform_1, window_bounds = array<i64: 48, 512>}, {pipeline_mode = #tpu.pipeline_mode<synchronous>, transform_indices = @transform_2, window_bounds = array<i64: 1, 512>}, {transform_indices = @transform_3, window_bounds = array<i64: 24, 512>}]} {
    %c0 = arith.constant 0 : index
    %c0_0 = arith.constant 0 : index
    %0 = vector.load %arg1[%c0, %c0_0] : memref<24x48xbf16, #tpu.memory_space<vmem>>, vector<24x48xbf16>
    %c0_1 = arith.constant 0 : index
    %c0_2 = arith.constant 0 : index
    %1 = vector.load %arg2[%c0_1, %c0_2] : memref<48x512xbf16, #tpu.memory_space<vmem>>, vector<48x512xbf16>
    %cst = arith.constant dense<0.000000e+00> : vector<24x512xf32>
    %2 = tpu.matmul %0, %1, %cst {dimension_numbers = #tpu.dot_dimension_numbers<[1], [0], [0], [1], [0, 0, 1, 1], [], []>} : vector<24x48xbf16>, vector<48x512xbf16>, vector<24x512xf32> -> vector<24x512xf32>
    %c0_3 = arith.constant 0 : index
    %c0_4 = arith.constant 0 : index
    %3 = vector.load %arg3[%c0_3, %c0_4] : memref<1x512xf32, #tpu.memory_space<vmem>>, vector<1x512xf32>
    %4 = vector.broadcast %3 : vector<1x512xf32> to vector<24x512xf32>
    %5 = arith.addf %2, %4 : vector<24x512xf32>
    %c0_5 = arith.constant 0 : index
    %c0_6 = arith.constant 0 : index
    %6 = vector.load %arg4[%c0_5, %c0_6] : memref<24x512xf32, #tpu.memory_space<vmem>>, vector<24x512xf32>
    tpu.vector_store %arg4[%c0_5, %c0_6], %5 {strides = array<i32>} : memref<24x512xf32, #tpu.memory_space<vmem>>, vector<24x512xf32>,
    return
  }
  func.func @transform_0(%arg0: i32) -> (i32, i32) {
    %c0_i32 = arith.constant 0 : i32
    %c0_i32_0 = arith.constant 0 : i32
    return %arg0, %c0_i32 : i32, i32
  }
  func.func @transform_1(%arg0: i32) -> (i32, i32) {
    %c0_i32 = arith.constant 0 : i32
    %c0_i32_0 = arith.constant 0 : i32
    %c0_i32_1 = arith.constant 0 : i32
    return %c0_i32, %c0_i32_0 : i32, i32
  }
  func.func @transform_2(%arg0: i32) -> (i32, i32) {
    %c0_i32 = arith.constant 0 : i32
    %c0_i32_0 = arith.constant 0 : i32
    %c0_i32_1 = arith.constant 0 : i32
    return %c0_i32, %c0_i32_0 : i32, i32
  }
  func.func @transform_3(%arg0: i32) -> (i32, i32) {
    %c0_i32 = arith.constant 0 : i32
    %c0_i32_0 = arith.constant 0 : i32
    return %arg0, %c0_i32 : i32, i32
  }
}

module attributes {stable_mosaic.version = 11 : i64} {
  func.func @_bilstm_kernel(%arg0: i32, %arg1: memref<2x1xi32, #tpu.memory_space<vmem>>, %arg2: memref<1x2x512xf32, #tpu.memory_space<vmem>>, %arg3: memref<1x2x512xf32, #tpu.memory_space<vmem>>, %arg4: memref<2x32x512xbf16, #tpu.memory_space<vmem>>, %arg5: memref<1x2x32xf32, #tpu.memory_space<vmem>>, %arg6: memref<1x2x32xf32, #tpu.memory_space<vmem>>, %arg7: memref<2x32xf32, #tpu.memory_space<vmem>>, %arg8: memref<2x32xf32, #tpu.memory_space<vmem>>, %arg9: memref<2x32xf32, #tpu.memory_space<vmem>>, %arg10: memref<2x32xf32, #tpu.memory_space<vmem>>) attributes {dimension_semantics = [#tpu.dimension_semantics<arbitrary>], iteration_bounds = array<i64: 9>, scalar_prefetch = 0 : i64, scratch_operands = 4 : i64, tpu.core_type = #tpu.core_type<tc>, window_params = [{pipeline_mode = #tpu.pipeline_mode<synchronous>, transform_indices = @transform_0, window_bounds = array<i64: 2, 1>}, {transform_indices = @transform_1, window_bounds = array<i64: 1, 2, 512>}, {transform_indices = @transform_2, window_bounds = array<i64: 1, 2, 512>}, {pipeline_mode = #tpu.pipeline_mode<synchronous>, transform_indices = @transform_3, window_bounds = array<i64: 2, 32, 512>}, {transform_indices = @transform_4, window_bounds = array<i64: 1, 2, 32>}, {transform_indices = @transform_5, window_bounds = array<i64: 1, 2, 32>}]} {
    %c0_i32 = arith.constant 0 : i32
    %0 = arith.cmpi eq, %arg0, %c0_i32 : i32
    %1 = arith.extui %0 : i1 to i32
    %c0_i32_0 = arith.constant 0 : i32
    %2 = arith.cmpi ne, %1, %c0_i32_0 : i32
    scf.if %2 {
      %cst_44 = arith.constant 0.000000e+00 : f32
      %107 = vector.broadcast %cst_44 : f32 to vector<2x32xf32>
      %c0_45 = arith.constant 0 : index
      %c0_46 = arith.constant 0 : index
      %108 = vector.load %arg7[%c0_45, %c0_46] : memref<2x32xf32, #tpu.memory_space<vmem>>, vector<2x32xf32>
      tpu.vector_store %arg7[%c0_45, %c0_46], %107 {strides = array<i32>} : memref<2x32xf32, #tpu.memory_space<vmem>>, vector<2x32xf32>,
      %cst_47 = arith.constant 0.000000e+00 : f32
      %109 = vector.broadcast %cst_47 : f32 to vector<2x32xf32>
      %c0_48 = arith.constant 0 : index
      %c0_49 = arith.constant 0 : index
      %110 = vector.load %arg8[%c0_48, %c0_49] : memref<2x32xf32, #tpu.memory_space<vmem>>, vector<2x32xf32>
      tpu.vector_store %arg8[%c0_48, %c0_49], %109 {strides = array<i32>} : memref<2x32xf32, #tpu.memory_space<vmem>>, vector<2x32xf32>,
      %cst_50 = arith.constant 0.000000e+00 : f32
      %111 = vector.broadcast %cst_50 : f32 to vector<2x32xf32>
      %c0_51 = arith.constant 0 : index
      %c0_52 = arith.constant 0 : index
      %112 = vector.load %arg9[%c0_51, %c0_52] : memref<2x32xf32, #tpu.memory_space<vmem>>, vector<2x32xf32>
      tpu.vector_store %arg9[%c0_51, %c0_52], %111 {strides = array<i32>} : memref<2x32xf32, #tpu.memory_space<vmem>>, vector<2x32xf32>,
      %cst_53 = arith.constant 0.000000e+00 : f32
      %113 = vector.broadcast %cst_53 : f32 to vector<2x32xf32>
      %c0_54 = arith.constant 0 : index
      %c0_55 = arith.constant 0 : index
      %114 = vector.load %arg10[%c0_54, %c0_55] : memref<2x32xf32, #tpu.memory_space<vmem>>, vector<2x32xf32>
      tpu.vector_store %arg10[%c0_54, %c0_55], %113 {strides = array<i32>} : memref<2x32xf32, #tpu.memory_space<vmem>>, vector<2x32xf32>,
    } else {
    }
    %c0 = arith.constant 0 : index
    %c0_1 = arith.constant 0 : index
    %3 = vector.load %arg1[%c0, %c0_1] : memref<2x1xi32, #tpu.memory_space<vmem>>, vector<2x1xi32>
    %c0_2 = arith.constant 0 : index
    %c0_3 = arith.constant 0 : index
    %c0_4 = arith.constant 0 : index
    %4 = vector.load %arg2[%c0_2, %c0_3, %c0_4] : memref<1x2x512xf32, #tpu.memory_space<vmem>>, vector<1x2x512xf32>
    %5 = vector.shape_cast %4 : vector<1x2x512xf32> to vector<2x512xf32>
    %c0_5 = arith.constant 0 : index
    %c0_6 = arith.constant 0 : index
    %c0_7 = arith.constant 0 : index
    %6 = vector.load %arg4[%c0_5, %c0_6, %c0_7] : memref<2x32x512xbf16, #tpu.memory_space<vmem>>, vector<1x32x512xbf16>
    %7 = vector.shape_cast %6 : vector<1x32x512xbf16> to vector<32x512xbf16>
    %8 = vector.broadcast %arg0 : i32 to vector<2x1xi32>
    %9 = arith.cmpi slt, %8, %3 : vector<2x1xi32>
    %c0_8 = arith.constant 0 : index
    %c0_9 = arith.constant 0 : index
    %10 = vector.load %arg7[%c0_8, %c0_9] : memref<2x32xf32, #tpu.memory_space<vmem>>, vector<2x32xf32>
    %c0_10 = arith.constant 0 : index
    %c0_11 = arith.constant 0 : index
    %11 = vector.load %arg8[%c0_10, %c0_11] : memref<2x32xf32, #tpu.memory_space<vmem>>, vector<2x32xf32>
    %12 = arith.truncf %10 : vector<2x32xf32> to vector<2x32xbf16>
    %cst = arith.constant dense<0.000000e+00> : vector<2x512xf32>
    %13 = tpu.matmul %12, %7, %cst {dimension_numbers = #tpu.dot_dimension_numbers<[1], [0], [0], [1], [0, 0, 1, 1], [], []>} : vector<2x32xbf16>, vector<32x512xbf16>, vector<2x512xf32> -> vector<2x512xf32>
    %14 = arith.addf %5, %13 : vector<2x512xf32>
    %15 = vector.extract_strided_slice %14 {offsets = [0, 0], sizes = [2, 32], strides = [1, 1]} : vector<2x512xf32> to vector<2x32xf32>
    %16 = arith.negf %15 : vector<2x32xf32>
    %17 = math.exp %16 : vector<2x32xf32>
    %cst_12 = arith.constant 1.000000e+00 : f32
    %18 = vector.broadcast %cst_12 : f32 to vector<2x32xf32>
    %19 = arith.addf %18, %17 : vector<2x32xf32>
    %20 = arith.divf %18, %19 : vector<2x32xf32>
    %21 = vector.extract_strided_slice %14 {offsets = [0, 128], sizes = [2, 32], strides = [1, 1]} : vector<2x512xf32> to vector<2x32xf32>
    %22 = arith.negf %21 : vector<2x32xf32>
    %23 = math.exp %22 : vector<2x32xf32>
    %cst_13 = arith.constant 1.000000e+00 : f32
    %24 = vector.broadcast %cst_13 : f32 to vector<2x32xf32>
    %25 = arith.addf %24, %23 : vector<2x32xf32>
    %26 = arith.divf %24, %25 : vector<2x32xf32>
    %27 = vector.extract_strided_slice %14 {offsets = [0, 256], sizes = [2, 32], strides = [1, 1]} : vector<2x512xf32> to vector<2x32xf32>
    %28 = math.tanh %27 : vector<2x32xf32>
    %29 = vector.extract_strided_slice %14 {offsets = [0, 384], sizes = [2, 32], strides = [1, 1]} : vector<2x512xf32> to vector<2x32xf32>
    %30 = arith.negf %29 : vector<2x32xf32>
    %31 = math.exp %30 : vector<2x32xf32>
    %cst_14 = arith.constant 1.000000e+00 : f32
    %32 = vector.broadcast %cst_14 : f32 to vector<2x32xf32>
    %33 = arith.addf %32, %31 : vector<2x32xf32>
    %34 = arith.divf %32, %33 : vector<2x32xf32>
    %35 = arith.mulf %20, %28 : vector<2x32xf32>
    %36 = arith.mulf %26, %11 : vector<2x32xf32>
    %37 = arith.addf %35, %36 : vector<2x32xf32>
    %38 = math.tanh %37 : vector<2x32xf32>
    %39 = arith.mulf %34, %38 : vector<2x32xf32>
    %cst_15 = arith.constant 0.000000e+00 : f32
    %40 = vector.shape_cast %9 : vector<2x1xi1> to vector<2x1xi1>
    %41 = vector.broadcast %40 : vector<2x1xi1> to vector<2x32xi1>
    %42 = vector.broadcast %cst_15 : f32 to vector<2x32xf32>
    %43 = arith.select %41, %39, %42 : vector<2x32xi1>, vector<2x32xf32>
    %c0_16 = arith.constant 0 : index
    %c0_17 = arith.constant 0 : index
    %c0_18 = arith.constant 0 : index
    %44 = vector.load %arg5[%c0_16, %c0_17, %c0_18] : memref<1x2x32xf32, #tpu.memory_space<vmem>>, vector<1x2x32xf32>
    %45 = vector.shape_cast %44 : vector<1x2x32xf32> to vector<2x32xf32>
    %46 = vector.shape_cast %43 : vector<2x32xf32> to vector<1x2x32xf32>
    tpu.vector_store %arg5[%c0_16, %c0_17, %c0_18], %46 {strides = array<i32>} : memref<1x2x32xf32, #tpu.memory_space<vmem>>, vector<1x2x32xf32>,
    %47 = vector.shape_cast %9 : vector<2x1xi1> to vector<2x1xi1>
    %48 = vector.broadcast %47 : vector<2x1xi1> to vector<2x32xi1>
    %49 = arith.select %48, %39, %10 : vector<2x32xi1>, vector<2x32xf32>
    %c0_19 = arith.constant 0 : index
    %c0_20 = arith.constant 0 : index
    %50 = vector.load %arg7[%c0_19, %c0_20] : memref<2x32xf32, #tpu.memory_space<vmem>>, vector<2x32xf32>
    tpu.vector_store %arg7[%c0_19, %c0_20], %49 {strides = array<i32>} : memref<2x32xf32, #tpu.memory_space<vmem>>, vector<2x32xf32>,
    %51 = vector.shape_cast %9 : vector<2x1xi1> to vector<2x1xi1>
    %52 = vector.broadcast %51 : vector<2x1xi1> to vector<2x32xi1>
    %53 = arith.select %52, %37, %11 : vector<2x32xi1>, vector<2x32xf32>
    %c0_21 = arith.constant 0 : index
    %c0_22 = arith.constant 0 : index
    %54 = vector.load %arg8[%c0_21, %c0_22] : memref<2x32xf32, #tpu.memory_space<vmem>>, vector<2x32xf32>
    tpu.vector_store %arg8[%c0_21, %c0_22], %53 {strides = array<i32>} : memref<2x32xf32, #tpu.memory_space<vmem>>, vector<2x32xf32>,
    %c0_23 = arith.constant 0 : index
    %c0_24 = arith.constant 0 : index
    %c0_25 = arith.constant 0 : index
    %55 = vector.load %arg3[%c0_23, %c0_24, %c0_25] : memref<1x2x512xf32, #tpu.memory_space<vmem>>, vector<1x2x512xf32>
    %56 = vector.shape_cast %55 : vector<1x2x512xf32> to vector<2x512xf32>
    %c1 = arith.constant 1 : index
    %c0_26 = arith.constant 0 : index
    %c0_27 = arith.constant 0 : index
    %57 = vector.load %arg4[%c1, %c0_26, %c0_27] : memref<2x32x512xbf16, #tpu.memory_space<vmem>>, vector<1x32x512xbf16>
    %58 = vector.shape_cast %57 : vector<1x32x512xbf16> to vector<32x512xbf16>
    %c8_i32 = arith.constant 8 : i32
    %59 = arith.subi %c8_i32, %arg0 : i32
    %60 = vector.broadcast %59 : i32 to vector<2x1xi32>
    %61 = arith.cmpi slt, %60, %3 : vector<2x1xi32>
    %c0_28 = arith.constant 0 : index
    %c0_29 = arith.constant 0 : index
    %62 = vector.load %arg9[%c0_28, %c0_29] : memref<2x32xf32, #tpu.memory_space<vmem>>, vector<2x32xf32>
    %c0_30 = arith.constant 0 : index
    %c0_31 = arith.constant 0 : index
    %63 = vector.load %arg10[%c0_30, %c0_31] : memref<2x32xf32, #tpu.memory_space<vmem>>, vector<2x32xf32>
    %64 = arith.truncf %62 : vector<2x32xf32> to vector<2x32xbf16>
    %cst_32 = arith.constant dense<0.000000e+00> : vector<2x512xf32>
    %65 = tpu.matmul %64, %58, %cst_32 {dimension_numbers = #tpu.dot_dimension_numbers<[1], [0], [0], [1], [0, 0, 1, 1], [], []>} : vector<2x32xbf16>, vector<32x512xbf16>, vector<2x512xf32> -> vector<2x512xf32>
    %66 = arith.addf %56, %65 : vector<2x512xf32>
    %67 = vector.extract_strided_slice %66 {offsets = [0, 0], sizes = [2, 32], strides = [1, 1]} : vector<2x512xf32> to vector<2x32xf32>
    %68 = arith.negf %67 : vector<2x32xf32>
    %69 = math.exp %68 : vector<2x32xf32>
    %cst_33 = arith.constant 1.000000e+00 : f32
    %70 = vector.broadcast %cst_33 : f32 to vector<2x32xf32>
    %71 = arith.addf %70, %69 : vector<2x32xf32>
    %72 = arith.divf %70, %71 : vector<2x32xf32>
    %73 = vector.extract_strided_slice %66 {offsets = [0, 128], sizes = [2, 32], strides = [1, 1]} : vector<2x512xf32> to vector<2x32xf32>
    %74 = arith.negf %73 : vector<2x32xf32>
    %75 = math.exp %74 : vector<2x32xf32>
    %cst_34 = arith.constant 1.000000e+00 : f32
    %76 = vector.broadcast %cst_34 : f32 to vector<2x32xf32>
    %77 = arith.addf %76, %75 : vector<2x32xf32>
    %78 = arith.divf %76, %77 : vector<2x32xf32>
    %79 = vector.extract_strided_slice %66 {offsets = [0, 256], sizes = [2, 32], strides = [1, 1]} : vector<2x512xf32> to vector<2x32xf32>
    %80 = math.tanh %79 : vector<2x32xf32>
    %81 = vector.extract_strided_slice %66 {offsets = [0, 384], sizes = [2, 32], strides = [1, 1]} : vector<2x512xf32> to vector<2x32xf32>
    %82 = arith.negf %81 : vector<2x32xf32>
    %83 = math.exp %82 : vector<2x32xf32>
    %cst_35 = arith.constant 1.000000e+00 : f32
    %84 = vector.broadcast %cst_35 : f32 to vector<2x32xf32>
    %85 = arith.addf %84, %83 : vector<2x32xf32>
    %86 = arith.divf %84, %85 : vector<2x32xf32>
    %87 = arith.mulf %72, %80 : vector<2x32xf32>
    %88 = arith.mulf %78, %63 : vector<2x32xf32>
    %89 = arith.addf %87, %88 : vector<2x32xf32>
    %90 = math.tanh %89 : vector<2x32xf32>
    %91 = arith.mulf %86, %90 : vector<2x32xf32>
    %cst_36 = arith.constant 0.000000e+00 : f32
    %92 = vector.shape_cast %61 : vector<2x1xi1> to vector<2x1xi1>
    %93 = vector.broadcast %92 : vector<2x1xi1> to vector<2x32xi1>
    %94 = vector.broadcast %cst_36 : f32 to vector<2x32xf32>
    %95 = arith.select %93, %91, %94 : vector<2x32xi1>, vector<2x32xf32>
    %c0_37 = arith.constant 0 : index
    %c0_38 = arith.constant 0 : index
    %c0_39 = arith.constant 0 : index
    %96 = vector.load %arg6[%c0_37, %c0_38, %c0_39] : memref<1x2x32xf32, #tpu.memory_space<vmem>>, vector<1x2x32xf32>
    %97 = vector.shape_cast %96 : vector<1x2x32xf32> to vector<2x32xf32>
    %98 = vector.shape_cast %95 : vector<2x32xf32> to vector<1x2x32xf32>
    tpu.vector_store %arg6[%c0_37, %c0_38, %c0_39], %98 {strides = array<i32>} : memref<1x2x32xf32, #tpu.memory_space<vmem>>, vector<1x2x32xf32>,
    %99 = vector.shape_cast %61 : vector<2x1xi1> to vector<2x1xi1>
    %100 = vector.broadcast %99 : vector<2x1xi1> to vector<2x32xi1>
    %101 = arith.select %100, %91, %62 : vector<2x32xi1>, vector<2x32xf32>
    %c0_40 = arith.constant 0 : index
    %c0_41 = arith.constant 0 : index
    %102 = vector.load %arg9[%c0_40, %c0_41] : memref<2x32xf32, #tpu.memory_space<vmem>>, vector<2x32xf32>
    tpu.vector_store %arg9[%c0_40, %c0_41], %101 {strides = array<i32>} : memref<2x32xf32, #tpu.memory_space<vmem>>, vector<2x32xf32>,
    %103 = vector.shape_cast %61 : vector<2x1xi1> to vector<2x1xi1>
    %104 = vector.broadcast %103 : vector<2x1xi1> to vector<2x32xi1>
    %105 = arith.select %104, %89, %63 : vector<2x32xi1>, vector<2x32xf32>
    %c0_42 = arith.constant 0 : index
    %c0_43 = arith.constant 0 : index
    %106 = vector.load %arg10[%c0_42, %c0_43] : memref<2x32xf32, #tpu.memory_space<vmem>>, vector<2x32xf32>
    tpu.vector_store %arg10[%c0_42, %c0_43], %105 {strides = array<i32>} : memref<2x32xf32, #tpu.memory_space<vmem>>, vector<2x32xf32>,
    return
  }
  func.func @transform_0(%arg0: i32) -> (i32, i32) {
    %c0_i32 = arith.constant 0 : i32
    %c0_i32_0 = arith.constant 0 : i32
    %c0_i32_1 = arith.constant 0 : i32
    return %c0_i32, %c0_i32_0 : i32, i32
  }
  func.func @transform_1(%arg0: i32) -> (i32, i32, i32) {
    %c0_i32 = arith.constant 0 : i32
    %c0_i32_0 = arith.constant 0 : i32
    %c0_i32_1 = arith.constant 0 : i32
    return %arg0, %c0_i32, %c0_i32_0 : i32, i32, i32
  }
  func.func @transform_2(%arg0: i32) -> (i32, i32, i32) {
    %c8_i32 = arith.constant 8 : i32
    %0 = arith.subi %c8_i32, %arg0 : i32
    %c0_i32 = arith.constant 0 : i32
    %c0_i32_0 = arith.constant 0 : i32
    %c0_i32_1 = arith.constant 0 : i32
    return %0, %c0_i32, %c0_i32_0 : i32, i32, i32
  }
  func.func @transform_3(%arg0: i32) -> (i32, i32, i32) {
    %c0_i32 = arith.constant 0 : i32
    %c0_i32_0 = arith.constant 0 : i32
    %c0_i32_1 = arith.constant 0 : i32
    %c0_i32_2 = arith.constant 0 : i32
    return %c0_i32, %c0_i32_0, %c0_i32_1 : i32, i32, i32
  }
  func.func @transform_4(%arg0: i32) -> (i32, i32, i32) {
    %c0_i32 = arith.constant 0 : i32
    %c0_i32_0 = arith.constant 0 : i32
    %c0_i32_1 = arith.constant 0 : i32
    return %arg0, %c0_i32, %c0_i32_0 : i32, i32, i32
  }
  func.func @transform_5(%arg0: i32) -> (i32, i32, i32) {
    %c8_i32 = arith.constant 8 : i32
    %0 = arith.subi %c8_i32, %arg0 : i32
    %c0_i32 = arith.constant 0 : i32
    %c0_i32_0 = arith.constant 0 : i32
    %c0_i32_1 = arith.constant 0 : i32
    return %0, %c0_i32, %c0_i32_0 : i32, i32, i32
  }
}

module attributes {stable_mosaic.version = 11 : i64} {
  func.func @_linear_kernel(%arg0: i32, %arg1: memref<24x64xbf16, #tpu.memory_space<vmem>>, %arg2: memref<64x512xbf16, #tpu.memory_space<vmem>>, %arg3: memref<1x512xf32, #tpu.memory_space<vmem>>, %arg4: memref<24x512xf32, #tpu.memory_space<vmem>>) attributes {dimension_semantics = [#tpu.dimension_semantics<parallel>], iteration_bounds = array<i64: 1>, scalar_prefetch = 0 : i64, scratch_operands = 0 : i64, tpu.core_type = #tpu.core_type<tc>, window_params = [{transform_indices = @transform_0, window_bounds = array<i64: 24, 64>}, {pipeline_mode = #tpu.pipeline_mode<synchronous>, transform_indices = @transform_1, window_bounds = array<i64: 64, 512>}, {pipeline_mode = #tpu.pipeline_mode<synchronous>, transform_indices = @transform_2, window_bounds = array<i64: 1, 512>}, {transform_indices = @transform_3, window_bounds = array<i64: 24, 512>}]} {
    %c0 = arith.constant 0 : index
    %c0_0 = arith.constant 0 : index
    %0 = vector.load %arg1[%c0, %c0_0] : memref<24x64xbf16, #tpu.memory_space<vmem>>, vector<24x64xbf16>
    %c0_1 = arith.constant 0 : index
    %c0_2 = arith.constant 0 : index
    %1 = vector.load %arg2[%c0_1, %c0_2] : memref<64x512xbf16, #tpu.memory_space<vmem>>, vector<64x512xbf16>
    %cst = arith.constant dense<0.000000e+00> : vector<24x512xf32>
    %2 = tpu.matmul %0, %1, %cst {dimension_numbers = #tpu.dot_dimension_numbers<[1], [0], [0], [1], [0, 0, 1, 1], [], []>} : vector<24x64xbf16>, vector<64x512xbf16>, vector<24x512xf32> -> vector<24x512xf32>
    %c0_3 = arith.constant 0 : index
    %c0_4 = arith.constant 0 : index
    %3 = vector.load %arg3[%c0_3, %c0_4] : memref<1x512xf32, #tpu.memory_space<vmem>>, vector<1x512xf32>
    %4 = vector.broadcast %3 : vector<1x512xf32> to vector<24x512xf32>
    %5 = arith.addf %2, %4 : vector<24x512xf32>
    %c0_5 = arith.constant 0 : index
    %c0_6 = arith.constant 0 : index
    %6 = vector.load %arg4[%c0_5, %c0_6] : memref<24x512xf32, #tpu.memory_space<vmem>>, vector<24x512xf32>
    tpu.vector_store %arg4[%c0_5, %c0_6], %5 {strides = array<i32>} : memref<24x512xf32, #tpu.memory_space<vmem>>, vector<24x512xf32>,
    return
  }
  func.func @transform_0(%arg0: i32) -> (i32, i32) {
    %c0_i32 = arith.constant 0 : i32
    %c0_i32_0 = arith.constant 0 : i32
    return %arg0, %c0_i32 : i32, i32
  }
  func.func @transform_1(%arg0: i32) -> (i32, i32) {
    %c0_i32 = arith.constant 0 : i32
    %c0_i32_0 = arith.constant 0 : i32
    %c0_i32_1 = arith.constant 0 : i32
    return %c0_i32, %c0_i32_0 : i32, i32
  }
  func.func @transform_2(%arg0: i32) -> (i32, i32) {
    %c0_i32 = arith.constant 0 : i32
    %c0_i32_0 = arith.constant 0 : i32
    %c0_i32_1 = arith.constant 0 : i32
    return %c0_i32, %c0_i32_0 : i32, i32
  }
  func.func @transform_3(%arg0: i32) -> (i32, i32) {
    %c0_i32 = arith.constant 0 : i32
    %c0_i32_0 = arith.constant 0 : i32
    return %arg0, %c0_i32 : i32, i32
  }
}

module attributes {stable_mosaic.version = 11 : i64} {
  func.func @_linear_kernel(%arg0: i32, %arg1: memref<24x64xbf16, #tpu.memory_space<vmem>>, %arg2: memref<64x512xbf16, #tpu.memory_space<vmem>>, %arg3: memref<1x512xf32, #tpu.memory_space<vmem>>, %arg4: memref<24x512xf32, #tpu.memory_space<vmem>>) attributes {dimension_semantics = [#tpu.dimension_semantics<parallel>], iteration_bounds = array<i64: 1>, scalar_prefetch = 0 : i64, scratch_operands = 0 : i64, tpu.core_type = #tpu.core_type<tc>, window_params = [{transform_indices = @transform_0, window_bounds = array<i64: 24, 64>}, {pipeline_mode = #tpu.pipeline_mode<synchronous>, transform_indices = @transform_1, window_bounds = array<i64: 64, 512>}, {pipeline_mode = #tpu.pipeline_mode<synchronous>, transform_indices = @transform_2, window_bounds = array<i64: 1, 512>}, {transform_indices = @transform_3, window_bounds = array<i64: 24, 512>}]} {
    %c0 = arith.constant 0 : index
    %c0_0 = arith.constant 0 : index
    %0 = vector.load %arg1[%c0, %c0_0] : memref<24x64xbf16, #tpu.memory_space<vmem>>, vector<24x64xbf16>
    %c0_1 = arith.constant 0 : index
    %c0_2 = arith.constant 0 : index
    %1 = vector.load %arg2[%c0_1, %c0_2] : memref<64x512xbf16, #tpu.memory_space<vmem>>, vector<64x512xbf16>
    %cst = arith.constant dense<0.000000e+00> : vector<24x512xf32>
    %2 = tpu.matmul %0, %1, %cst {dimension_numbers = #tpu.dot_dimension_numbers<[1], [0], [0], [1], [0, 0, 1, 1], [], []>} : vector<24x64xbf16>, vector<64x512xbf16>, vector<24x512xf32> -> vector<24x512xf32>
    %c0_3 = arith.constant 0 : index
    %c0_4 = arith.constant 0 : index
    %3 = vector.load %arg3[%c0_3, %c0_4] : memref<1x512xf32, #tpu.memory_space<vmem>>, vector<1x512xf32>
    %4 = vector.broadcast %3 : vector<1x512xf32> to vector<24x512xf32>
    %5 = arith.addf %2, %4 : vector<24x512xf32>
    %cst_5 = arith.constant 0.000000e+00 : f32
    %6 = vector.broadcast %cst_5 : f32 to vector<24x512xf32>
    %7 = arith.cmpf oge, %5, %6 : vector<24x512xf32>
    %cst_6 = arith.constant 1.000000e-01 : f32
    %8 = vector.broadcast %cst_6 : f32 to vector<24x512xf32>
    %9 = arith.mulf %8, %5 : vector<24x512xf32>
    %10 = arith.select %7, %5, %9 : vector<24x512xi1>, vector<24x512xf32>
    %c0_7 = arith.constant 0 : index
    %c0_8 = arith.constant 0 : index
    %11 = vector.load %arg4[%c0_7, %c0_8] : memref<24x512xf32, #tpu.memory_space<vmem>>, vector<24x512xf32>
    tpu.vector_store %arg4[%c0_7, %c0_8], %10 {strides = array<i32>} : memref<24x512xf32, #tpu.memory_space<vmem>>, vector<24x512xf32>,
    return
  }
  func.func @transform_0(%arg0: i32) -> (i32, i32) {
    %c0_i32 = arith.constant 0 : i32
    %c0_i32_0 = arith.constant 0 : i32
    return %arg0, %c0_i32 : i32, i32
  }
  func.func @transform_1(%arg0: i32) -> (i32, i32) {
    %c0_i32 = arith.constant 0 : i32
    %c0_i32_0 = arith.constant 0 : i32
    %c0_i32_1 = arith.constant 0 : i32
    return %c0_i32, %c0_i32_0 : i32, i32
  }
  func.func @transform_2(%arg0: i32) -> (i32, i32) {
    %c0_i32 = arith.constant 0 : i32
    %c0_i32_0 = arith.constant 0 : i32
    %c0_i32_1 = arith.constant 0 : i32
    return %c0_i32, %c0_i32_0 : i32, i32
  }
  func.func @transform_3(%arg0: i32) -> (i32, i32) {
    %c0_i32 = arith.constant 0 : i32
    %c0_i32_0 = arith.constant 0 : i32
    return %arg0, %c0_i32 : i32, i32
  }
}

module attributes {stable_mosaic.version = 11 : i64} {
  func.func @_biaffine_scores_kernel(%arg0: i32, %arg1: memref<1x128x512xbf16, #tpu.memory_space<vmem>>, %arg2: memref<128x128xbf16, #tpu.memory_space<vmem>>, %arg3: memref<128x1024xbf16, #tpu.memory_space<vmem>>, %arg4: memref<1x128x128xf32, #tpu.memory_space<vmem>>, %arg5: memref<1x8x128x128xf32, #tpu.memory_space<vmem>>) attributes {dimension_semantics = [#tpu.dimension_semantics<parallel>], iteration_bounds = array<i64: 2>, scalar_prefetch = 0 : i64, scratch_operands = 0 : i64, tpu.core_type = #tpu.core_type<tc>, window_params = [{transform_indices = @transform_0, window_bounds = array<i64: 1, 128, 512>}, {pipeline_mode = #tpu.pipeline_mode<synchronous>, transform_indices = @transform_1, window_bounds = array<i64: 128, 128>}, {pipeline_mode = #tpu.pipeline_mode<synchronous>, transform_indices = @transform_2, window_bounds = array<i64: 128, 1024>}, {transform_indices = @transform_3, window_bounds = array<i64: 1, 128, 128>}, {transform_indices = @transform_4, window_bounds = array<i64: 1, 8, 128, 128>}]} {
    %c0 = arith.constant 0 : index
    %c0_0 = arith.constant 0 : index
    %c0_1 = arith.constant 0 : index
    %0 = vector.load %arg1[%c0, %c0_0, %c0_1] : memref<1x128x512xbf16, #tpu.memory_space<vmem>>, vector<1x128x512xbf16>
    %1 = vector.shape_cast %0 : vector<1x128x512xbf16> to vector<128x512xbf16>
    %2 = vector.extract_strided_slice %1 {offsets = [0, 0], sizes = [128, 128], strides = [1, 1]} : vector<128x512xbf16> to vector<128x128xbf16>
    %3 = vector.extract_strided_slice %1 {offsets = [0, 128], sizes = [128, 128], strides = [1, 1]} : vector<128x512xbf16> to vector<128x128xbf16>
    %4 = vector.extract_strided_slice %1 {offsets = [0, 256], sizes = [128, 128], strides = [1, 1]} : vector<128x512xbf16> to vector<128x128xbf16>
    %5 = vector.extract_strided_slice %1 {offsets = [0, 384], sizes = [128, 128], strides = [1, 1]} : vector<128x512xbf16> to vector<128x128xbf16>
    %c0_2 = arith.constant 0 : index
    %c0_3 = arith.constant 0 : index
    %6 = vector.load %arg2[%c0_2, %c0_3] : memref<128x128xbf16, #tpu.memory_space<vmem>>, vector<128x128xbf16>
    %cst = arith.constant dense<0.000000e+00> : vector<128x128xf32>
    %7 = tpu.matmul %2, %6, %cst {dimension_numbers = #tpu.dot_dimension_numbers<[1], [0], [0], [1], [0, 0, 1, 1], [], []>} : vector<128x128xbf16>, vector<128x128xbf16>, vector<128x128xf32> -> vector<128x128xf32>
    %8 = arith.truncf %7 : vector<128x128xf32> to vector<128x128xbf16>
    %cst_4 = arith.constant dense<0.000000e+00> : vector<128x128xf32>
    %9 = tpu.matmul %3, %8, %cst_4 {dimension_numbers = #tpu.dot_dimension_numbers<[1], [1], [0], [0], [0, 0, 1, 0], [], []>} : vector<128x128xbf16>, vector<128x128xbf16>, vector<128x128xf32> -> vector<128x128xf32>
    %c0_5 = arith.constant 0 : index
    %c0_6 = arith.constant 0 : index
    %c0_7 = arith.constant 0 : index
    %10 = vector.load %arg4[%c0_5, %c0_6, %c0_7] : memref<1x128x128xf32, #tpu.memory_space<vmem>>, vector<1x128x128xf32>
    %11 = vector.shape_cast %10 : vector<1x128x128xf32> to vector<128x128xf32>
    %12 = vector.shape_cast %9 : vector<128x128xf32> to vector<1x128x128xf32>
    tpu.vector_store %arg4[%c0_5, %c0_6, %c0_7], %12 {strides = array<i32>} : memref<1x128x128xf32, #tpu.memory_space<vmem>>, vector<1x128x128xf32>,
    %c0_8 = arith.constant 0 : index
    %c0_9 = arith.constant 0 : index
    %13 = vector.load %arg3[%c0_8, %c0_9] : memref<128x1024xbf16, #tpu.memory_space<vmem>>, vector<128x1024xbf16>
    %cst_10 = arith.constant dense<0.000000e+00> : vector<128x1024xf32>
    %14 = tpu.matmul %4, %13, %cst_10 {dimension_numbers = #tpu.dot_dimension_numbers<[1], [0], [0], [1], [0, 0, 1, 1], [], []>} : vector<128x128xbf16>, vector<128x1024xbf16>, vector<128x1024xf32> -> vector<128x1024xf32>
    %15 = arith.truncf %14 : vector<128x1024xf32> to vector<128x1024xbf16>
    %16 = vector.extract_strided_slice %15 {offsets = [0, 0], sizes = [128, 128], strides = [1, 1]} : vector<128x1024xbf16> to vector<128x128xbf16>
    %cst_11 = arith.constant dense<0.000000e+00> : vector<128x128xf32>
    %17 = tpu.matmul %5, %16, %cst_11 {dimension_numbers = #tpu.dot_dimension_numbers<[1], [1], [0], [0], [0, 0, 1, 0], [], []>} : vector<128x128xbf16>, vector<128x128xbf16>, vector<128x128xf32> -> vector<128x128xf32>
    %c0_12 = arith.constant 0 : index
    %c0_13 = arith.constant 0 : index
    %c0_14 = arith.constant 0 : index
    %c0_15 = arith.constant 0 : index
    %18 = vector.load %arg5[%c0_12, %c0_13, %c0_14, %c0_15] : memref<1x8x128x128xf32, #tpu.memory_space<vmem>>, vector<1x1x128x128xf32>
    %19 = vector.shape_cast %18 : vector<1x1x128x128xf32> to vector<128x128xf32>
    %20 = vector.shape_cast %17 : vector<128x128xf32> to vector<1x1x128x128xf32>
    tpu.vector_store %arg5[%c0_12, %c0_13, %c0_14, %c0_15], %20 {strides = array<i32>} : memref<1x8x128x128xf32, #tpu.memory_space<vmem>>, vector<1x1x128x128xf32>,
    %21 = vector.extract_strided_slice %15 {offsets = [0, 128], sizes = [128, 128], strides = [1, 1]} : vector<128x1024xbf16> to vector<128x128xbf16>
    %cst_16 = arith.constant dense<0.000000e+00> : vector<128x128xf32>
    %22 = tpu.matmul %5, %21, %cst_16 {dimension_numbers = #tpu.dot_dimension_numbers<[1], [1], [0], [0], [0, 0, 1, 0], [], []>} : vector<128x128xbf16>, vector<128x128xbf16>, vector<128x128xf32> -> vector<128x128xf32>
    %c0_17 = arith.constant 0 : index
    %c1 = arith.constant 1 : index
    %c0_18 = arith.constant 0 : index
    %c0_19 = arith.constant 0 : index
    %23 = vector.load %arg5[%c0_17, %c1, %c0_18, %c0_19] : memref<1x8x128x128xf32, #tpu.memory_space<vmem>>, vector<1x1x128x128xf32>
    %24 = vector.shape_cast %23 : vector<1x1x128x128xf32> to vector<128x128xf32>
    %25 = vector.shape_cast %22 : vector<128x128xf32> to vector<1x1x128x128xf32>
    tpu.vector_store %arg5[%c0_17, %c1, %c0_18, %c0_19], %25 {strides = array<i32>} : memref<1x8x128x128xf32, #tpu.memory_space<vmem>>, vector<1x1x128x128xf32>,
    %26 = vector.extract_strided_slice %15 {offsets = [0, 256], sizes = [128, 128], strides = [1, 1]} : vector<128x1024xbf16> to vector<128x128xbf16>
    %cst_20 = arith.constant dense<0.000000e+00> : vector<128x128xf32>
    %27 = tpu.matmul %5, %26, %cst_20 {dimension_numbers = #tpu.dot_dimension_numbers<[1], [1], [0], [0], [0, 0, 1, 0], [], []>} : vector<128x128xbf16>, vector<128x128xbf16>, vector<128x128xf32> -> vector<128x128xf32>
    %c0_21 = arith.constant 0 : index
    %c2 = arith.constant 2 : index
    %c0_22 = arith.constant 0 : index
    %c0_23 = arith.constant 0 : index
    %28 = vector.load %arg5[%c0_21, %c2, %c0_22, %c0_23] : memref<1x8x128x128xf32, #tpu.memory_space<vmem>>, vector<1x1x128x128xf32>
    %29 = vector.shape_cast %28 : vector<1x1x128x128xf32> to vector<128x128xf32>
    %30 = vector.shape_cast %27 : vector<128x128xf32> to vector<1x1x128x128xf32>
    tpu.vector_store %arg5[%c0_21, %c2, %c0_22, %c0_23], %30 {strides = array<i32>} : memref<1x8x128x128xf32, #tpu.memory_space<vmem>>, vector<1x1x128x128xf32>,
    %31 = vector.extract_strided_slice %15 {offsets = [0, 384], sizes = [128, 128], strides = [1, 1]} : vector<128x1024xbf16> to vector<128x128xbf16>
    %cst_24 = arith.constant dense<0.000000e+00> : vector<128x128xf32>
    %32 = tpu.matmul %5, %31, %cst_24 {dimension_numbers = #tpu.dot_dimension_numbers<[1], [1], [0], [0], [0, 0, 1, 0], [], []>} : vector<128x128xbf16>, vector<128x128xbf16>, vector<128x128xf32> -> vector<128x128xf32>
    %c0_25 = arith.constant 0 : index
    %c3 = arith.constant 3 : index
    %c0_26 = arith.constant 0 : index
    %c0_27 = arith.constant 0 : index
    %33 = vector.load %arg5[%c0_25, %c3, %c0_26, %c0_27] : memref<1x8x128x128xf32, #tpu.memory_space<vmem>>, vector<1x1x128x128xf32>
    %34 = vector.shape_cast %33 : vector<1x1x128x128xf32> to vector<128x128xf32>
    %35 = vector.shape_cast %32 : vector<128x128xf32> to vector<1x1x128x128xf32>
    tpu.vector_store %arg5[%c0_25, %c3, %c0_26, %c0_27], %35 {strides = array<i32>} : memref<1x8x128x128xf32, #tpu.memory_space<vmem>>, vector<1x1x128x128xf32>,
    %36 = vector.extract_strided_slice %15 {offsets = [0, 512], sizes = [128, 128], strides = [1, 1]} : vector<128x1024xbf16> to vector<128x128xbf16>
    %cst_28 = arith.constant dense<0.000000e+00> : vector<128x128xf32>
    %37 = tpu.matmul %5, %36, %cst_28 {dimension_numbers = #tpu.dot_dimension_numbers<[1], [1], [0], [0], [0, 0, 1, 0], [], []>} : vector<128x128xbf16>, vector<128x128xbf16>, vector<128x128xf32> -> vector<128x128xf32>
    %c0_29 = arith.constant 0 : index
    %c4 = arith.constant 4 : index
    %c0_30 = arith.constant 0 : index
    %c0_31 = arith.constant 0 : index
    %38 = vector.load %arg5[%c0_29, %c4, %c0_30, %c0_31] : memref<1x8x128x128xf32, #tpu.memory_space<vmem>>, vector<1x1x128x128xf32>
    %39 = vector.shape_cast %38 : vector<1x1x128x128xf32> to vector<128x128xf32>
    %40 = vector.shape_cast %37 : vector<128x128xf32> to vector<1x1x128x128xf32>
    tpu.vector_store %arg5[%c0_29, %c4, %c0_30, %c0_31], %40 {strides = array<i32>} : memref<1x8x128x128xf32, #tpu.memory_space<vmem>>, vector<1x1x128x128xf32>,
    %41 = vector.extract_strided_slice %15 {offsets = [0, 640], sizes = [128, 128], strides = [1, 1]} : vector<128x1024xbf16> to vector<128x128xbf16>
    %cst_32 = arith.constant dense<0.000000e+00> : vector<128x128xf32>
    %42 = tpu.matmul %5, %41, %cst_32 {dimension_numbers = #tpu.dot_dimension_numbers<[1], [1], [0], [0], [0, 0, 1, 0], [], []>} : vector<128x128xbf16>, vector<128x128xbf16>, vector<128x128xf32> -> vector<128x128xf32>
    %c0_33 = arith.constant 0 : index
    %c5 = arith.constant 5 : index
    %c0_34 = arith.constant 0 : index
    %c0_35 = arith.constant 0 : index
    %43 = vector.load %arg5[%c0_33, %c5, %c0_34, %c0_35] : memref<1x8x128x128xf32, #tpu.memory_space<vmem>>, vector<1x1x128x128xf32>
    %44 = vector.shape_cast %43 : vector<1x1x128x128xf32> to vector<128x128xf32>
    %45 = vector.shape_cast %42 : vector<128x128xf32> to vector<1x1x128x128xf32>
    tpu.vector_store %arg5[%c0_33, %c5, %c0_34, %c0_35], %45 {strides = array<i32>} : memref<1x8x128x128xf32, #tpu.memory_space<vmem>>, vector<1x1x128x128xf32>,
    %46 = vector.extract_strided_slice %15 {offsets = [0, 768], sizes = [128, 128], strides = [1, 1]} : vector<128x1024xbf16> to vector<128x128xbf16>
    %cst_36 = arith.constant dense<0.000000e+00> : vector<128x128xf32>
    %47 = tpu.matmul %5, %46, %cst_36 {dimension_numbers = #tpu.dot_dimension_numbers<[1], [1], [0], [0], [0, 0, 1, 0], [], []>} : vector<128x128xbf16>, vector<128x128xbf16>, vector<128x128xf32> -> vector<128x128xf32>
    %c0_37 = arith.constant 0 : index
    %c6 = arith.constant 6 : index
    %c0_38 = arith.constant 0 : index
    %c0_39 = arith.constant 0 : index
    %48 = vector.load %arg5[%c0_37, %c6, %c0_38, %c0_39] : memref<1x8x128x128xf32, #tpu.memory_space<vmem>>, vector<1x1x128x128xf32>
    %49 = vector.shape_cast %48 : vector<1x1x128x128xf32> to vector<128x128xf32>
    %50 = vector.shape_cast %47 : vector<128x128xf32> to vector<1x1x128x128xf32>
    tpu.vector_store %arg5[%c0_37, %c6, %c0_38, %c0_39], %50 {strides = array<i32>} : memref<1x8x128x128xf32, #tpu.memory_space<vmem>>, vector<1x1x128x128xf32>,
    %51 = vector.extract_strided_slice %15 {offsets = [0, 896], sizes = [128, 128], strides = [1, 1]} : vector<128x1024xbf16> to vector<128x128xbf16>
    %cst_40 = arith.constant dense<0.000000e+00> : vector<128x128xf32>
    %52 = tpu.matmul %5, %51, %cst_40 {dimension_numbers = #tpu.dot_dimension_numbers<[1], [1], [0], [0], [0, 0, 1, 0], [], []>} : vector<128x128xbf16>, vector<128x128xbf16>, vector<128x128xf32> -> vector<128x128xf32>
    %c0_41 = arith.constant 0 : index
    %c7 = arith.constant 7 : index
    %c0_42 = arith.constant 0 : index
    %c0_43 = arith.constant 0 : index
    %53 = vector.load %arg5[%c0_41, %c7, %c0_42, %c0_43] : memref<1x8x128x128xf32, #tpu.memory_space<vmem>>, vector<1x1x128x128xf32>
    %54 = vector.shape_cast %53 : vector<1x1x128x128xf32> to vector<128x128xf32>
    %55 = vector.shape_cast %52 : vector<128x128xf32> to vector<1x1x128x128xf32>
    tpu.vector_store %arg5[%c0_41, %c7, %c0_42, %c0_43], %55 {strides = array<i32>} : memref<1x8x128x128xf32, #tpu.memory_space<vmem>>, vector<1x1x128x128xf32>,
    return
  }
  func.func @transform_0(%arg0: i32) -> (i32, i32, i32) {
    %c0_i32 = arith.constant 0 : i32
    %c0_i32_0 = arith.constant 0 : i32
    %c0_i32_1 = arith.constant 0 : i32
    return %arg0, %c0_i32, %c0_i32_0 : i32, i32, i32
  }
  func.func @transform_1(%arg0: i32) -> (i32, i32) {
    %c0_i32 = arith.constant 0 : i32
    %c0_i32_0 = arith.constant 0 : i32
    %c0_i32_1 = arith.constant 0 : i32
    return %c0_i32, %c0_i32_0 : i32, i32
  }
  func.func @transform_2(%arg0: i32) -> (i32, i32) {
    %c0_i32 = arith.constant 0 : i32
    %c0_i32_0 = arith.constant 0 : i32
    %c0_i32_1 = arith.constant 0 : i32
    return %c0_i32, %c0_i32_0 : i32, i32
  }
  func.func @transform_3(%arg0: i32) -> (i32, i32, i32) {
    %c0_i32 = arith.constant 0 : i32
    %c0_i32_0 = arith.constant 0 : i32
    %c0_i32_1 = arith.constant 0 : i32
    return %arg0, %c0_i32, %c0_i32_0 : i32, i32, i32
  }
  func.func @transform_4(%arg0: i32) -> (i32, i32, i32, i32) {
    %c0_i32 = arith.constant 0 : i32
    %c0_i32_0 = arith.constant 0 : i32
    %c0_i32_1 = arith.constant 0 : i32
    %c0_i32_2 = arith.constant 0 : i32
    return %arg0, %c0_i32, %c0_i32_0, %c0_i32_1 : i32, i32, i32, i32
  }
}

</mosaic_0001>

<llo_original>
// kernel: rnn_forward.13
$region0: #{rnn_forward.13}
  #allocation0 [shape = 'u32[]', space=smem, size = 0x4, offset = 0x4, fixed_abs, tag = 'smem constant byte address 0x4 - core index']
  #allocation1 [shape = 'u32[72,128]{1,0:T(1,128)}', space=vmem, size = 0x9000, scoped, tag = 'internal scratch']
  %s0 = inlined_call_operand.vmem [shape: bf16[16,16], index: 0, kind: input, shape index: {}]
  %s1 = inlined_call_operand.vmem [shape: bf16[16,32], index: 1, kind: input, shape index: {}]
  %s2 = inlined_call_operand.vmem [shape: f32[1,32], index: 2, kind: input, shape index: {}]
  %s3 = inlined_call_operand.vmem [shape: f32[16,32], index: 3, kind: output, shape index: {}]
  %s4 = sld [smem:[#allocation0]]
  $region22: #{rnn_forward.13} parent=0
    _
  %s6 = ssub.s32 1, %s4
  %s7 = scalar_select 0, %s6, %s4
  // Predicated region
  $region2: #{rnn_forward.13} parent=0 // pred_check
    _
  $region3: #{rnn_forward.13} parent=0 // pred_check_branch
    %9 = sbr.rel (0) target = $region5
  $region4: #{rnn_forward.13} parent=0 // pred_region
    _
  $region5: #{rnn_forward.13} parent=0 // pred_fallthru
    _
  // Predicated region
  $region6: #{rnn_forward.13} parent=0 // pred_check
    _
  $region7: #{rnn_forward.13} parent=0 // pred_check_branch
    %11 = sbr.rel (0) target = $region9
  $region8: #{rnn_forward.13} parent=0 // pred_region
    _
  $region9: #{rnn_forward.13} parent=0 // pred_fallthru
    _
  // Predicated region
  $region10: #{rnn_forward.13} parent=0 // pred_check
    _
  $region11: #{rnn_forward.13} parent=0 // pred_check_branch
    %13 = sbr.rel (0) target = $region13
  $region12: #{rnn_forward.13} parent=0 // pred_region
    _
  $region13: #{rnn_forward.13} parent=0 // pred_fallthru
    _
  %v15 = vld [vmem:[%s0] sm:$0xf]
  %v16 = vld [vmem:[%s0 + $0x4] sm:$0xf]
  %v17 = vld [vmem:[%s1] sm:$0xf]
  %v18 = vld [vmem:[%s1 + $0x4] sm:$0xf]
  %v19 = vld [vmem:[%s2] sm:$0x1]
  %v21 = vperm.slane %v19, 0
  %v25 = vunpack.c.l.b16 %v15
  %v26 = vunpack.c.l.b16 %v16
  %v27 = vpack.c.b16 %v26, %v25
  %v30 = vunpack.c.l.b16 %v17
  %v31 = vunpack.c.l.b16 %v18
  %v32 = vpack.c.b16 %v31, %v30
  %vm34 = vcmask 130048
  %v36 = vsel %vm34, %v27, 0
  %38 = vmatpush.bf16.msra.mxu0 0
  %39 = vmatpush.bf16.msra.mxu0 0
  %40 = vmatpush.bf16.msra.mxu0 0
  %41 = vmatpush.bf16.msra.mxu0 0
  %42 = vmatpush.bf16.msra.mxu0 0
  %43 = vmatpush.bf16.msra.mxu0 0
  %44 = vmatpush.bf16.msra.mxu0 0
  %45 = vmatpush.bf16.msra.mxu0 %v32
  %46 = vmatmul.bf16.gmra.mxu0 %v36
  %v47 = vpop.f32.mrf.mxu0
  %v48 = vadd.f32 %v21, %v47
  %v49 = vpop.f32.mrf.mxu0
  %v50 = vadd.f32 %v21, %v49
  %51 = vdwg.mxu0
  %vm52 = vcmask 261120
  %53 = vst.msk [vmem:[%s3] sm:$0xff] %vm52, %v48
  %54 = vst.msk [vmem:[%s3 + $0x8] sm:$0xff] %vm52, %v50
  // Predicated region
  $region14: #{rnn_forward.13} parent=0 // pred_check
    _
  $region15: #{rnn_forward.13} parent=0 // pred_check_branch
    %56 = sbr.rel (0) target = $region17
  $region16: #{rnn_forward.13} parent=0 // pred_region
    _
  $region17: #{rnn_forward.13} parent=0 // pred_fallthru
    _
  // Predicated region
  $region18: #{rnn_forward.13} parent=0 // pred_check
    _
  $region19: #{rnn_forward.13} parent=0 // pred_check_branch
    %58 = sbr.rel (0) target = $region21
  $region20: #{rnn_forward.13} parent=0 // pred_region
    _
  $region21: #{rnn_forward.13} parent=0 // pred_fallthru
    _

// kernel: rnn_forward.12
$region0: #{rnn_forward.12}
  #allocation0 [shape = 'u32[]', space=smem, size = 0x4, offset = 0x4, fixed_abs, tag = 'smem constant byte address 0x4 - core index']
  #allocation1 [shape = 'u32[72,128]{1,0:T(1,128)}', space=vmem, size = 0x9000, scoped, tag = 'internal scratch']
  #allocation2 [shape = 'f32[16,16]{1,0:T(8,128)}', space=vmem, size = 0x2000, scoped, tag = 'scratch operand']
  #allocation3 [shape = 'f32[16,16]{1,0:T(8,128)}', space=vmem, size = 0x2000, scoped, tag = 'scratch operand']
  %s0 = inlined_call_operand.vmem [shape: s32[16,1], index: 0, kind: input, shape index: {}]
  %s1 = inlined_call_operand.vmem [shape: f32[6,16,512], index: 1, kind: input, shape index: {}]
  %s2 = inlined_call_operand.vmem [shape: bf16[16,512], index: 2, kind: input, shape index: {}]
  %s3 = inlined_call_operand.vmem [shape: f32[16,16], index: 3, kind: output, shape index: {}]
  %s4 = sld [smem:[#allocation0]]
  $region53: #{rnn_forward.12} parent=0
    _
  %s6 = ssub.s32 1, %s4
  %s7 = scalar_select 0, %s6, %s4
  loop: start=0, step=1, limit=8
  $region2: #{rnn_forward.12} parent=0 // loop_pre_header
    _
  $region3: #{rnn_forward.12} parent=0 // loop_header
    %s9 = sphi 0, %s13
    %p10 = scmp.ge.s32.totalorder %s9, 8
    %s17 = sphi 0, %s17
    %s19 = sphi 0, %s17
    %s20 = sphi 0, %s19
    %s34 = sphi 0, %s20
    %s40 = sphi 0, %s42
    %s43 = sphi 0, %s40
    %s44 = sphi 0, %s43
    %s60 = sphi 0, %s44
    %s64 = sphi 0, %s64
    %s66 = sphi 0, %s64
    %s67 = sphi 0, %s66
    %s81 = sphi 0, %s67
    %s85 = sphi 0, %s85
    %s87 = sphi 0, %s85
    %s88 = sphi 0, %s87
    %s102 = sphi 0, %s88
  $region4: #{rnn_forward.12} parent=0 // loop_header_branch
    %12 = sbr.rel (%p10) target = $region8
  $region5: #{rnn_forward.12} parent=0 // loop_body
    %s14 = ssub.s32 %s9, 1
    %s15 = ssub.s32 %s9, 2
    %s16 = sadd.s32 %s9, 1
    %s18 = sadd.s32 %s17, 1
    %p21 = scmp.eq.s32.totalorder %s9, 5
    %p22 = scmp.ne.s32.totalorder %s17, %s19
    %p23 = scmp.eq.s32.totalorder %s9, 0
    %p24 = por %p22, %p23
    %p25 = scmp.ne.s32.totalorder %s17, %s19
    %p26 = scmp.eq.s32.totalorder %s14, 5
    %p27 = por %p25, %p26
    %p28 = scmp.ne.s32.totalorder %s19, %s20
    %p29 = scmp.eq.s32.totalorder %s14, 0
    %p30 = por %p28, %p29
    %p31 = scmp.ne.s32.totalorder %s19, %s20
    %p32 = scmp.eq.s32.totalorder %s15, 5
    %p33 = por %p31, %p32
    %p35 = scmp.ne.s32.totalorder %s20, %s34
    %p36 = scmp.eq.s32.totalorder %s15, 0
    %p37 = por %p35, %p36
    %s38 = ssub.s32 %s9, %s16
    %p39 = scmp.eq.s32.totalorder %s38, 0
    %s41 = sadd.s32 %s40, 1
    %s42 = scalar_select %p39, %s40, %s41
    %p45 = pneg %p39
    %p46 = scmp.eq.s32.totalorder %s9, 5
    %p47 = por %p45, %p46
    %p48 = scmp.ne.s32.totalorder %s40, %s43
    %p49 = scmp.eq.s32.totalorder %s9, 0
    %p50 = por %p48, %p49
    %p51 = scmp.ne.s32.totalorder %s40, %s43
    %p52 = scmp.eq.s32.totalorder %s14, 5
    %p53 = por %p51, %p52
    %p54 = scmp.ne.s32.totalorder %s43, %s44
    %p55 = scmp.eq.s32.totalorder %s14, 0
    %p56 = por %p54, %p55
    %p57 = scmp.ne.s32.totalorder %s43, %s44
    %p58 = scmp.eq.s32.totalorder %s15, 5
    %p59 = por %p57, %p58
    %p61 = scmp.ne.s32.totalorder %s44, %s60
    %p62 = scmp.eq.s32.totalorder %s15, 0
    %p63 = por %p61, %p62
    %s65 = sadd.s32 %s64, 1
    %p68 = scmp.eq.s32.totalorder %s9, 5
    %p69 = scmp.ne.s32.totalorder %s64, %s66
    %p70 = scmp.eq.s32.totalorder %s9, 0
    %p71 = por %p69, %p70
    %p72 = scmp.ne.s32.totalorder %s64, %s66
    %p73 = scmp.eq.s32.totalorder %s14, 5
    %p74 = por %p72, %p73
    %p75 = scmp.ne.s32.totalorder %s66, %s67
    %p76 = scmp.eq.s32.totalorder %s14, 0
    %p77 = por %p75, %p76
    %p78 = scmp.ne.s32.totalorder %s66, %s67
    %p79 = scmp.eq.s32.totalorder %s15, 5
    %p80 = por %p78, %p79
    %p82 = scmp.ne.s32.totalorder %s67, %s81
    %p83 = scmp.eq.s32.totalorder %s15, 0
    %p84 = por %p82, %p83
    %s86 = sadd.s32 %s85, 1
    %p89 = scmp.eq.s32.totalorder %s9, 5
    %p90 = scmp.ne.s32.totalorder %s85, %s87
    %p91 = scmp.eq.s32.totalorder %s9, 0
    %p92 = por %p90, %p91
    %p93 = scmp.ne.s32.totalorder %s85, %s87
    %p94 = scmp.eq.s32.totalorder %s14, 5
    %p95 = por %p93, %p94
    %p96 = scmp.ne.s32.totalorder %s87, %s88
    %p97 = scmp.eq.s32.totalorder %s14, 0
    %p98 = por %p96, %p97
    %p99 = scmp.ne.s32.totalorder %s87, %s88
    %p100 = scmp.eq.s32.totalorder %s15, 5
    %p101 = por %p99, %p100
    %p103 = scmp.ne.s32.totalorder %s88, %s102
    %p104 = scmp.eq.s32.totalorder %s15, 0
    %p105 = por %p103, %p104
    %p106 = scmp.le.s32.totalorder 1, %s9
    %p107 = scmp.lt.s32.totalorder %s9, 7
    %p108 = pnand %p106, %p107
    %p109 = pneg %p108
    // Predicated region
    $region9: #{rnn_forward.12} parent=5 // pred_check
      _
    $region10: #{rnn_forward.12} parent=5 // pred_check_branch
      %111 = sbr.rel (%p108) target = $region12
    $region11: #{rnn_forward.12} parent=5 // pred_region
      %s112 = ssub.s32 %s9, 1
      // Predicated region
      $region13: #{rnn_forward.12} parent=11 // pred_check
        %p113 = pneg %p30
      $region14: #{rnn_forward.12} parent=11 // pred_check_branch
        %115 = sbr.rel (%p113) target = $region16
      $region15: #{rnn_forward.12} parent=11 // pred_region
        _
      $region16: #{rnn_forward.12} parent=11 // pred_fallthru
        _
      // Predicated region
      $region17: #{rnn_forward.12} parent=11 // pred_check
        %p116 = pneg %p77
      $region18: #{rnn_forward.12} parent=11 // pred_check_branch
        %118 = sbr.rel (%p116) target = $region20
      $region19: #{rnn_forward.12} parent=11 // pred_region
        _
      $region20: #{rnn_forward.12} parent=11 // pred_fallthru
        _
    $region12: #{rnn_forward.12} parent=5 // pred_fallthru
      _
    %p119 = scmp.lt.s32.totalorder %s9, 6
    // Predicated region
    $region21: #{rnn_forward.12} parent=5 // pred_check
      %p120 = pneg %p119
    $region22: #{rnn_forward.12} parent=5 // pred_check_branch
      %122 = sbr.rel (%p120) target = $region24
    $region23: #{rnn_forward.12} parent=5 // pred_region
      // Predicated region
      $region25: #{rnn_forward.12} parent=23 // pred_check
        %p123 = pneg %p50
      $region26: #{rnn_forward.12} parent=23 // pred_check_branch
        %125 = sbr.rel (%p123) target = $region28
      $region27: #{rnn_forward.12} parent=23 // pred_region
        %p126 = scmp.lt.s32.totalorder %s9, 5
        %s127 = scalar_select %p126, %s9, 5
        %s128 = smul.addr %s127, 8
        %s129 = smul.addr %s128, 8
        %s130 = scalar_lea.vmem %s1, %s129
      $region28: #{rnn_forward.12} parent=23 // pred_fallthru
        _
    $region24: #{rnn_forward.12} parent=5 // pred_fallthru
      _
    %p131 = scmp.le.s32.totalorder 1, %s9
    %p132 = scmp.lt.s32.totalorder %s9, 7
    %p133 = pnand %p131, %p132
    %p134 = pneg %p133
    // Predicated region
    $region29: #{rnn_forward.12} parent=5 // pred_check
      _
    $region30: #{rnn_forward.12} parent=5 // pred_check_branch
      %136 = sbr.rel (%p133) target = $region32
    $region31: #{rnn_forward.12} parent=5 // pred_region
      %s137 = ssub.s32 %s9, 1
      %p138 = pneg %p30
      %p139 = pneg %p27
      %p140 = scmp.lt.s32.totalorder %s14, 5
      %s141 = scalar_select %p140, %s14, 5
      %s142 = smul.addr %s141, 8
      %s143 = smul.addr %s142, 8
      %s144 = scalar_lea.vmem %s1, %s143
      %p145 = pneg %p56
      %p146 = pneg %p53
      %p147 = pneg %p77
      %p148 = pneg %p74
      %p149 = pneg %p98
      %p150 = pneg %p95
      %p151 = scmp.lt.s32.totalorder %s14, 5
      %s152 = scalar_select %p151, %s14, 5
      %s153 = smul.addr %s152, 8
      %s154 = smul.addr %s153, 8
      %s155 = scalar_lea.vmem %s1, %s154
      %p157 = scmp.eq.s32.totalorder %s14, 0
      // Predicated region
      $region33: #{rnn_forward.12} parent=31 // pred_check
        %p158 = pneg %p157
      $region34: #{rnn_forward.12} parent=31 // pred_check_branch
        %160 = sbr.rel (%p158) target = $region36
      $region35: #{rnn_forward.12} parent=31 // pred_region
        %vm161 = vcmask 130048
        %162 = vst.msk [vmem:[#allocation2] sm:$0xff] %vm161, 0.0
        %163 = vst.msk [vmem:[#allocation2 + $0x8] sm:$0xff] %vm161, 0.0
        %164 = vst.msk [vmem:[#allocation3] sm:$0xff] %vm161, 0.0
        %165 = vst.msk [vmem:[#allocation3 + $0x8] sm:$0xff] %vm161, 0.0
      $region36: #{rnn_forward.12} parent=31 // pred_fallthru
        _
      %v166 = vld [vmem:[#allocation2] sm:$0xff]
      %v167 = vld [vmem:[#allocation2 + $0x8] sm:$0xff]
      %v168 = vld [vmem:[#allocation3] sm:$0xff]
      %v169 = vld [vmem:[#allocation3 + $0x8] sm:$0xff]
      %v170 = vld [vmem:[%s155] sm:$0xff]
      %v171 = vld [vmem:[%s155 + $0x8] sm:$0xff]
      %v172 = vld [vmem:[%s155 + $0x10] sm:$0xff]
      %v173 = vld [vmem:[%s155 + $0x18] sm:$0xff]
      %v174 = vld [vmem:[%s155 + $0x20] sm:$0xff]
      %v175 = vld [vmem:[%s155 + $0x28] sm:$0xff]
      %v176 = vld [vmem:[%s155 + $0x30] sm:$0xff]
      %v177 = vld [vmem:[%s155 + $0x38] sm:$0xff]
      %v178 = vpack.c.bf16 %v167, %v166
      %v179 = vld [vmem:[%s2] sm:$0xff]
      %v180 = vld [vmem:[%s2 + $0x8] sm:$0xff]
      %v181 = vld [vmem:[%s2 + $0x10] sm:$0xff]
      %v182 = vld [vmem:[%s2 + $0x18] sm:$0xff]
      %v187 = vunpack.c.l.b16 %v179
      %v188 = vunpack.c.h.b16 %v179
      %v189 = vunpack.c.l.b16 %v180
      %v190 = vunpack.c.h.b16 %v180
      %v191 = vunpack.c.l.b16 %v181
      %v192 = vunpack.c.h.b16 %v181
      %v193 = vunpack.c.l.b16 %v182
      %v194 = vunpack.c.h.b16 %v182
      %v195 = vpack.c.b16 %v191, %v187
      %v196 = vpack.c.b16 %v192, %v188
      %v197 = vpack.c.b16 %v193, %v189
      %v198 = vpack.c.b16 %v194, %v190
      %vm203 = vcmask 130048
      %v205 = vsel %vm203, %v178, 0
      %207 = vmatpush.bf16.msra.mxu0 0
      %208 = vmatpush.bf16.msra.mxu0 0
      %209 = vmatpush.bf16.msra.mxu0 0
      %210 = vmatpush.bf16.msra.mxu0 0
      %211 = vmatpush.bf16.msra.mxu0 0
      %212 = vmatpush.bf16.msra.mxu0 0
      %213 = vmatpush.bf16.msra.mxu0 0
      %214 = vmatpush.bf16.msra.mxu0 %v195
      %215 = vmatmul.bf16.gmra.mxu0 %v205
      %v216 = vpop.f32.mrf.mxu0
      %v217 = vadd.f32 0.0, %v216
      %v218 = vpop.f32.mrf.mxu0
      %v219 = vadd.f32 0.0, %v218
      %220 = vdwg.mxu0
      %221 = vmatpush.bf16.msra.mxu0 0
      %222 = vmatpush.bf16.msra.mxu0 0
      %223 = vmatpush.bf16.msra.mxu0 0
      %224 = vmatpush.bf16.msra.mxu0 0
      %225 = vmatpush.bf16.msra.mxu0 0
      %226 = vmatpush.bf16.msra.mxu0 0
      %227 = vmatpush.bf16.msra.mxu0 0
      %228 = vmatpush.bf16.msra.mxu0 %v196
      %229 = vmatmul.bf16.gmra.mxu0 %v205
      %v230 = vpop.f32.mrf.mxu0
      %v231 = vadd.f32 0.0, %v230
      %v232 = vpop.f32.mrf.mxu0
      %v233 = vadd.f32 0.0, %v232
      %234 = vdwg.mxu0
      %235 = vmatpush.bf16.msra.mxu0 0
      %236 = vmatpush.bf16.msra.mxu0 0
      %237 = vmatpush.bf16.msra.mxu0 0
      %238 = vmatpush.bf16.msra.mxu0 0
      %239 = vmatpush.bf16.msra.mxu0 0
      %240 = vmatpush.bf16.msra.mxu0 0
      %241 = vmatpush.bf16.msra.mxu0 0
      %242 = vmatpush.bf16.msra.mxu0 %v197
      %243 = vmatmul.bf16.gmra.mxu0 %v205
      %v244 = vpop.f32.mrf.mxu0
      %v245 = vadd.f32 0.0, %v244
      %v246 = vpop.f32.mrf.mxu0
      %v247 = vadd.f32 0.0, %v246
      %248 = vdwg.mxu0
      %249 = vmatpush.bf16.msra.mxu0 0
      %250 = vmatpush.bf16.msra.mxu0 0
      %251 = vmatpush.bf16.msra.mxu0 0
      %252 = vmatpush.bf16.msra.mxu0 0
      %253 = vmatpush.bf16.msra.mxu0 0
      %254 = vmatpush.bf16.msra.mxu0 0
      %255 = vmatpush.bf16.msra.mxu0 0
      %256 = vmatpush.bf16.msra.mxu0 %v198
      %257 = vmatmul.bf16.gmra.mxu0 %v205
      %v258 = vpop.f32.mrf.mxu0
      %v259 = vadd.f32 0.0, %v258
      %v260 = vpop.f32.mrf.mxu0
      %v261 = vadd.f32 0.0, %v260
      %262 = vdwg.mxu0
      %v263 = vadd.f32 %v170, %v217
      %v264 = vadd.f32 %v171, %v231
      %v265 = vadd.f32 %v172, %v245
      %v266 = vadd.f32 %v173, %v259
      %v267 = vadd.f32 %v174, %v219
      %v268 = vadd.f32 %v175, %v233
      %v269 = vadd.f32 %v176, %v247
      %v270 = vadd.f32 %v177, %v261
      %v271 = vxor.u32 %v263, 2147483648
      %v272 = vxor.u32 %v267, 2147483648
      %v273 = vmul.f32 %v271, 1.442695
      %v274 = vpow.pop %v273
      %v275 = vmul.f32 %v272, 1.442695
      %v276 = vpow.pop %v275
      %v277 = vadd.f32 %v274, 1.0
      %v278 = vadd.f32 %v276, 1.0
      %v279 = vrcp.pop %v277
      %v280 = vmul.f32 %v277, %v279
      %v281 = vsub.f32 1.0, %v280
      %v282 = vmul.f32 %v279, %v281
      %v283 = vadd.f32 %v279, %v282
      %vm284 = vweird.f32 %v277
      %vm285 = vweird.f32 %v279
      %vm286 = vmor %vm284, %vm285
      %v287 = vsel %vm286, %v279, %v283
      %v288 = vand.u32 2147483647, %v277
      %vm289 = vcmp.eq.f32.partialorder %v288, 8.507059e+37
      %v290 = vand.u32 %v277, 2147483648
      %v291 = vor.u32 1.1754944e-38, %v290
      %v292 = vsel %vm289, %v291, %v287
      %v293 = vmul.f32 1.0, %v292
      %v294 = vrcp.pop %v278
      %v295 = vmul.f32 %v278, %v294
      %v296 = vsub.f32 1.0, %v295
      %v297 = vmul.f32 %v294, %v296
      %v298 = vadd.f32 %v294, %v297
      %vm299 = vweird.f32 %v278
      %vm300 = vweird.f32 %v294
      %vm301 = vmor %vm299, %vm300
      %v302 = vsel %vm301, %v294, %v298
      %v303 = vand.u32 2147483647, %v278
      %vm304 = vcmp.eq.f32.partialorder %v303, 8.507059e+37
      %v305 = vand.u32 %v278, 2147483648
      %v306 = vor.u32 1.1754944e-38, %v305
      %v307 = vsel %vm304, %v306, %v302
      %v308 = vmul.f32 1.0, %v307
      %v309 = vxor.u32 %v264, 2147483648
      %v310 = vxor.u32 %v268, 2147483648
      %v311 = vmul.f32 %v309, 1.442695
      %v312 = vpow.pop %v311
      %v313 = vmul.f32 %v310, 1.442695
      %v314 = vpow.pop %v313
      %v315 = vadd.f32 %v312, 1.0
      %v316 = vadd.f32 %v314, 1.0
      %v317 = vrcp.pop %v315
      %v318 = vmul.f32 %v315, %v317
      %v319 = vsub.f32 1.0, %v318
      %v320 = vmul.f32 %v317, %v319
      %v321 = vadd.f32 %v317, %v320
      %vm322 = vweird.f32 %v315
      %vm323 = vweird.f32 %v317
      %vm324 = vmor %vm322, %vm323
      %v325 = vsel %vm324, %v317, %v321
      %v326 = vand.u32 2147483647, %v315
      %vm327 = vcmp.eq.f32.partialorder %v326, 8.507059e+37
      %v328 = vand.u32 %v315, 2147483648
      %v329 = vor.u32 1.1754944e-38, %v328
      %v330 = vsel %vm327, %v329, %v325
      %v331 = vmul.f32 1.0, %v330
      %v332 = vrcp.pop %v316
      %v333 = vmul.f32 %v316, %v332
      %v334 = vsub.f32 1.0, %v333
      %v335 = vmul.f32 %v332, %v334
      %v336 = vadd.f32 %v332, %v335
      %vm337 = vweird.f32 %v316
      %vm338 = vweird.f32 %v332
      %vm339 = vmor %vm337, %vm338
      %v340 = vsel %vm339, %v332, %v336
      %v341 = vand.u32 2147483647, %v316
      %vm342 = vcmp.eq.f32.partialorder %v341, 8.507059e+37
      %v343 = vand.u32 %v316, 2147483648
      %v344 = vor.u32 1.1754944e-38, %v343
      %v345 = vsel %vm342, %v344, %v340
      %v346 = vmul.f32 1.0, %v345
      %v347 = vtanh.pop %v265
      %v348 = vtanh.pop %v269
      %v349 = vxor.u32 %v266, 2147483648
      %v350 = vxor.u32 %v270, 2147483648
      %v351 = vmul.f32 %v349, 1.442695
      %v352 = vpow.pop %v351
      %v353 = vmul.f32 %v350, 1.442695
      %v354 = vpow.pop %v353
      %v355 = vadd.f32 %v352, 1.0
      %v356 = vadd.f32 %v354, 1.0
      %v357 = vrcp.pop %v355
      %v358 = vmul.f32 %v355, %v357
      %v359 = vsub.f32 1.0, %v358
      %v360 = vmul.f32 %v357, %v359
      %v361 = vadd.f32 %v357, %v360
      %vm362 = vweird.f32 %v355
      %vm363 = vweird.f32 %v357
      %vm364 = vmor %vm362, %vm363
      %v365 = vsel %vm364, %v357, %v361
      %v366 = vand.u32 2147483647, %v355
      %vm367 = vcmp.eq.f32.partialorder %v366, 8.507059e+37
      %v368 = vand.u32 %v355, 2147483648
      %v369 = vor.u32 1.1754944e-38, %v368
      %v370 = vsel %vm367, %v369, %v365
      %v371 = vmul.f32 1.0, %v370
      %v372 = vrcp.pop %v356
      %v373 = vmul.f32 %v356, %v372
      %v374 = vsub.f32 1.0, %v373
      %v375 = vmul.f32 %v372, %v374
      %v376 = vadd.f32 %v372, %v375
      %vm377 = vweird.f32 %v356
      %vm378 = vweird.f32 %v372
      %vm379 = vmor %vm377, %vm378
      %v380 = vsel %vm379, %v372, %v376
      %v381 = vand.u32 2147483647, %v356
      %vm382 = vcmp.eq.f32.partialorder %v381, 8.507059e+37
      %v383 = vand.u32 %v356, 2147483648
      %v384 = vor.u32 1.1754944e-38, %v383
      %v385 = vsel %vm382, %v384, %v380
      %v386 = vmul.f32 1.0, %v385
      %v387 = vmul.f32 %v293, %v347
      %v388 = vmul.f32 %v308, %v348
      %v389 = vmul.f32 %v331, %v168
      %v390 = vmul.f32 %v346, %v169
      %v391 = vadd.f32 %v387, %v389
      %v392 = vadd.f32 %v388, %v390
      %v393 = vtanh.pop %v391
      %v394 = vtanh.pop %v392
      %v395 = vmul.f32 %v371, %v393
      %v396 = vmul.f32 %v386, %v394
      %v397 = vld [vmem:[%s0] sm:$0xff]
      %v398 = vld [vmem:[%s0 + $0x8] sm:$0xff]
      %v399 = vstv %s14
      %vm400 = vcmp.lt.s32.totalorder %v399, %v397
      %vm401 = vcmp.lt.s32.totalorder %v399, %v398
      %v402 = vsel %vm400, 1, 0
      %v403 = vsel %vm401, 1, 0
      %404 = vset.pattern.permute.xlu0 0
      %405 = vperm.xlu0 %404, %v402
      %v406 = vpop.permute.xlu0 %405
      %407 = vset.pattern.permute.xlu0 0
      %408 = vperm.xlu0 %407, %v403
      %v409 = vpop.permute.xlu0 %408
      %vm410 = vcmp.eq.s32.totalorder %v406, 1
      %vm411 = vcmp.eq.s32.totalorder %v409, 1
      %v412 = vsel %vm410, %v395, %v166
      %v413 = vsel %vm411, %v396, %v167
      %414 = vst.msk [vmem:[#allocation2] sm:$0xff] %vm203, %v412
      %415 = vst.msk [vmem:[#allocation2 + $0x8] sm:$0xff] %vm203, %v413
      %v416 = vsel %vm410, %v391, %v168
      %v417 = vsel %vm411, %v392, %v169
      %418 = vst.msk [vmem:[#allocation3] sm:$0xff] %vm203, %v416
      %419 = vst.msk [vmem:[#allocation3 + $0x8] sm:$0xff] %vm203, %v417
      %p420 = scmp.eq.s32.totalorder %s14, 5
      // Predicated region
      $region37: #{rnn_forward.12} parent=31 // pred_check
        %p421 = pneg %p420
      $region38: #{rnn_forward.12} parent=31 // pred_check_branch
        %423 = sbr.rel (%p421) target = $region40
      $region39: #{rnn_forward.12} parent=31 // pred_region
        %v424 = vld [vmem:[#allocation2] sm:$0xff]
        %v425 = vld [vmem:[#allocation2 + $0x8] sm:$0xff]
        %426 = vst.msk [vmem:[%s3] sm:$0xff] %vm203, %v424
        %427 = vst.msk [vmem:[%s3 + $0x8] sm:$0xff] %vm203, %v425
      $region40: #{rnn_forward.12} parent=31 // pred_fallthru
        _
      // Predicated region
      $region41: #{rnn_forward.12} parent=31 // pred_check
        %p428 = pneg %p95
      $region42: #{rnn_forward.12} parent=31 // pred_check_branch
        %430 = sbr.rel (%p428) target = $region44
      $region43: #{rnn_forward.12} parent=31 // pred_region
        _
      $region44: #{rnn_forward.12} parent=31 // pred_fallthru
        _
      // Predicated region
      $region45: #{rnn_forward.12} parent=31 // pred_check
        %p431 = pneg %p95
      $region46: #{rnn_forward.12} parent=31 // pred_check_branch
        %433 = sbr.rel (%p431) target = $region48
      $region47: #{rnn_forward.12} parent=31 // pred_region
        _
      $region48: #{rnn_forward.12} parent=31 // pred_fallthru
        _
    $region32: #{rnn_forward.12} parent=5 // pred_fallthru
      _
    %p434 = scmp.le.s32.totalorder 2, %s9
    // Predicated region
    $region49: #{rnn_forward.12} parent=5 // pred_check
      %p435 = pneg %p434
    $region50: #{rnn_forward.12} parent=5 // pred_check_branch
      %437 = sbr.rel (%p435) target = $region52
    $region51: #{rnn_forward.12} parent=5 // pred_region
      %s438 = ssub.s32 %s9, 2
    $region52: #{rnn_forward.12} parent=5 // pred_fallthru
      _
  $region6: #{rnn_forward.12} parent=0 // loop_footer
    %s13 = sadd.s32 1, %s9
  $region7: #{rnn_forward.12} parent=0 // loop_footer_branch
    %8 = sbr.rel target = $region3
  $region8: #{rnn_forward.12} parent=0 // loop_exit
    _

// kernel: rnn_forward.11
$region0: #{rnn_forward.11}
  #allocation0 [shape = 'u32[]', space=smem, size = 0x4, offset = 0x4, fixed_abs, tag = 'smem constant byte address 0x4 - core index']
  #allocation1 [shape = 'u32[72,128]{1,0:T(1,128)}', space=vmem, size = 0x9000, scoped, tag = 'internal scratch']
  %s0 = inlined_call_operand.vmem [shape: bf16[96,16], index: 0, kind: input, shape index: {}]
  %s1 = inlined_call_operand.vmem [shape: bf16[16,512], index: 1, kind: input, shape index: {}]
  %s2 = inlined_call_operand.vmem [shape: f32[1,512], index: 2, kind: input, shape index: {}]
  %s3 = inlined_call_operand.vmem [shape: f32[96,512], index: 3, kind: output, shape index: {}]
  %s4 = sld [smem:[#allocation0]]
  $region22: #{rnn_forward.11} parent=0
    _
  %s6 = ssub.s32 1, %s4
  %s7 = scalar_select 0, %s6, %s4
  // Predicated region
  $region2: #{rnn_forward.11} parent=0 // pred_check
    _
  $region3: #{rnn_forward.11} parent=0 // pred_check_branch
    %9 = sbr.rel (0) target = $region5
  $region4: #{rnn_forward.11} parent=0 // pred_region
    _
  $region5: #{rnn_forward.11} parent=0 // pred_fallthru
    _
  // Predicated region
  $region6: #{rnn_forward.11} parent=0 // pred_check
    _
  $region7: #{rnn_forward.11} parent=0 // pred_check_branch
    %11 = sbr.rel (0) target = $region9
  $region8: #{rnn_forward.11} parent=0 // pred_region
    _
  $region9: #{rnn_forward.11} parent=0 // pred_fallthru
    _
  // Predicated region
  $region10: #{rnn_forward.11} parent=0 // pred_check
    _
  $region11: #{rnn_forward.11} parent=0 // pred_check_branch
    %13 = sbr.rel (0) target = $region13
  $region12: #{rnn_forward.11} parent=0 // pred_region
    _
  $region13: #{rnn_forward.11} parent=0 // pred_fallthru
    _
  %v15 = vld [vmem:[%s0] sm:$0xf]
  %v16 = vld [vmem:[%s0 + $0x4] sm:$0xf]
  %v17 = vld [vmem:[%s0 + $0x8] sm:$0xf]
  %v18 = vld [vmem:[%s0 + $0xc] sm:$0xf]
  %v19 = vld [vmem:[%s0 + $0x10] sm:$0xf]
  %v20 = vld [vmem:[%s0 + $0x14] sm:$0xf]
  %v21 = vld [vmem:[%s0 + $0x18] sm:$0xf]
  %v22 = vld [vmem:[%s0 + $0x1c] sm:$0xf]
  %v23 = vld [vmem:[%s0 + $0x20] sm:$0xf]
  %v24 = vld [vmem:[%s0 + $0x24] sm:$0xf]
  %v25 = vld [vmem:[%s0 + $0x28] sm:$0xf]
  %v26 = vld [vmem:[%s0 + $0x2c] sm:$0xf]
  %v27 = vld [vmem:[%s1] sm:$0xff]
  %v28 = vld [vmem:[%s1 + $0x8] sm:$0xff]
  %v29 = vld [vmem:[%s1 + $0x10] sm:$0xff]
  %v30 = vld [vmem:[%s1 + $0x18] sm:$0xff]
  %v31 = vld [vmem:[%s2] sm:$0xf]
  %v33 = vperm.slane %v31, 0
  %v34 = vperm.slane %v31, 1
  %v35 = vperm.slane %v31, 2
  %v36 = vperm.slane %v31, 3
  %v53 = vunpack.c.l.b16 %v15
  %v54 = vunpack.c.l.b16 %v16
  %v55 = vunpack.c.l.b16 %v17
  %v56 = vunpack.c.l.b16 %v18
  %v57 = vunpack.c.l.b16 %v19
  %v58 = vunpack.c.l.b16 %v20
  %v59 = vunpack.c.l.b16 %v21
  %v60 = vunpack.c.l.b16 %v22
  %v61 = vunpack.c.l.b16 %v23
  %v62 = vunpack.c.l.b16 %v24
  %v63 = vunpack.c.l.b16 %v25
  %v64 = vunpack.c.l.b16 %v26
  %v65 = vpack.c.b16 %v54, %v53
  %v66 = vpack.c.b16 %v56, %v55
  %v67 = vpack.c.b16 %v58, %v57
  %v68 = vpack.c.b16 %v60, %v59
  %v69 = vpack.c.b16 %v62, %v61
  %v70 = vpack.c.b16 %v64, %v63
  %v75 = vunpack.c.l.b16 %v27
  %v76 = vunpack.c.h.b16 %v27
  %v77 = vunpack.c.l.b16 %v28
  %v78 = vunpack.c.h.b16 %v28
  %v79 = vunpack.c.l.b16 %v29
  %v80 = vunpack.c.h.b16 %v29
  %v81 = vunpack.c.l.b16 %v30
  %v82 = vunpack.c.h.b16 %v30
  %v83 = vpack.c.b16 %v79, %v75
  %v84 = vpack.c.b16 %v80, %v76
  %v85 = vpack.c.b16 %v81, %v77
  %v86 = vpack.c.b16 %v82, %v78
  %vm91 = vcmask 130048
  %v93 = vsel %vm91, %v65, 0
  %v96 = vsel %vm91, %v66, 0
  %v99 = vsel %vm91, %v67, 0
  %v102 = vsel %vm91, %v68, 0
  %v105 = vsel %vm91, %v69, 0
  %v108 = vsel %vm91, %v70, 0
  %110 = vmatpush.bf16.msra.mxu0 0
  %111 = vmatpush.bf16.msra.mxu0 0
  %112 = vmatpush.bf16.msra.mxu0 0
  %113 = vmatpush.bf16.msra.mxu0 0
  %114 = vmatpush.bf16.msra.mxu0 0
  %115 = vmatpush.bf16.msra.mxu0 0
  %116 = vmatpush.bf16.msra.mxu0 0
  %117 = vmatpush.bf16.msra.mxu0 %v83
  %118 = vmatmul.bf16.gmra.mxu0 %v93
  %v119 = vpop.f32.mrf.mxu0
  %v120 = vadd.f32 %v33, %v119
  %v121 = vpop.f32.mrf.mxu0
  %v122 = vadd.f32 %v33, %v121
  %123 = vmatmul.bf16.gmra.mxu0 %v96
  %v124 = vpop.f32.mrf.mxu0
  %v125 = vadd.f32 %v33, %v124
  %v126 = vpop.f32.mrf.mxu0
  %v127 = vadd.f32 %v33, %v126
  %128 = vmatmul.bf16.gmra.mxu0 %v99
  %v129 = vpop.f32.mrf.mxu0
  %v130 = vadd.f32 %v33, %v129
  %v131 = vpop.f32.mrf.mxu0
  %v132 = vadd.f32 %v33, %v131
  %133 = vmatmul.bf16.gmra.mxu0 %v102
  %v134 = vpop.f32.mrf.mxu0
  %v135 = vadd.f32 %v33, %v134
  %v136 = vpop.f32.mrf.mxu0
  %v137 = vadd.f32 %v33, %v136
  %138 = vmatmul.bf16.gmra.mxu0 %v105
  %v139 = vpop.f32.mrf.mxu0
  %v140 = vadd.f32 %v33, %v139
  %v141 = vpop.f32.mrf.mxu0
  %v142 = vadd.f32 %v33, %v141
  %143 = vmatmul.bf16.gmra.mxu0 %v108
  %v144 = vpop.f32.mrf.mxu0
  %v145 = vadd.f32 %v33, %v144
  %v146 = vpop.f32.mrf.mxu0
  %v147 = vadd.f32 %v33, %v146
  %148 = vdwg.mxu0
  %149 = vmatpush.bf16.msra.mxu0 0
  %150 = vmatpush.bf16.msra.mxu0 0
  %151 = vmatpush.bf16.msra.mxu0 0
  %152 = vmatpush.bf16.msra.mxu0 0
  %153 = vmatpush.bf16.msra.mxu0 0
  %154 = vmatpush.bf16.msra.mxu0 0
  %155 = vmatpush.bf16.msra.mxu0 0
  %156 = vmatpush.bf16.msra.mxu0 %v84
  %157 = vmatmul.bf16.gmra.mxu0 %v93
  %v158 = vpop.f32.mrf.mxu0
  %v159 = vadd.f32 %v34, %v158
  %v160 = vpop.f32.mrf.mxu0
  %v161 = vadd.f32 %v34, %v160
  %162 = vmatmul.bf16.gmra.mxu0 %v96
  %v163 = vpop.f32.mrf.mxu0
  %v164 = vadd.f32 %v34, %v163
  %v165 = vpop.f32.mrf.mxu0
  %v166 = vadd.f32 %v34, %v165
  %167 = vmatmul.bf16.gmra.mxu0 %v99
  %v168 = vpop.f32.mrf.mxu0
  %v169 = vadd.f32 %v34, %v168
  %v170 = vpop.f32.mrf.mxu0
  %v171 = vadd.f32 %v34, %v170
  %172 = vmatmul.bf16.gmra.mxu0 %v102
  %v173 = vpop.f32.mrf.mxu0
  %v174 = vadd.f32 %v34, %v173
  %v175 = vpop.f32.mrf.mxu0
  %v176 = vadd.f32 %v34, %v175
  %177 = vmatmul.bf16.gmra.mxu0 %v105
  %v178 = vpop.f32.mrf.mxu0
  %v179 = vadd.f32 %v34, %v178
  %v180 = vpop.f32.mrf.mxu0
  %v181 = vadd.f32 %v34, %v180
  %182 = vmatmul.bf16.gmra.mxu0 %v108
  %v183 = vpop.f32.mrf.mxu0
  %v184 = vadd.f32 %v34, %v183
  %v185 = vpop.f32.mrf.mxu0
  %v186 = vadd.f32 %v34, %v185
  %187 = vdwg.mxu0
  %188 = vmatpush.bf16.msra.mxu0 0
  %189 = vmatpush.bf16.msra.mxu0 0
  %190 = vmatpush.bf16.msra.mxu0 0
  %191 = vmatpush.bf16.msra.mxu0 0
  %192 = vmatpush.bf16.msra.mxu0 0
  %193 = vmatpush.bf16.msra.mxu0 0
  %194 = vmatpush.bf16.msra.mxu0 0
  %195 = vmatpush.bf16.msra.mxu0 %v85
  %196 = vmatmul.bf16.gmra.mxu0 %v93
  %v197 = vpop.f32.mrf.mxu0
  %v198 = vadd.f32 %v35, %v197
  %v199 = vpop.f32.mrf.mxu0
  %v200 = vadd.f32 %v35, %v199
  %201 = vmatmul.bf16.gmra.mxu0 %v96
  %v202 = vpop.f32.mrf.mxu0
  %v203 = vadd.f32 %v35, %v202
  %v204 = vpop.f32.mrf.mxu0
  %v205 = vadd.f32 %v35, %v204
  %206 = vmatmul.bf16.gmra.mxu0 %v99
  %v207 = vpop.f32.mrf.mxu0
  %v208 = vadd.f32 %v35, %v207
  %v209 = vpop.f32.mrf.mxu0
  %v210 = vadd.f32 %v35, %v209
  %211 = vmatmul.bf16.gmra.mxu0 %v102
  %v212 = vpop.f32.mrf.mxu0
  %v213 = vadd.f32 %v35, %v212
  %v214 = vpop.f32.mrf.mxu0
  %v215 = vadd.f32 %v35, %v214
  %216 = vmatmul.bf16.gmra.mxu0 %v105
  %v217 = vpop.f32.mrf.mxu0
  %v218 = vadd.f32 %v35, %v217
  %v219 = vpop.f32.mrf.mxu0
  %v220 = vadd.f32 %v35, %v219
  %221 = vmatmul.bf16.gmra.mxu0 %v108
  %v222 = vpop.f32.mrf.mxu0
  %v223 = vadd.f32 %v35, %v222
  %v224 = vpop.f32.mrf.mxu0
  %v225 = vadd.f32 %v35, %v224
  %226 = vdwg.mxu0
  %227 = vmatpush.bf16.msra.mxu0 0
  %228 = vmatpush.bf16.msra.mxu0 0
  %229 = vmatpush.bf16.msra.mxu0 0
  %230 = vmatpush.bf16.msra.mxu0 0
  %231 = vmatpush.bf16.msra.mxu0 0
  %232 = vmatpush.bf16.msra.mxu0 0
  %233 = vmatpush.bf16.msra.mxu0 0
  %234 = vmatpush.bf16.msra.mxu0 %v86
  %235 = vmatmul.bf16.gmra.mxu0 %v93
  %v236 = vpop.f32.mrf.mxu0
  %v237 = vadd.f32 %v36, %v236
  %v238 = vpop.f32.mrf.mxu0
  %v239 = vadd.f32 %v36, %v238
  %240 = vmatmul.bf16.gmra.mxu0 %v96
  %v241 = vpop.f32.mrf.mxu0
  %v242 = vadd.f32 %v36, %v241
  %v243 = vpop.f32.mrf.mxu0
  %v244 = vadd.f32 %v36, %v243
  %245 = vmatmul.bf16.gmra.mxu0 %v99
  %v246 = vpop.f32.mrf.mxu0
  %v247 = vadd.f32 %v36, %v246
  %v248 = vpop.f32.mrf.mxu0
  %v249 = vadd.f32 %v36, %v248
  %250 = vmatmul.bf16.gmra.mxu0 %v102
  %v251 = vpop.f32.mrf.mxu0
  %v252 = vadd.f32 %v36, %v251
  %v253 = vpop.f32.mrf.mxu0
  %v254 = vadd.f32 %v36, %v253
  %255 = vmatmul.bf16.gmra.mxu0 %v105
  %v256 = vpop.f32.mrf.mxu0
  %v257 = vadd.f32 %v36, %v256
  %v258 = vpop.f32.mrf.mxu0
  %v259 = vadd.f32 %v36, %v258
  %260 = vmatmul.bf16.gmra.mxu0 %v108
  %v261 = vpop.f32.mrf.mxu0
  %v262 = vadd.f32 %v36, %v261
  %v263 = vpop.f32.mrf.mxu0
  %v264 = vadd.f32 %v36, %v263
  %265 = vdwg.mxu0
  %266 = vst [vmem:[%s3] sm:$0xff] %v120
  %267 = vst [vmem:[%s3 + $0x8] sm:$0xff] %v159
  %268 = vst [vmem:[%s3 + $0x10] sm:$0xff] %v198
  %269 = vst [vmem:[%s3 + $0x18] sm:$0xff] %v237
  %270 = vst [vmem:[%s3 + $0x20] sm:$0xff] %v122
  %271 = vst [vmem:[%s3 + $0x28] sm:$0xff] %v161
  %272 = vst [vmem:[%s3 + $0x30] sm:$0xff] %v200
  %273 = vst [vmem:[%s3 + $0x38] sm:$0xff] %v239
  %274 = vst [vmem:[%s3 + $0x40] sm:$0xff] %v125
  %275 = vst [vmem:[%s3 + $0x48] sm:$0xff] %v164
  %276 = vst [vmem:[%s3 + $0x50] sm:$0xff] %v203
  %277 = vst [vmem:[%s3 + $0x58] sm:$0xff] %v242
  %278 = vst [vmem:[%s3 + $0x60] sm:$0xff] %v127
  %279 = vst [vmem:[%s3 + $0x68] sm:$0xff] %v166
  %280 = vst [vmem:[%s3 + $0x70] sm:$0xff] %v205
  %281 = vst [vmem:[%s3 + $0x78] sm:$0xff] %v244
  %282 = vst [vmem:[%s3 + $0x80] sm:$0xff] %v130
  %283 = vst [vmem:[%s3 + $0x88] sm:$0xff] %v169
  %284 = vst [vmem:[%s3 + $0x90] sm:$0xff] %v208
  %285 = vst [vmem:[%s3 + $0x98] sm:$0xff] %v247
  %286 = vst [vmem:[%s3 + $0xa0] sm:$0xff] %v132
  %287 = vst [vmem:[%s3 + $0xa8] sm:$0xff] %v171
  %288 = vst [vmem:[%s3 + $0xb0] sm:$0xff] %v210
  %289 = vst [vmem:[%s3 + $0xb8] sm:$0xff] %v249
  %290 = vst [vmem:[%s3 + $0xc0] sm:$0xff] %v135
  %291 = vst [vmem:[%s3 + $0xc8] sm:$0xff] %v174
  %292 = vst [vmem:[%s3 + $0xd0] sm:$0xff] %v213
  %293 = vst [vmem:[%s3 + $0xd8] sm:$0xff] %v252
  %294 = vst [vmem:[%s3 + $0xe0] sm:$0xff] %v137
  %295 = vst [vmem:[%s3 + $0xe8] sm:$0xff] %v176
  %296 = vst [vmem:[%s3 + $0xf0] sm:$0xff] %v215
  %297 = vst [vmem:[%s3 + $0xf8] sm:$0xff] %v254
  %298 = vst [vmem:[%s3 + $0x100] sm:$0xff] %v140
  %299 = vst [vmem:[%s3 + $0x108] sm:$0xff] %v179
  %300 = vst [vmem:[%s3 + $0x110] sm:$0xff] %v218
  %301 = vst [vmem:[%s3 + $0x118] sm:$0xff] %v257
  %302 = vst [vmem:[%s3 + $0x120] sm:$0xff] %v142
  %303 = vst [vmem:[%s3 + $0x128] sm:$0xff] %v181
  %304 = vst [vmem:[%s3 + $0x130] sm:$0xff] %v220
  %305 = vst [vmem:[%s3 + $0x138] sm:$0xff] %v259
  %306 = vst [vmem:[%s3 + $0x140] sm:$0xff] %v145
  %307 = vst [vmem:[%s3 + $0x148] sm:$0xff] %v184
  %308 = vst [vmem:[%s3 + $0x150] sm:$0xff] %v223
  %309 = vst [vmem:[%s3 + $0x158] sm:$0xff] %v262
  %310 = vst [vmem:[%s3 + $0x160] sm:$0xff] %v147
  %311 = vst [vmem:[%s3 + $0x168] sm:$0xff] %v186
  %312 = vst [vmem:[%s3 + $0x170] sm:$0xff] %v225
  %313 = vst [vmem:[%s3 + $0x178] sm:$0xff] %v264
  // Predicated region
  $region14: #{rnn_forward.11} parent=0 // pred_check
    _
  $region15: #{rnn_forward.11} parent=0 // pred_check_branch
    %315 = sbr.rel (0) target = $region17
  $region16: #{rnn_forward.11} parent=0 // pred_region
    _
  $region17: #{rnn_forward.11} parent=0 // pred_fallthru
    _
  // Predicated region
  $region18: #{rnn_forward.11} parent=0 // pred_check
    _
  $region19: #{rnn_forward.11} parent=0 // pred_check_branch
    %317 = sbr.rel (0) target = $region21
  $region20: #{rnn_forward.11} parent=0 // pred_region
    _
  $region21: #{rnn_forward.11} parent=0 // pred_fallthru
    _

// kernel: rnn_forward.15
$region0: #{rnn_forward.15}
  #allocation0 [shape = 'u32[]', space=smem, size = 0x4, offset = 0x4, fixed_abs, tag = 'smem constant byte address 0x4 - core index']
  #allocation1 [shape = 'u32[72,128]{1,0:T(1,128)}', space=vmem, size = 0x9000, scoped, tag = 'internal scratch']
  %s0 = inlined_call_operand.vmem [shape: bf16[24,48], index: 0, kind: input, shape index: {}]
  %s1 = inlined_call_operand.vmem [shape: bf16[48,512], index: 1, kind: input, shape index: {}]
  %s2 = inlined_call_operand.vmem [shape: f32[1,512], index: 2, kind: input, shape index: {}]
  %s3 = inlined_call_operand.vmem [shape: f32[24,512], index: 3, kind: output, shape index: {}]
  %s4 = sld [smem:[#allocation0]]
  $region22: #{rnn_forward.15} parent=0
    _
  %s6 = ssub.s32 1, %s4
  %s7 = scalar_select 0, %s6, %s4
  // Predicated region
  $region2: #{rnn_forward.15} parent=0 // pred_check
    _
  $region3: #{rnn_forward.15} parent=0 // pred_check_branch
    %9 = sbr.rel (0) target = $region5
  $region4: #{rnn_forward.15} parent=0 // pred_region
    _
  $region5: #{rnn_forward.15} parent=0 // pred_fallthru
    _
  // Predicated region
  $region6: #{rnn_forward.15} parent=0 // pred_check
    _
  $region7: #{rnn_forward.15} parent=0 // pred_check_branch
    %11 = sbr.rel (0) target = $region9
  $region8: #{rnn_forward.15} parent=0 // pred_region
    _
  $region9: #{rnn_forward.15} parent=0 // pred_fallthru
    _
  // Predicated region
  $region10: #{rnn_forward.15} parent=0 // pred_check
    _
  $region11: #{rnn_forward.15} parent=0 // pred_check_branch
    %13 = sbr.rel (0) target = $region13
  $region12: #{rnn_forward.15} parent=0 // pred_region
    _
  $region13: #{rnn_forward.15} parent=0 // pred_fallthru
    _
  %v15 = vld [vmem:[%s0] sm:$0xf]
  %v16 = vld [vmem:[%s0 + $0x4] sm:$0xf]
  %v17 = vld [vmem:[%s0 + $0x8] sm:$0xf]
  %v18 = vld [vmem:[%s1] sm:$0xff]
  %v19 = vld [vmem:[%s1 + $0x8] sm:$0xff]
  %v20 = vld [vmem:[%s1 + $0x10] sm:$0xff]
  %v21 = vld [vmem:[%s1 + $0x18] sm:$0xff]
  %v22 = vld [vmem:[%s1 + $0x20] sm:$0xff]
  %v23 = vld [vmem:[%s1 + $0x28] sm:$0xff]
  %v24 = vld [vmem:[%s1 + $0x30] sm:$0xff]
  %v25 = vld [vmem:[%s1 + $0x38] sm:$0xff]
  %v26 = vld [vmem:[%s1 + $0x40] sm:$0xff]
  %v27 = vld [vmem:[%s1 + $0x48] sm:$0xff]
  %v28 = vld [vmem:[%s1 + $0x50] sm:$0xff]
  %v29 = vld [vmem:[%s1 + $0x58] sm:$0xff]
  %v30 = vld [vmem:[%s2] sm:$0xf]
  %v32 = vperm.slane %v30, 0
  %v33 = vperm.slane %v30, 1
  %v34 = vperm.slane %v30, 2
  %v35 = vperm.slane %v30, 3
  %v43 = vunpack.c.l.b16 %v15
  %v44 = vunpack.c.l.b16 %v16
  %v45 = vunpack.c.l.b16 %v17
  %v46 = vpack.c.b16 %v44, %v43
  %v47 = vpack.c.b16 %v45, %v45
  %v60 = vunpack.c.l.b16 %v18
  %v61 = vunpack.c.h.b16 %v18
  %v62 = vunpack.c.l.b16 %v19
  %v63 = vunpack.c.h.b16 %v19
  %v64 = vunpack.c.l.b16 %v20
  %v65 = vunpack.c.h.b16 %v20
  %v66 = vunpack.c.l.b16 %v21
  %v67 = vunpack.c.h.b16 %v21
  %v68 = vunpack.c.l.b16 %v22
  %v69 = vunpack.c.h.b16 %v22
  %v70 = vunpack.c.l.b16 %v23
  %v71 = vunpack.c.h.b16 %v23
  %v72 = vunpack.c.l.b16 %v24
  %v73 = vunpack.c.h.b16 %v24
  %v74 = vunpack.c.l.b16 %v25
  %v75 = vunpack.c.h.b16 %v25
  %v76 = vunpack.c.l.b16 %v26
  %v77 = vunpack.c.h.b16 %v26
  %v78 = vunpack.c.l.b16 %v27
  %v79 = vunpack.c.h.b16 %v27
  %v80 = vunpack.c.l.b16 %v28
  %v81 = vunpack.c.h.b16 %v28
  %v82 = vunpack.c.l.b16 %v29
  %v83 = vunpack.c.h.b16 %v29
  %v84 = vpack.c.b16 %v64, %v60
  %v85 = vpack.c.b16 %v65, %v61
  %v86 = vpack.c.b16 %v66, %v62
  %v87 = vpack.c.b16 %v67, %v63
  %v88 = vpack.c.b16 %v72, %v68
  %v89 = vpack.c.b16 %v73, %v69
  %v90 = vpack.c.b16 %v74, %v70
  %v91 = vpack.c.b16 %v75, %v71
  %v92 = vpack.c.b16 %v80, %v76
  %v93 = vpack.c.b16 %v81, %v77
  %v94 = vpack.c.b16 %v82, %v78
  %v95 = vpack.c.b16 %v83, %v79
  %vm108 = vcmask 392192
  %v110 = vsel %vm108, %v46, 0
  %v113 = vsel %vm108, %v47, 0
  %115 = vmatpush.bf16.msra.mxu0 0
  %116 = vmatpush.bf16.msra.mxu0 0
  %117 = vmatpush.bf16.msra.mxu0 0
  %118 = vmatpush.bf16.msra.mxu0 0
  %119 = vmatpush.bf16.msra.mxu0 0
  %120 = vmatpush.bf16.msra.mxu0 %v92
  %121 = vmatpush.bf16.msra.mxu0 %v88
  %122 = vmatpush.bf16.msra.mxu0 %v84
  %123 = vmatmul.bf16.gmra.mxu0 %v110
  %v124 = vpop.f32.mrf.mxu0
  %v125 = vadd.f32 %v32, %v124
  %v126 = vpop.f32.mrf.mxu0
  %v127 = vadd.f32 %v32, %v126
  %128 = vmatmul.bf16.gmra.mxu0 %v113
  %v129 = vpop.f32.mrf.mxu0
  %v130 = vadd.f32 %v32, %v129
  %v131 = vpop.f32.mrf.mxu0
  %132 = vdwg.mxu0
  %133 = vmatpush.bf16.msra.mxu0 0
  %134 = vmatpush.bf16.msra.mxu0 0
  %135 = vmatpush.bf16.msra.mxu0 0
  %136 = vmatpush.bf16.msra.mxu0 0
  %137 = vmatpush.bf16.msra.mxu0 0
  %138 = vmatpush.bf16.msra.mxu0 %v93
  %139 = vmatpush.bf16.msra.mxu0 %v89
  %140 = vmatpush.bf16.msra.mxu0 %v85
  %141 = vmatmul.bf16.gmra.mxu0 %v110
  %v142 = vpop.f32.mrf.mxu0
  %v143 = vadd.f32 %v33, %v142
  %v144 = vpop.f32.mrf.mxu0
  %v145 = vadd.f32 %v33, %v144
  %146 = vmatmul.bf16.gmra.mxu0 %v113
  %v147 = vpop.f32.mrf.mxu0
  %v148 = vadd.f32 %v33, %v147
  %v149 = vpop.f32.mrf.mxu0
  %150 = vdwg.mxu0
  %151 = vmatpush.bf16.msra.mxu0 0
  %152 = vmatpush.bf16.msra.mxu0 0
  %153 = vmatpush.bf16.msra.mxu0 0
  %154 = vmatpush.bf16.msra.mxu0 0
  %155 = vmatpush.bf16.msra.mxu0 0
  %156 = vmatpush.bf16.msra.mxu0 %v94
  %157 = vmatpush.bf16.msra.mxu0 %v90
  %158 = vmatpush.bf16.msra.mxu0 %v86
  %159 = vmatmul.bf16.gmra.mxu0 %v110
  %v160 = vpop.f32.mrf.mxu0
  %v161 = vadd.f32 %v34, %v160
  %v162 = vpop.f32.mrf.mxu0
  %v163 = vadd.f32 %v34, %v162
  %164 = vmatmul.bf16.gmra.mxu0 %v113
  %v165 = vpop.f32.mrf.mxu0
  %v166 = vadd.f32 %v34, %v165
  %v167 = vpop.f32.mrf.mxu0
  %168 = vdwg.mxu0
  %169 = vmatpush.bf16.msra.mxu0 0
  %170 = vmatpush.bf16.msra.mxu0 0
  %171 = vmatpush.bf16.msra.mxu0 0
  %172 = vmatpush.bf16.msra.mxu0 0
  %173 = vmatpush.bf16.msra.mxu0 0
  %174 = vmatpush.bf16.msra.mxu0 %v95
  %175 = vmatpush.bf16.msra.mxu0 %v91
  %176 = vmatpush.bf16.msra.mxu0 %v87
  %177 = vmatmul.bf16.gmra.mxu0 %v110
  %v178 = vpop.f32.mrf.mxu0
  %v179 = vadd.f32 %v35, %v178
  %v180 = vpop.f32.mrf.mxu0
  %v181 = vadd.f32 %v35, %v180
  %182 = vmatmul.bf16.gmra.mxu0 %v113
  %v183 = vpop.f32.mrf.mxu0
  %v184 = vadd.f32 %v35, %v183
  %v185 = vpop.f32.mrf.mxu0
  %186 = vdwg.mxu0
  %187 = vst [vmem:[%s3] sm:$0xff] %v125
  %188 = vst [vmem:[%s3 + $0x8] sm:$0xff] %v143
  %189 = vst [vmem:[%s3 + $0x10] sm:$0xff] %v161
  %190 = vst [vmem:[%s3 + $0x18] sm:$0xff] %v179
  %191 = vst [vmem:[%s3 + $0x20] sm:$0xff] %v127
  %192 = vst [vmem:[%s3 + $0x28] sm:$0xff] %v145
  %193 = vst [vmem:[%s3 + $0x30] sm:$0xff] %v163
  %194 = vst [vmem:[%s3 + $0x38] sm:$0xff] %v181
  %195 = vst [vmem:[%s3 + $0x40] sm:$0xff] %v130
  %196 = vst [vmem:[%s3 + $0x48] sm:$0xff] %v148
  %197 = vst [vmem:[%s3 + $0x50] sm:$0xff] %v166
  %198 = vst [vmem:[%s3 + $0x58] sm:$0xff] %v184
  // Predicated region
  $region14: #{rnn_forward.15} parent=0 // pred_check
    _
  $region15: #{rnn_forward.15} parent=0 // pred_check_branch
    %200 = sbr.rel (0) target = $region17
  $region16: #{rnn_forward.15} parent=0 // pred_region
    _
  $region17: #{rnn_forward.15} parent=0 // pred_fallthru
    _
  // Predicated region
  $region18: #{rnn_forward.15} parent=0 // pred_check
    _
  $region19: #{rnn_forward.15} parent=0 // pred_check_branch
    %202 = sbr.rel (0) target = $region21
  $region20: #{rnn_forward.15} parent=0 // pred_region
    _
  $region21: #{rnn_forward.15} parent=0 // pred_fallthru
    _

// kernel: rnn_forward.18
$region0: #{rnn_forward.18}
  #allocation0 [shape = 'u32[]', space=smem, size = 0x4, offset = 0x4, fixed_abs, tag = 'smem constant byte address 0x4 - core index']
  #allocation1 [shape = 'u32[72,128]{1,0:T(1,128)}', space=vmem, size = 0x9000, scoped, tag = 'internal scratch']
  %s0 = inlined_call_operand.vmem [shape: bf16[24,64], index: 0, kind: input, shape index: {}]
  %s1 = inlined_call_operand.vmem [shape: bf16[64,512], index: 1, kind: input, shape index: {}]
  %s2 = inlined_call_operand.vmem [shape: f32[1,512], index: 2, kind: input, shape index: {}]
  %s3 = inlined_call_operand.vmem [shape: f32[24,512], index: 3, kind: output, shape index: {}]
  %s4 = sld [smem:[#allocation0]]
  $region22: #{rnn_forward.18} parent=0
    _
  %s6 = ssub.s32 1, %s4
  %s7 = scalar_select 0, %s6, %s4
  // Predicated region
  $region2: #{rnn_forward.18} parent=0 // pred_check
    _
  $region3: #{rnn_forward.18} parent=0 // pred_check_branch
    %9 = sbr.rel (0) target = $region5
  $region4: #{rnn_forward.18} parent=0 // pred_region
    _
  $region5: #{rnn_forward.18} parent=0 // pred_fallthru
    _
  // Predicated region
  $region6: #{rnn_forward.18} parent=0 // pred_check
    _
  $region7: #{rnn_forward.18} parent=0 // pred_check_branch
    %11 = sbr.rel (0) target = $region9
  $region8: #{rnn_forward.18} parent=0 // pred_region
    _
  $region9: #{rnn_forward.18} parent=0 // pred_fallthru
    _
  // Predicated region
  $region10: #{rnn_forward.18} parent=0 // pred_check
    _
  $region11: #{rnn_forward.18} parent=0 // pred_check_branch
    %13 = sbr.rel (0) target = $region13
  $region12: #{rnn_forward.18} parent=0 // pred_region
    _
  $region13: #{rnn_forward.18} parent=0 // pred_fallthru
    _
  %v15 = vld [vmem:[%s0] sm:$0xf]
  %v16 = vld [vmem:[%s0 + $0x4] sm:$0xf]
  %v17 = vld [vmem:[%s0 + $0x8] sm:$0xf]
  %v18 = vld [vmem:[%s1] sm:$0xff]
  %v19 = vld [vmem:[%s1 + $0x8] sm:$0xff]
  %v20 = vld [vmem:[%s1 + $0x10] sm:$0xff]
  %v21 = vld [vmem:[%s1 + $0x18] sm:$0xff]
  %v22 = vld [vmem:[%s1 + $0x20] sm:$0xff]
  %v23 = vld [vmem:[%s1 + $0x28] sm:$0xff]
  %v24 = vld [vmem:[%s1 + $0x30] sm:$0xff]
  %v25 = vld [vmem:[%s1 + $0x38] sm:$0xff]
  %v26 = vld [vmem:[%s1 + $0x40] sm:$0xff]
  %v27 = vld [vmem:[%s1 + $0x48] sm:$0xff]
  %v28 = vld [vmem:[%s1 + $0x50] sm:$0xff]
  %v29 = vld [vmem:[%s1 + $0x58] sm:$0xff]
  %v30 = vld [vmem:[%s1 + $0x60] sm:$0xff]
  %v31 = vld [vmem:[%s1 + $0x68] sm:$0xff]
  %v32 = vld [vmem:[%s1 + $0x70] sm:$0xff]
  %v33 = vld [vmem:[%s1 + $0x78] sm:$0xff]
  %v34 = vld [vmem:[%s2] sm:$0xf]
  %v36 = vperm.slane %v34, 0
  %v37 = vperm.slane %v34, 1
  %v38 = vperm.slane %v34, 2
  %v39 = vperm.slane %v34, 3
  %v47 = vunpack.c.l.b16 %v15
  %v48 = vunpack.c.l.b16 %v16
  %v49 = vunpack.c.l.b16 %v17
  %v50 = vpack.c.b16 %v48, %v47
  %v51 = vpack.c.b16 %v49, %v49
  %v68 = vunpack.c.l.b16 %v18
  %v69 = vunpack.c.h.b16 %v18
  %v70 = vunpack.c.l.b16 %v19
  %v71 = vunpack.c.h.b16 %v19
  %v72 = vunpack.c.l.b16 %v20
  %v73 = vunpack.c.h.b16 %v20
  %v74 = vunpack.c.l.b16 %v21
  %v75 = vunpack.c.h.b16 %v21
  %v76 = vunpack.c.l.b16 %v22
  %v77 = vunpack.c.h.b16 %v22
  %v78 = vunpack.c.l.b16 %v23
  %v79 = vunpack.c.h.b16 %v23
  %v80 = vunpack.c.l.b16 %v24
  %v81 = vunpack.c.h.b16 %v24
  %v82 = vunpack.c.l.b16 %v25
  %v83 = vunpack.c.h.b16 %v25
  %v84 = vunpack.c.l.b16 %v26
  %v85 = vunpack.c.h.b16 %v26
  %v86 = vunpack.c.l.b16 %v27
  %v87 = vunpack.c.h.b16 %v27
  %v88 = vunpack.c.l.b16 %v28
  %v89 = vunpack.c.h.b16 %v28
  %v90 = vunpack.c.l.b16 %v29
  %v91 = vunpack.c.h.b16 %v29
  %v92 = vunpack.c.l.b16 %v30
  %v93 = vunpack.c.h.b16 %v30
  %v94 = vunpack.c.l.b16 %v31
  %v95 = vunpack.c.h.b16 %v31
  %v96 = vunpack.c.l.b16 %v32
  %v97 = vunpack.c.h.b16 %v32
  %v98 = vunpack.c.l.b16 %v33
  %v99 = vunpack.c.h.b16 %v33
  %v100 = vpack.c.b16 %v72, %v68
  %v101 = vpack.c.b16 %v73, %v69
  %v102 = vpack.c.b16 %v74, %v70
  %v103 = vpack.c.b16 %v75, %v71
  %v104 = vpack.c.b16 %v80, %v76
  %v105 = vpack.c.b16 %v81, %v77
  %v106 = vpack.c.b16 %v82, %v78
  %v107 = vpack.c.b16 %v83, %v79
  %v108 = vpack.c.b16 %v88, %v84
  %v109 = vpack.c.b16 %v89, %v85
  %v110 = vpack.c.b16 %v90, %v86
  %v111 = vpack.c.b16 %v91, %v87
  %v112 = vpack.c.b16 %v96, %v92
  %v113 = vpack.c.b16 %v97, %v93
  %v114 = vpack.c.b16 %v98, %v94
  %v115 = vpack.c.b16 %v99, %v95
  %vm132 = vcmask 523264
  %v134 = vsel %vm132, %v50, 0
  %v137 = vsel %vm132, %v51, 0
  %139 = vmatpush.bf16.msra.mxu0 0
  %140 = vmatpush.bf16.msra.mxu0 0
  %141 = vmatpush.bf16.msra.mxu0 0
  %142 = vmatpush.bf16.msra.mxu0 0
  %143 = vmatpush.bf16.msra.mxu0 %v112
  %144 = vmatpush.bf16.msra.mxu0 %v108
  %145 = vmatpush.bf16.msra.mxu0 %v104
  %146 = vmatpush.bf16.msra.mxu0 %v100
  %147 = vmatmul.bf16.gmra.mxu0 %v134
  %v148 = vpop.f32.mrf.mxu0
  %v149 = vadd.f32 %v36, %v148
  %v150 = vpop.f32.mrf.mxu0
  %v151 = vadd.f32 %v36, %v150
  %152 = vmatmul.bf16.gmra.mxu0 %v137
  %v153 = vpop.f32.mrf.mxu0
  %v154 = vadd.f32 %v36, %v153
  %v155 = vpop.f32.mrf.mxu0
  %156 = vdwg.mxu0
  %157 = vmatpush.bf16.msra.mxu0 0
  %158 = vmatpush.bf16.msra.mxu0 0
  %159 = vmatpush.bf16.msra.mxu0 0
  %160 = vmatpush.bf16.msra.mxu0 0
  %161 = vmatpush.bf16.msra.mxu0 %v113
  %162 = vmatpush.bf16.msra.mxu0 %v109
  %163 = vmatpush.bf16.msra.mxu0 %v105
  %164 = vmatpush.bf16.msra.mxu0 %v101
  %165 = vmatmul.bf16.gmra.mxu0 %v134
  %v166 = vpop.f32.mrf.mxu0
  %v167 = vadd.f32 %v37, %v166
  %v168 = vpop.f32.mrf.mxu0
  %v169 = vadd.f32 %v37, %v168
  %170 = vmatmul.bf16.gmra.mxu0 %v137
  %v171 = vpop.f32.mrf.mxu0
  %v172 = vadd.f32 %v37, %v171
  %v173 = vpop.f32.mrf.mxu0
  %174 = vdwg.mxu0
  %175 = vmatpush.bf16.msra.mxu0 0
  %176 = vmatpush.bf16.msra.mxu0 0
  %177 = vmatpush.bf16.msra.mxu0 0
  %178 = vmatpush.bf16.msra.mxu0 0
  %179 = vmatpush.bf16.msra.mxu0 %v114
  %180 = vmatpush.bf16.msra.mxu0 %v110
  %181 = vmatpush.bf16.msra.mxu0 %v106
  %182 = vmatpush.bf16.msra.mxu0 %v102
  %183 = vmatmul.bf16.gmra.mxu0 %v134
  %v184 = vpop.f32.mrf.mxu0
  %v185 = vadd.f32 %v38, %v184
  %v186 = vpop.f32.mrf.mxu0
  %v187 = vadd.f32 %v38, %v186
  %188 = vmatmul.bf16.gmra.mxu0 %v137
  %v189 = vpop.f32.mrf.mxu0
  %v190 = vadd.f32 %v38, %v189
  %v191 = vpop.f32.mrf.mxu0
  %192 = vdwg.mxu0
  %193 = vmatpush.bf16.msra.mxu0 0
  %194 = vmatpush.bf16.msra.mxu0 0
  %195 = vmatpush.bf16.msra.mxu0 0
  %196 = vmatpush.bf16.msra.mxu0 0
  %197 = vmatpush.bf16.msra.mxu0 %v115
  %198 = vmatpush.bf16.msra.mxu0 %v111
  %199 = vmatpush.bf16.msra.mxu0 %v107
  %200 = vmatpush.bf16.msra.mxu0 %v103
  %201 = vmatmul.bf16.gmra.mxu0 %v134
  %v202 = vpop.f32.mrf.mxu0
  %v203 = vadd.f32 %v39, %v202
  %v204 = vpop.f32.mrf.mxu0
  %v205 = vadd.f32 %v39, %v204
  %206 = vmatmul.bf16.gmra.mxu0 %v137
  %v207 = vpop.f32.mrf.mxu0
  %v208 = vadd.f32 %v39, %v207
  %v209 = vpop.f32.mrf.mxu0
  %210 = vdwg.mxu0
  %211 = vst [vmem:[%s3] sm:$0xff] %v149
  %212 = vst [vmem:[%s3 + $0x8] sm:$0xff] %v167
  %213 = vst [vmem:[%s3 + $0x10] sm:$0xff] %v185
  %214 = vst [vmem:[%s3 + $0x18] sm:$0xff] %v203
  %215 = vst [vmem:[%s3 + $0x20] sm:$0xff] %v151
  %216 = vst [vmem:[%s3 + $0x28] sm:$0xff] %v169
  %217 = vst [vmem:[%s3 + $0x30] sm:$0xff] %v187
  %218 = vst [vmem:[%s3 + $0x38] sm:$0xff] %v205
  %219 = vst [vmem:[%s3 + $0x40] sm:$0xff] %v154
  %220 = vst [vmem:[%s3 + $0x48] sm:$0xff] %v172
  %221 = vst [vmem:[%s3 + $0x50] sm:$0xff] %v190
  %222 = vst [vmem:[%s3 + $0x58] sm:$0xff] %v208
  // Predicated region
  $region14: #{rnn_forward.18} parent=0 // pred_check
    _
  $region15: #{rnn_forward.18} parent=0 // pred_check_branch
    %224 = sbr.rel (0) target = $region17
  $region16: #{rnn_forward.18} parent=0 // pred_region
    _
  $region17: #{rnn_forward.18} parent=0 // pred_fallthru
    _
  // Predicated region
  $region18: #{rnn_forward.18} parent=0 // pred_check
    _
  $region19: #{rnn_forward.18} parent=0 // pred_check_branch
    %226 = sbr.rel (0) target = $region21
  $region20: #{rnn_forward.18} parent=0 // pred_region
    _
  $region21: #{rnn_forward.18} parent=0 // pred_fallthru
    _

// kernel: rnn_forward.16
$region0: #{rnn_forward.16}
  #allocation0 [shape = 'u32[]', space=smem, size = 0x4, offset = 0x4, fixed_abs, tag = 'smem constant byte address 0x4 - core index']
  #allocation1 [shape = 'u32[72,128]{1,0:T(1,128)}', space=vmem, size = 0x9000, scoped, tag = 'internal scratch']
  #allocation2 [shape = 'f32[2,32]{1,0:T(2,128)}', space=vmem, size = 0x400, scoped, tag = 'scratch operand']
  #allocation3 [shape = 'f32[2,32]{1,0:T(2,128)}', space=vmem, size = 0x400, scoped, tag = 'scratch operand']
  #allocation4 [shape = 'f32[2,32]{1,0:T(2,128)}', space=vmem, size = 0x400, scoped, tag = 'scratch operand']
  #allocation5 [shape = 'f32[2,32]{1,0:T(2,128)}', space=vmem, size = 0x400, scoped, tag = 'scratch operand']
  %s0 = inlined_call_operand.vmem [shape: s32[2,1], index: 0, kind: input, shape index: {}]
  %s1 = inlined_call_operand.vmem [shape: f32[9,2,512], index: 1, kind: input, shape index: {}]
  %s2 = inlined_call_operand.vmem [shape: f32[9,2,512], index: 2, kind: input, shape index: {}]
  %s3 = inlined_call_operand.vmem [shape: bf16[2,32,512], index: 3, kind: input, shape index: {}]
  %s4 = inlined_call_operand.vmem [shape: f32[9,2,32], index: 4, kind: output, shape index: {0}]
  %s5 = inlined_call_operand.vmem [shape: f32[9,2,32], index: 5, kind: output, shape index: {1}]
  %6 = xla_tuple %s4, %s5
  %s7 = sld [smem:[#allocation0]]
  $region61: #{rnn_forward.16} parent=0
    _
  %s9 = ssub.s32 1, %s7
  %s10 = scalar_select 0, %s9, %s7
  loop: start=0, step=1, limit=11
  $region2: #{rnn_forward.16} parent=0 // loop_pre_header
    _
  $region3: #{rnn_forward.16} parent=0 // loop_header
    %s12 = sphi 0, %s16
    %p13 = scmp.ge.s32.totalorder %s12, 11
    %s20 = sphi 0, %s20
    %s22 = sphi 0, %s20
    %s23 = sphi 0, %s22
    %s37 = sphi 0, %s23
    %s43 = sphi 0, %s45
    %s46 = sphi 0, %s43
    %s47 = sphi 0, %s46
    %s63 = sphi 0, %s47
    %s71 = sphi 0, %s73
    %s74 = sphi 0, %s71
    %s75 = sphi 0, %s74
    %s91 = sphi 0, %s75
    %s95 = sphi 0, %s95
    %s97 = sphi 0, %s95
    %s98 = sphi 0, %s97
    %s112 = sphi 0, %s98
    %s118 = sphi 0, %s120
    %s121 = sphi 0, %s118
    %s122 = sphi 0, %s121
    %s138 = sphi 0, %s122
    %s146 = sphi 0, %s148
    %s149 = sphi 0, %s146
    %s150 = sphi 0, %s149
    %s166 = sphi 0, %s150
  $region4: #{rnn_forward.16} parent=0 // loop_header_branch
    %15 = sbr.rel (%p13) target = $region8
  $region5: #{rnn_forward.16} parent=0 // loop_body
    %s17 = ssub.s32 %s12, 1
    %s18 = ssub.s32 %s12, 2
    %s19 = sadd.s32 %s12, 1
    %s21 = sadd.s32 %s20, 1
    %p24 = scmp.eq.s32.totalorder %s12, 8
    %p25 = scmp.ne.s32.totalorder %s20, %s22
    %p26 = scmp.eq.s32.totalorder %s12, 0
    %p27 = por %p25, %p26
    %p28 = scmp.ne.s32.totalorder %s20, %s22
    %p29 = scmp.eq.s32.totalorder %s17, 8
    %p30 = por %p28, %p29
    %p31 = scmp.ne.s32.totalorder %s22, %s23
    %p32 = scmp.eq.s32.totalorder %s17, 0
    %p33 = por %p31, %p32
    %p34 = scmp.ne.s32.totalorder %s22, %s23
    %p35 = scmp.eq.s32.totalorder %s18, 8
    %p36 = por %p34, %p35
    %p38 = scmp.ne.s32.totalorder %s23, %s37
    %p39 = scmp.eq.s32.totalorder %s18, 0
    %p40 = por %p38, %p39
    %s41 = ssub.s32 %s12, %s19
    %p42 = scmp.eq.s32.totalorder %s41, 0
    %s44 = sadd.s32 %s43, 1
    %s45 = scalar_select %p42, %s43, %s44
    %p48 = pneg %p42
    %p49 = scmp.eq.s32.totalorder %s12, 8
    %p50 = por %p48, %p49
    %p51 = scmp.ne.s32.totalorder %s43, %s46
    %p52 = scmp.eq.s32.totalorder %s12, 0
    %p53 = por %p51, %p52
    %p54 = scmp.ne.s32.totalorder %s43, %s46
    %p55 = scmp.eq.s32.totalorder %s17, 8
    %p56 = por %p54, %p55
    %p57 = scmp.ne.s32.totalorder %s46, %s47
    %p58 = scmp.eq.s32.totalorder %s17, 0
    %p59 = por %p57, %p58
    %p60 = scmp.ne.s32.totalorder %s46, %s47
    %p61 = scmp.eq.s32.totalorder %s18, 8
    %p62 = por %p60, %p61
    %p64 = scmp.ne.s32.totalorder %s47, %s63
    %p65 = scmp.eq.s32.totalorder %s18, 0
    %p66 = por %p64, %p65
    %s67 = ssub.s32 8, %s12
    %s68 = ssub.s32 8, %s19
    %s69 = ssub.s32 %s67, %s68
    %p70 = scmp.eq.s32.totalorder %s69, 0
    %s72 = sadd.s32 %s71, 1
    %s73 = scalar_select %p70, %s71, %s72
    %p76 = pneg %p70
    %p77 = scmp.eq.s32.totalorder %s12, 8
    %p78 = por %p76, %p77
    %p79 = scmp.ne.s32.totalorder %s71, %s74
    %p80 = scmp.eq.s32.totalorder %s12, 0
    %p81 = por %p79, %p80
    %p82 = scmp.ne.s32.totalorder %s71, %s74
    %p83 = scmp.eq.s32.totalorder %s17, 8
    %p84 = por %p82, %p83
    %p85 = scmp.ne.s32.totalorder %s74, %s75
    %p86 = scmp.eq.s32.totalorder %s17, 0
    %p87 = por %p85, %p86
    %p88 = scmp.ne.s32.totalorder %s74, %s75
    %p89 = scmp.eq.s32.totalorder %s18, 8
    %p90 = por %p88, %p89
    %p92 = scmp.ne.s32.totalorder %s75, %s91
    %p93 = scmp.eq.s32.totalorder %s18, 0
    %p94 = por %p92, %p93
    %s96 = sadd.s32 %s95, 1
    %p99 = scmp.eq.s32.totalorder %s12, 8
    %p100 = scmp.ne.s32.totalorder %s95, %s97
    %p101 = scmp.eq.s32.totalorder %s12, 0
    %p102 = por %p100, %p101
    %p103 = scmp.ne.s32.totalorder %s95, %s97
    %p104 = scmp.eq.s32.totalorder %s17, 8
    %p105 = por %p103, %p104
    %p106 = scmp.ne.s32.totalorder %s97, %s98
    %p107 = scmp.eq.s32.totalorder %s17, 0
    %p108 = por %p106, %p107
    %p109 = scmp.ne.s32.totalorder %s97, %s98
    %p110 = scmp.eq.s32.totalorder %s18, 8
    %p111 = por %p109, %p110
    %p113 = scmp.ne.s32.totalorder %s98, %s112
    %p114 = scmp.eq.s32.totalorder %s18, 0
    %p115 = por %p113, %p114
    %s116 = ssub.s32 %s12, %s19
    %p117 = scmp.eq.s32.totalorder %s116, 0
    %s119 = sadd.s32 %s118, 1
    %s120 = scalar_select %p117, %s118, %s119
    %p123 = pneg %p117
    %p124 = scmp.eq.s32.totalorder %s12, 8
    %p125 = por %p123, %p124
    %p126 = scmp.ne.s32.totalorder %s118, %s121
    %p127 = scmp.eq.s32.totalorder %s12, 0
    %p128 = por %p126, %p127
    %p129 = scmp.ne.s32.totalorder %s118, %s121
    %p130 = scmp.eq.s32.totalorder %s17, 8
    %p131 = por %p129, %p130
    %p132 = scmp.ne.s32.totalorder %s121, %s122
    %p133 = scmp.eq.s32.totalorder %s17, 0
    %p134 = por %p132, %p133
    %p135 = scmp.ne.s32.totalorder %s121, %s122
    %p136 = scmp.eq.s32.totalorder %s18, 8
    %p137 = por %p135, %p136
    %p139 = scmp.ne.s32.totalorder %s122, %s138
    %p140 = scmp.eq.s32.totalorder %s18, 0
    %p141 = por %p139, %p140
    %s142 = ssub.s32 8, %s12
    %s143 = ssub.s32 8, %s19
    %s144 = ssub.s32 %s142, %s143
    %p145 = scmp.eq.s32.totalorder %s144, 0
    %s147 = sadd.s32 %s146, 1
    %s148 = scalar_select %p145, %s146, %s147
    %p151 = pneg %p145
    %p152 = scmp.eq.s32.totalorder %s12, 8
    %p153 = por %p151, %p152
    %p154 = scmp.ne.s32.totalorder %s146, %s149
    %p155 = scmp.eq.s32.totalorder %s12, 0
    %p156 = por %p154, %p155
    %p157 = scmp.ne.s32.totalorder %s146, %s149
    %p158 = scmp.eq.s32.totalorder %s17, 8
    %p159 = por %p157, %p158
    %p160 = scmp.ne.s32.totalorder %s149, %s150
    %p161 = scmp.eq.s32.totalorder %s17, 0
    %p162 = por %p160, %p161
    %p163 = scmp.ne.s32.totalorder %s149, %s150
    %p164 = scmp.eq.s32.totalorder %s18, 8
    %p165 = por %p163, %p164
    %p167 = scmp.ne.s32.totalorder %s150, %s166
    %p168 = scmp.eq.s32.totalorder %s18, 0
    %p169 = por %p167, %p168
    %p170 = scmp.le.s32.totalorder 1, %s12
    %p171 = scmp.lt.s32.totalorder %s12, 10
    %p172 = pnand %p170, %p171
    %p173 = pneg %p172
    // Predicated region
    $region9: #{rnn_forward.16} parent=5 // pred_check
      _
    $region10: #{rnn_forward.16} parent=5 // pred_check_branch
      %175 = sbr.rel (%p172) target = $region12
    $region11: #{rnn_forward.16} parent=5 // pred_region
      %s176 = ssub.s32 %s12, 1
      // Predicated region
      $region13: #{rnn_forward.16} parent=11 // pred_check
        %p177 = pneg %p33
      $region14: #{rnn_forward.16} parent=11 // pred_check_branch
        %179 = sbr.rel (%p177) target = $region16
      $region15: #{rnn_forward.16} parent=11 // pred_region
        _
      $region16: #{rnn_forward.16} parent=11 // pred_fallthru
        _
      // Predicated region
      $region17: #{rnn_forward.16} parent=11 // pred_check
        %p180 = pneg %p108
      $region18: #{rnn_forward.16} parent=11 // pred_check_branch
        %182 = sbr.rel (%p180) target = $region20
      $region19: #{rnn_forward.16} parent=11 // pred_region
        _
      $region20: #{rnn_forward.16} parent=11 // pred_fallthru
        _
    $region12: #{rnn_forward.16} parent=5 // pred_fallthru
      _
    %p183 = scmp.lt.s32.totalorder %s12, 9
    // Predicated region
    $region21: #{rnn_forward.16} parent=5 // pred_check
      %p184 = pneg %p183
    $region22: #{rnn_forward.16} parent=5 // pred_check_branch
      %186 = sbr.rel (%p184) target = $region24
    $region23: #{rnn_forward.16} parent=5 // pred_region
      // Predicated region
      $region25: #{rnn_forward.16} parent=23 // pred_check
        %p187 = pneg %p53
      $region26: #{rnn_forward.16} parent=23 // pred_check_branch
        %189 = sbr.rel (%p187) target = $region28
      $region27: #{rnn_forward.16} parent=23 // pred_region
        %p190 = scmp.lt.s32.totalorder %s12, 8
        %s191 = scalar_select %p190, %s12, 8
        %s192 = smul.addr %s191, 4
        %s193 = smul.addr %s192, 2
        %s194 = scalar_lea.vmem %s1, %s193
      $region28: #{rnn_forward.16} parent=23 // pred_fallthru
        _
      // Predicated region
      $region29: #{rnn_forward.16} parent=23 // pred_check
        %p195 = pneg %p81
      $region30: #{rnn_forward.16} parent=23 // pred_check_branch
        %197 = sbr.rel (%p195) target = $region32
      $region31: #{rnn_forward.16} parent=23 // pred_region
        %s198 = ssub.s32 8, %s12
        %p199 = scmp.lt.s32.totalorder %s198, 8
        %s200 = scalar_select %p199, %s198, 8
        %s201 = smul.addr %s200, 4
        %s202 = smul.addr %s201, 2
        %s203 = scalar_lea.vmem %s2, %s202
        %s204 = ssub.s32 8, %s12
      $region32: #{rnn_forward.16} parent=23 // pred_fallthru
        _
    $region24: #{rnn_forward.16} parent=5 // pred_fallthru
      _
    %p205 = scmp.le.s32.totalorder 1, %s12
    %p206 = scmp.lt.s32.totalorder %s12, 10
    %p207 = pnand %p205, %p206
    %p208 = pneg %p207
    // Predicated region
    $region33: #{rnn_forward.16} parent=5 // pred_check
      _
    $region34: #{rnn_forward.16} parent=5 // pred_check_branch
      %210 = sbr.rel (%p207) target = $region36
    $region35: #{rnn_forward.16} parent=5 // pred_region
      %s211 = ssub.s32 %s12, 1
      %p212 = pneg %p33
      %p213 = pneg %p30
      %p214 = scmp.lt.s32.totalorder %s17, 8
      %s215 = scalar_select %p214, %s17, 8
      %s216 = smul.addr %s215, 4
      %s217 = smul.addr %s216, 2
      %s218 = scalar_lea.vmem %s1, %s217
      %p219 = pneg %p59
      %p220 = pneg %p56
      %s221 = ssub.s32 8, %s17
      %p222 = scmp.lt.s32.totalorder %s221, 8
      %s223 = scalar_select %p222, %s221, 8
      %s224 = smul.addr %s223, 4
      %s225 = smul.addr %s224, 2
      %s226 = scalar_lea.vmem %s2, %s225
      %p227 = pneg %p87
      %p228 = pneg %p84
      %p229 = pneg %p108
      %p230 = pneg %p105
      %p231 = pneg %p134
      %p232 = pneg %p131
      %p233 = scmp.lt.s32.totalorder %s17, 8
      %s234 = scalar_select %p233, %s17, 8
      %s235 = smul.addr %s234, 2
      %s236 = scalar_lea.vmem %s4, %s235
      %p237 = pneg %p162
      %p238 = pneg %p159
      %s239 = ssub.s32 8, %s17
      %p240 = scmp.lt.s32.totalorder %s239, 8
      %s241 = scalar_select %p240, %s239, 8
      %s242 = smul.addr %s241, 2
      %s243 = scalar_lea.vmem %s5, %s242
      %p244 = scmp.lt.s32.totalorder %s17, 8
      %s245 = scalar_select %p244, %s17, 8
      %s246 = smul.addr %s245, 4
      %s247 = smul.addr %s246, 2
      %s248 = scalar_lea.vmem %s1, %s247
      %s249 = ssub.s32 8, %s17
      %p250 = scmp.lt.s32.totalorder %s249, 8
      %s251 = scalar_select %p250, %s249, 8
      %s252 = smul.addr %s251, 4
      %s253 = smul.addr %s252, 2
      %s254 = scalar_lea.vmem %s2, %s253
      %s255 = ssub.s32 8, %s17
      %p256 = scmp.lt.s32.totalorder %s17, 8
      %s257 = scalar_select %p256, %s17, 8
      %s258 = smul.addr %s257, 2
      %s259 = scalar_lea.vmem %s4, %s258
      %s260 = ssub.s32 8, %s17
      %p261 = scmp.lt.s32.totalorder %s260, 8
      %s262 = scalar_select %p261, %s260, 8
      %s263 = smul.addr %s262, 2
      %s264 = scalar_lea.vmem %s5, %s263
      %s265 = ssub.s32 8, %s17
      %p267 = scmp.eq.s32.totalorder %s17, 0
      // Predicated region
      $region37: #{rnn_forward.16} parent=35 // pred_check
        %p268 = pneg %p267
      $region38: #{rnn_forward.16} parent=35 // pred_check_branch
        %270 = sbr.rel (%p268) target = $region40
      $region39: #{rnn_forward.16} parent=35 // pred_region
        %vm271 = vcmask 254976
        %272 = vst.msk [vmem:[#allocation2] sm:$0x3] %vm271, 0.0
        %273 = vst.msk [vmem:[#allocation3] sm:$0x3] %vm271, 0.0
        %274 = vst.msk [vmem:[#allocation4] sm:$0x3] %vm271, 0.0
        %275 = vst.msk [vmem:[#allocation5] sm:$0x3] %vm271, 0.0
      $region40: #{rnn_forward.16} parent=35 // pred_fallthru
        _
      %v276 = vld [vmem:[%s0] sm:$0x3]
      %v277 = vld [vmem:[%s248] sm:$0xff]
      %v278 = vld [vmem:[%s3] sm:$0xff]
      %v279 = vld [vmem:[%s3 + $0x8] sm:$0xff]
      %v280 = vld [vmem:[%s3 + $0x10] sm:$0xff]
      %v281 = vld [vmem:[%s3 + $0x18] sm:$0xff]
      %v282 = vld [vmem:[%s3 + $0x20] sm:$0xff]
      %v283 = vld [vmem:[%s3 + $0x28] sm:$0xff]
      %v284 = vld [vmem:[%s3 + $0x30] sm:$0xff]
      %v285 = vld [vmem:[%s3 + $0x38] sm:$0xff]
      %v286 = vstv %s17
      %vm287 = vcmp.lt.s32.totalorder %v286, %v276
      %v288 = vld [vmem:[#allocation2] sm:$0x3]
      %v289 = vld [vmem:[#allocation3] sm:$0x3]
      %v290 = vpack.c.bf16 %v288, %v288
      %v299 = vunpack.c.l.b16 %v278
      %v300 = vunpack.c.h.b16 %v278
      %v301 = vunpack.c.l.b16 %v279
      %v302 = vunpack.c.h.b16 %v279
      %v303 = vunpack.c.l.b16 %v280
      %v304 = vunpack.c.h.b16 %v280
      %v305 = vunpack.c.l.b16 %v281
      %v306 = vunpack.c.h.b16 %v281
      %v307 = vunpack.c.l.b16 %v282
      %v308 = vunpack.c.h.b16 %v282
      %v309 = vunpack.c.l.b16 %v283
      %v310 = vunpack.c.h.b16 %v283
      %v311 = vunpack.c.l.b16 %v284
      %v312 = vunpack.c.h.b16 %v284
      %v313 = vunpack.c.l.b16 %v285
      %v314 = vunpack.c.h.b16 %v285
      %v315 = vpack.c.b16 %v303, %v299
      %v316 = vpack.c.b16 %v304, %v300
      %v317 = vpack.c.b16 %v305, %v301
      %v318 = vpack.c.b16 %v306, %v302
      %v319 = vpack.c.b16 %v311, %v307
      %v320 = vpack.c.b16 %v312, %v308
      %v321 = vpack.c.b16 %v313, %v309
      %v322 = vpack.c.b16 %v314, %v310
      %vm331 = vcmask 261120
      %v333 = vsel %vm331, %v290, 0
      %335 = vmatpush.bf16.msra.mxu0 0
      %336 = vmatpush.bf16.msra.mxu0 0
      %337 = vmatpush.bf16.msra.mxu0 0
      %338 = vmatpush.bf16.msra.mxu0 0
      %339 = vmatpush.bf16.msra.mxu0 0
      %340 = vmatpush.bf16.msra.mxu0 0
      %341 = vmatpush.bf16.msra.mxu0 %v319
      %342 = vmatpush.bf16.msra.mxu0 %v315
      %343 = vmatmul.bf16.gmra.mxu0 %v333
      %v344 = vpop.f32.mrf.mxu0
      %v345 = vadd.f32 0.0, %v344
      %v346 = vpop.f32.mrf.mxu0
      %347 = vdwg.mxu0
      %348 = vmatpush.bf16.msra.mxu0 0
      %349 = vmatpush.bf16.msra.mxu0 0
      %350 = vmatpush.bf16.msra.mxu0 0
      %351 = vmatpush.bf16.msra.mxu0 0
      %352 = vmatpush.bf16.msra.mxu0 0
      %353 = vmatpush.bf16.msra.mxu0 0
      %354 = vmatpush.bf16.msra.mxu0 %v320
      %355 = vmatpush.bf16.msra.mxu0 %v316
      %356 = vmatmul.bf16.gmra.mxu0 %v333
      %v357 = vpop.f32.mrf.mxu0
      %v358 = vadd.f32 0.0, %v357
      %v359 = vpop.f32.mrf.mxu0
      %360 = vdwg.mxu0
      %361 = vmatpush.bf16.msra.mxu0 0
      %362 = vmatpush.bf16.msra.mxu0 0
      %363 = vmatpush.bf16.msra.mxu0 0
      %364 = vmatpush.bf16.msra.mxu0 0
      %365 = vmatpush.bf16.msra.mxu0 0
      %366 = vmatpush.bf16.msra.mxu0 0
      %367 = vmatpush.bf16.msra.mxu0 %v321
      %368 = vmatpush.bf16.msra.mxu0 %v317
      %369 = vmatmul.bf16.gmra.mxu0 %v333
      %v370 = vpop.f32.mrf.mxu0
      %v371 = vadd.f32 0.0, %v370
      %v372 = vpop.f32.mrf.mxu0
      %373 = vdwg.mxu0
      %374 = vmatpush.bf16.msra.mxu0 0
      %375 = vmatpush.bf16.msra.mxu0 0
      %376 = vmatpush.bf16.msra.mxu0 0
      %377 = vmatpush.bf16.msra.mxu0 0
      %378 = vmatpush.bf16.msra.mxu0 0
      %379 = vmatpush.bf16.msra.mxu0 0
      %380 = vmatpush.bf16.msra.mxu0 %v322
      %381 = vmatpush.bf16.msra.mxu0 %v318
      %382 = vmatmul.bf16.gmra.mxu0 %v333
      %v383 = vpop.f32.mrf.mxu0
      %v384 = vadd.f32 0.0, %v383
      %v385 = vpop.f32.mrf.mxu0
      %386 = vdwg.mxu0
      %v391 = vrot.slane %v358, 6
      %v392 = vrot.slane %v371, 4
      %v393 = vrot.slane %v384, 2
      %vm394 = vcmask 1041408
      %v395 = vsel %vm394, %v345, %v391
      %vm396 = vcmask 1045508
      %v397 = vsel %vm396, %v392, %v393
      %vm398 = vcmask 1043456
      %v399 = vsel %vm398, %v395, %v397
      %v401 = vadd.f32 %v277, %v399
      %v402 = vxor.u32 %v401, 2147483648
      %v403 = vmul.f32 %v402, 1.442695
      %v404 = vpow.pop %v403
      %v405 = vadd.f32 %v404, 1.0
      %v406 = vrcp.pop %v405
      %v407 = vmul.f32 %v405, %v406
      %v408 = vsub.f32 1.0, %v407
      %v409 = vmul.f32 %v406, %v408
      %v410 = vadd.f32 %v406, %v409
      %vm411 = vweird.f32 %v405
      %vm412 = vweird.f32 %v406
      %vm413 = vmor %vm411, %vm412
      %v414 = vsel %vm413, %v406, %v410
      %v415 = vand.u32 2147483647, %v405
      %vm416 = vcmp.eq.f32.partialorder %v415, 8.507059e+37
      %v417 = vand.u32 %v405, 2147483648
      %v418 = vor.u32 1.1754944e-38, %v417
      %v419 = vsel %vm416, %v418, %v414
      %v420 = vmul.f32 1.0, %v419
      %v422 = vrot.slane %v401, 2
      %v424 = vxor.u32 %v422, 2147483648
      %v425 = vmul.f32 %v424, 1.442695
      %v426 = vpow.pop %v425
      %v427 = vadd.f32 %v426, 1.0
      %v428 = vrcp.pop %v427
      %v429 = vmul.f32 %v427, %v428
      %v430 = vsub.f32 1.0, %v429
      %v431 = vmul.f32 %v428, %v430
      %v432 = vadd.f32 %v428, %v431
      %vm433 = vweird.f32 %v427
      %vm434 = vweird.f32 %v428
      %vm435 = vmor %vm433, %vm434
      %v436 = vsel %vm435, %v428, %v432
      %v437 = vand.u32 2147483647, %v427
      %vm438 = vcmp.eq.f32.partialorder %v437, 8.507059e+37
      %v439 = vand.u32 %v427, 2147483648
      %v440 = vor.u32 1.1754944e-38, %v439
      %v441 = vsel %vm438, %v440, %v436
      %v442 = vmul.f32 1.0, %v441
      %v443 = vrot.slane %v401, 4
      %v445 = vtanh.pop %v443
      %v446 = vrot.slane %v401, 6
      %v448 = vxor.u32 %v446, 2147483648
      %v449 = vmul.f32 %v448, 1.442695
      %v450 = vpow.pop %v449
      %v451 = vadd.f32 %v450, 1.0
      %v452 = vrcp.pop %v451
      %v453 = vmul.f32 %v451, %v452
      %v454 = vsub.f32 1.0, %v453
      %v455 = vmul.f32 %v452, %v454
      %v456 = vadd.f32 %v452, %v455
      %vm457 = vweird.f32 %v451
      %vm458 = vweird.f32 %v452
      %vm459 = vmor %vm457, %vm458
      %v460 = vsel %vm459, %v452, %v456
      %v461 = vand.u32 2147483647, %v451
      %vm462 = vcmp.eq.f32.partialorder %v461, 8.507059e+37
      %v463 = vand.u32 %v451, 2147483648
      %v464 = vor.u32 1.1754944e-38, %v463
      %v465 = vsel %vm462, %v464, %v460
      %v466 = vmul.f32 1.0, %v465
      %v467 = vmul.f32 %v420, %v445
      %v468 = vmul.f32 %v442, %v289
      %v469 = vadd.f32 %v467, %v468
      %v470 = vtanh.pop %v469
      %v471 = vmul.f32 %v466, %v470
      %v472 = vsel %vm287, 1, 0
      %473 = vset.pattern.permute.xlu0 0
      %474 = vperm.xlu0 %473, %v472
      %v475 = vpop.permute.xlu0 %474
      %vm476 = vcmp.eq.s32.totalorder %v475, 1
      %v477 = vsel %vm476, %v471, 0.0
      %vm478 = vcmask 254976
      %479 = vst.msk [vmem:[%s259] sm:$0x3] %vm478, %v477
      %v480 = vsel %vm476, %v471, %v288
      %481 = vst.msk [vmem:[#allocation2] sm:$0x3] %vm478, %v480
      %v482 = vsel %vm476, %v469, %v289
      %483 = vst.msk [vmem:[#allocation3] sm:$0x3] %vm478, %v482
      %v484 = vld [vmem:[%s254] sm:$0xff]
      %s485 = scalar_lea.vmem %s3, 64
      %v486 = vld [vmem:[%s485] sm:$0xff]
      %v487 = vld [vmem:[%s485 + $0x8] sm:$0xff]
      %v488 = vld [vmem:[%s485 + $0x10] sm:$0xff]
      %v489 = vld [vmem:[%s485 + $0x18] sm:$0xff]
      %v490 = vld [vmem:[%s485 + $0x20] sm:$0xff]
      %v491 = vld [vmem:[%s485 + $0x28] sm:$0xff]
      %v492 = vld [vmem:[%s485 + $0x30] sm:$0xff]
      %v493 = vld [vmem:[%s485 + $0x38] sm:$0xff]
      %s494 = ssub.s32 8, %s17
      %v495 = vstv %s494
      %vm496 = vcmp.lt.s32.totalorder %v495, %v276
      %v497 = vld [vmem:[#allocation4] sm:$0x3]
      %v498 = vld [vmem:[#allocation5] sm:$0x3]
      %v499 = vpack.c.bf16 %v497, %v497
      %v508 = vunpack.c.l.b16 %v486
      %v509 = vunpack.c.h.b16 %v486
      %v510 = vunpack.c.l.b16 %v487
      %v511 = vunpack.c.h.b16 %v487
      %v512 = vunpack.c.l.b16 %v488
      %v513 = vunpack.c.h.b16 %v488
      %v514 = vunpack.c.l.b16 %v489
      %v515 = vunpack.c.h.b16 %v489
      %v516 = vunpack.c.l.b16 %v490
      %v517 = vunpack.c.h.b16 %v490
      %v518 = vunpack.c.l.b16 %v491
      %v519 = vunpack.c.h.b16 %v491
      %v520 = vunpack.c.l.b16 %v492
      %v521 = vunpack.c.h.b16 %v492
      %v522 = vunpack.c.l.b16 %v493
      %v523 = vunpack.c.h.b16 %v493
      %v524 = vpack.c.b16 %v512, %v508
      %v525 = vpack.c.b16 %v513, %v509
      %v526 = vpack.c.b16 %v514, %v510
      %v527 = vpack.c.b16 %v515, %v511
      %v528 = vpack.c.b16 %v520, %v516
      %v529 = vpack.c.b16 %v521, %v517
      %v530 = vpack.c.b16 %v522, %v518
      %v531 = vpack.c.b16 %v523, %v519
      %v541 = vsel %vm331, %v499, 0
      %543 = vmatpush.bf16.msra.mxu0 0
      %544 = vmatpush.bf16.msra.mxu0 0
      %545 = vmatpush.bf16.msra.mxu0 0
      %546 = vmatpush.bf16.msra.mxu0 0
      %547 = vmatpush.bf16.msra.mxu0 0
      %548 = vmatpush.bf16.msra.mxu0 0
      %549 = vmatpush.bf16.msra.mxu0 %v528
      %550 = vmatpush.bf16.msra.mxu0 %v524
      %551 = vmatmul.bf16.gmra.mxu0 %v541
      %v552 = vpop.f32.mrf.mxu0
      %v553 = vadd.f32 0.0, %v552
      %v554 = vpop.f32.mrf.mxu0
      %555 = vdwg.mxu0
      %556 = vmatpush.bf16.msra.mxu0 0
      %557 = vmatpush.bf16.msra.mxu0 0
      %558 = vmatpush.bf16.msra.mxu0 0
      %559 = vmatpush.bf16.msra.mxu0 0
      %560 = vmatpush.bf16.msra.mxu0 0
      %561 = vmatpush.bf16.msra.mxu0 0
      %562 = vmatpush.bf16.msra.mxu0 %v529
      %563 = vmatpush.bf16.msra.mxu0 %v525
      %564 = vmatmul.bf16.gmra.mxu0 %v541
      %v565 = vpop.f32.mrf.mxu0
      %v566 = vadd.f32 0.0, %v565
      %v567 = vpop.f32.mrf.mxu0
      %568 = vdwg.mxu0
      %569 = vmatpush.bf16.msra.mxu0 0
      %570 = vmatpush.bf16.msra.mxu0 0
      %571 = vmatpush.bf16.msra.mxu0 0
      %572 = vmatpush.bf16.msra.mxu0 0
      %573 = vmatpush.bf16.msra.mxu0 0
      %574 = vmatpush.bf16.msra.mxu0 0
      %575 = vmatpush.bf16.msra.mxu0 %v530
      %576 = vmatpush.bf16.msra.mxu0 %v526
      %577 = vmatmul.bf16.gmra.mxu0 %v541
      %v578 = vpop.f32.mrf.mxu0
      %v579 = vadd.f32 0.0, %v578
      %v580 = vpop.f32.mrf.mxu0
      %581 = vdwg.mxu0
      %582 = vmatpush.bf16.msra.mxu0 0
      %583 = vmatpush.bf16.msra.mxu0 0
      %584 = vmatpush.bf16.msra.mxu0 0
      %585 = vmatpush.bf16.msra.mxu0 0
      %586 = vmatpush.bf16.msra.mxu0 0
      %587 = vmatpush.bf16.msra.mxu0 0
      %588 = vmatpush.bf16.msra.mxu0 %v531
      %589 = vmatpush.bf16.msra.mxu0 %v527
      %590 = vmatmul.bf16.gmra.mxu0 %v541
      %v591 = vpop.f32.mrf.mxu0
      %v592 = vadd.f32 0.0, %v591
      %v593 = vpop.f32.mrf.mxu0
      %594 = vdwg.mxu0
      %v599 = vrot.slane %v566, 6
      %v600 = vrot.slane %v579, 4
      %v601 = vrot.slane %v592, 2
      %v602 = vsel %vm394, %v553, %v599
      %v603 = vsel %vm396, %v600, %v601
      %v604 = vsel %vm398, %v602, %v603
      %v606 = vadd.f32 %v484, %v604
      %v607 = vxor.u32 %v606, 2147483648
      %v608 = vmul.f32 %v607, 1.442695
      %v609 = vpow.pop %v608
      %v610 = vadd.f32 %v609, 1.0
      %v611 = vrcp.pop %v610
      %v612 = vmul.f32 %v610, %v611
      %v613 = vsub.f32 1.0, %v612
      %v614 = vmul.f32 %v611, %v613
      %v615 = vadd.f32 %v611, %v614
      %vm616 = vweird.f32 %v610
      %vm617 = vweird.f32 %v611
      %vm618 = vmor %vm616, %vm617
      %v619 = vsel %vm618, %v611, %v615
      %v620 = vand.u32 2147483647, %v610
      %vm621 = vcmp.eq.f32.partialorder %v620, 8.507059e+37
      %v622 = vand.u32 %v610, 2147483648
      %v623 = vor.u32 1.1754944e-38, %v622
      %v624 = vsel %vm621, %v623, %v619
      %v625 = vmul.f32 1.0, %v624
      %v627 = vrot.slane %v606, 2
      %v629 = vxor.u32 %v627, 2147483648
      %v630 = vmul.f32 %v629, 1.442695
      %v631 = vpow.pop %v630
      %v632 = vadd.f32 %v631, 1.0
      %v633 = vrcp.pop %v632
      %v634 = vmul.f32 %v632, %v633
      %v635 = vsub.f32 1.0, %v634
      %v636 = vmul.f32 %v633, %v635
      %v637 = vadd.f32 %v633, %v636
      %vm638 = vweird.f32 %v632
      %vm639 = vweird.f32 %v633
      %vm640 = vmor %vm638, %vm639
      %v641 = vsel %vm640, %v633, %v637
      %v642 = vand.u32 2147483647, %v632
      %vm643 = vcmp.eq.f32.partialorder %v642, 8.507059e+37
      %v644 = vand.u32 %v632, 2147483648
      %v645 = vor.u32 1.1754944e-38, %v644
      %v646 = vsel %vm643, %v645, %v641
      %v647 = vmul.f32 1.0, %v646
      %v648 = vrot.slane %v606, 4
      %v650 = vtanh.pop %v648
      %v651 = vrot.slane %v606, 6
      %v653 = vxor.u32 %v651, 2147483648
      %v654 = vmul.f32 %v653, 1.442695
      %v655 = vpow.pop %v654
      %v656 = vadd.f32 %v655, 1.0
      %v657 = vrcp.pop %v656
      %v658 = vmul.f32 %v656, %v657
      %v659 = vsub.f32 1.0, %v658
      %v660 = vmul.f32 %v657, %v659
      %v661 = vadd.f32 %v657, %v660
      %vm662 = vweird.f32 %v656
      %vm663 = vweird.f32 %v657
      %vm664 = vmor %vm662, %vm663
      %v665 = vsel %vm664, %v657, %v661
      %v666 = vand.u32 2147483647, %v656
      %vm667 = vcmp.eq.f32.partialorder %v666, 8.507059e+37
      %v668 = vand.u32 %v656, 2147483648
      %v669 = vor.u32 1.1754944e-38, %v668
      %v670 = vsel %vm667, %v669, %v665
      %v671 = vmul.f32 1.0, %v670
      %v672 = vmul.f32 %v625, %v650
      %v673 = vmul.f32 %v647, %v498
      %v674 = vadd.f32 %v672, %v673
      %v675 = vtanh.pop %v674
      %v676 = vmul.f32 %v671, %v675
      %v677 = vsel %vm496, 1, 0
      %678 = vset.pattern.permute.xlu0 0
      %679 = vperm.xlu0 %678, %v677
      %v680 = vpop.permute.xlu0 %679
      %vm681 = vcmp.eq.s32.totalorder %v680, 1
      %v682 = vsel %vm681, %v676, 0.0
      %683 = vst.msk [vmem:[%s264] sm:$0x3] %vm478, %v682
      %v684 = vsel %vm681, %v676, %v497
      %685 = vst.msk [vmem:[#allocation4] sm:$0x3] %vm478, %v684
      %v686 = vsel %vm681, %v674, %v498
      %687 = vst.msk [vmem:[#allocation5] sm:$0x3] %vm478, %v686
      %p688 = scmp.lt.s32.totalorder %s17, 8
      %s689 = scalar_select %p688, %s17, 8
      %s690 = smul.addr %s689, 2
      %s691 = scalar_lea.vmem %s4, %s690
      %s692 = ssub.s32 8, %s17
      %p693 = scmp.lt.s32.totalorder %s692, 8
      %s694 = scalar_select %p693, %s692, 8
      %s695 = smul.addr %s694, 2
      %s696 = scalar_lea.vmem %s5, %s695
      // Predicated region
      $region41: #{rnn_forward.16} parent=35 // pred_check
        %p697 = pneg %p131
      $region42: #{rnn_forward.16} parent=35 // pred_check_branch
        %699 = sbr.rel (%p697) target = $region44
      $region43: #{rnn_forward.16} parent=35 // pred_region
        _
      $region44: #{rnn_forward.16} parent=35 // pred_fallthru
        _
      // Predicated region
      $region45: #{rnn_forward.16} parent=35 // pred_check
        %p700 = pneg %p159
      $region46: #{rnn_forward.16} parent=35 // pred_check_branch
        %702 = sbr.rel (%p700) target = $region48
      $region47: #{rnn_forward.16} parent=35 // pred_region
        %s703 = ssub.s32 8, %s17
      $region48: #{rnn_forward.16} parent=35 // pred_fallthru
        _
    $region36: #{rnn_forward.16} parent=5 // pred_fallthru
      _
    %p704 = scmp.le.s32.totalorder 2, %s12
    // Predicated region
    $region49: #{rnn_forward.16} parent=5 // pred_check
      %p705 = pneg %p704
    $region50: #{rnn_forward.16} parent=5 // pred_check_branch
      %707 = sbr.rel (%p705) target = $region52
    $region51: #{rnn_forward.16} parent=5 // pred_region
      %s708 = ssub.s32 %s12, 2
      // Predicated region
      $region53: #{rnn_forward.16} parent=51 // pred_check
        %p709 = pneg %p137
      $region54: #{rnn_forward.16} parent=51 // pred_check_branch
        %711 = sbr.rel (%p709) target = $region56
      $region55: #{rnn_forward.16} parent=51 // pred_region
        %p712 = scmp.lt.s32.totalorder %s18, 8
        %s713 = scalar_select %p712, %s18, 8
        %s714 = smul.addr %s713, 2
        %s715 = scalar_lea.vmem %s4, %s714
      $region56: #{rnn_forward.16} parent=51 // pred_fallthru
        _
      // Predicated region
      $region57: #{rnn_forward.16} parent=51 // pred_check
        %p716 = pneg %p165
      $region58: #{rnn_forward.16} parent=51 // pred_check_branch
        %718 = sbr.rel (%p716) target = $region60
      $region59: #{rnn_forward.16} parent=51 // pred_region
        %s719 = ssub.s32 8, %s18
        %p720 = scmp.lt.s32.totalorder %s719, 8
        %s721 = scalar_select %p720, %s719, 8
        %s722 = smul.addr %s721, 2
        %s723 = scalar_lea.vmem %s5, %s722
      $region60: #{rnn_forward.16} parent=51 // pred_fallthru
        _
    $region52: #{rnn_forward.16} parent=5 // pred_fallthru
      _
  $region6: #{rnn_forward.16} parent=0 // loop_footer
    %s16 = sadd.s32 1, %s12
  $region7: #{rnn_forward.16} parent=0 // loop_footer_branch
    %11 = sbr.rel target = $region3
  $region8: #{rnn_forward.16} parent=0 // loop_exit
    _

// kernel: rnn_forward.20
$region0: #{rnn_forward.20}
  #allocation0 [shape = 'u32[]', space=smem, size = 0x4, offset = 0x4, fixed_abs, tag = 'smem constant byte address 0x4 - core index']
  #allocation1 [shape = 'u32[72,128]{1,0:T(1,128)}', space=vmem, size = 0x9000, scoped, tag = 'internal scratch']
  %s0 = inlined_call_operand.vmem [shape: bf16[24,64], index: 0, kind: input, shape index: {}]
  %s1 = inlined_call_operand.vmem [shape: bf16[64,512], index: 1, kind: input, shape index: {}]
  %s2 = inlined_call_operand.vmem [shape: f32[1,512], index: 2, kind: input, shape index: {}]
  %s3 = inlined_call_operand.vmem [shape: f32[24,512], index: 3, kind: output, shape index: {}]
  %s4 = sld [smem:[#allocation0]]
  $region22: #{rnn_forward.20} parent=0
    _
  %s6 = ssub.s32 1, %s4
  %s7 = scalar_select 0, %s6, %s4
  // Predicated region
  $region2: #{rnn_forward.20} parent=0 // pred_check
    _
  $region3: #{rnn_forward.20} parent=0 // pred_check_branch
    %9 = sbr.rel (0) target = $region5
  $region4: #{rnn_forward.20} parent=0 // pred_region
    _
  $region5: #{rnn_forward.20} parent=0 // pred_fallthru
    _
  // Predicated region
  $region6: #{rnn_forward.20} parent=0 // pred_check
    _
  $region7: #{rnn_forward.20} parent=0 // pred_check_branch
    %11 = sbr.rel (0) target = $region9
  $region8: #{rnn_forward.20} parent=0 // pred_region
    _
  $region9: #{rnn_forward.20} parent=0 // pred_fallthru
    _
  // Predicated region
  $region10: #{rnn_forward.20} parent=0 // pred_check
    _
  $region11: #{rnn_forward.20} parent=0 // pred_check_branch
    %13 = sbr.rel (0) target = $region13
  $region12: #{rnn_forward.20} parent=0 // pred_region
    _
  $region13: #{rnn_forward.20} parent=0 // pred_fallthru
    _
  %v15 = vld [vmem:[%s0] sm:$0xf]
  %v16 = vld [vmem:[%s0 + $0x4] sm:$0xf]
  %v17 = vld [vmem:[%s0 + $0x8] sm:$0xf]
  %v18 = vld [vmem:[%s1] sm:$0xff]
  %v19 = vld [vmem:[%s1 + $0x8] sm:$0xff]
  %v20 = vld [vmem:[%s1 + $0x10] sm:$0xff]
  %v21 = vld [vmem:[%s1 + $0x18] sm:$0xff]
  %v22 = vld [vmem:[%s1 + $0x20] sm:$0xff]
  %v23 = vld [vmem:[%s1 + $0x28] sm:$0xff]
  %v24 = vld [vmem:[%s1 + $0x30] sm:$0xff]
  %v25 = vld [vmem:[%s1 + $0x38] sm:$0xff]
  %v26 = vld [vmem:[%s1 + $0x40] sm:$0xff]
  %v27 = vld [vmem:[%s1 + $0x48] sm:$0xff]
  %v28 = vld [vmem:[%s1 + $0x50] sm:$0xff]
  %v29 = vld [vmem:[%s1 + $0x58] sm:$0xff]
  %v30 = vld [vmem:[%s1 + $0x60] sm:$0xff]
  %v31 = vld [vmem:[%s1 + $0x68] sm:$0xff]
  %v32 = vld [vmem:[%s1 + $0x70] sm:$0xff]
  %v33 = vld [vmem:[%s1 + $0x78] sm:$0xff]
  %v34 = vld [vmem:[%s2] sm:$0xf]
  %v36 = vperm.slane %v34, 0
  %v37 = vperm.slane %v34, 1
  %v38 = vperm.slane %v34, 2
  %v39 = vperm.slane %v34, 3
  %v47 = vunpack.c.l.b16 %v15
  %v48 = vunpack.c.l.b16 %v16
  %v49 = vunpack.c.l.b16 %v17
  %v50 = vpack.c.b16 %v48, %v47
  %v51 = vpack.c.b16 %v49, %v49
  %v68 = vunpack.c.l.b16 %v18
  %v69 = vunpack.c.h.b16 %v18
  %v70 = vunpack.c.l.b16 %v19
  %v71 = vunpack.c.h.b16 %v19
  %v72 = vunpack.c.l.b16 %v20
  %v73 = vunpack.c.h.b16 %v20
  %v74 = vunpack.c.l.b16 %v21
  %v75 = vunpack.c.h.b16 %v21
  %v76 = vunpack.c.l.b16 %v22
  %v77 = vunpack.c.h.b16 %v22
  %v78 = vunpack.c.l.b16 %v23
  %v79 = vunpack.c.h.b16 %v23
  %v80 = vunpack.c.l.b16 %v24
  %v81 = vunpack.c.h.b16 %v24
  %v82 = vunpack.c.l.b16 %v25
  %v83 = vunpack.c.h.b16 %v25
  %v84 = vunpack.c.l.b16 %v26
  %v85 = vunpack.c.h.b16 %v26
  %v86 = vunpack.c.l.b16 %v27
  %v87 = vunpack.c.h.b16 %v27
  %v88 = vunpack.c.l.b16 %v28
  %v89 = vunpack.c.h.b16 %v28
  %v90 = vunpack.c.l.b16 %v29
  %v91 = vunpack.c.h.b16 %v29
  %v92 = vunpack.c.l.b16 %v30
  %v93 = vunpack.c.h.b16 %v30
  %v94 = vunpack.c.l.b16 %v31
  %v95 = vunpack.c.h.b16 %v31
  %v96 = vunpack.c.l.b16 %v32
  %v97 = vunpack.c.h.b16 %v32
  %v98 = vunpack.c.l.b16 %v33
  %v99 = vunpack.c.h.b16 %v33
  %v100 = vpack.c.b16 %v72, %v68
  %v101 = vpack.c.b16 %v73, %v69
  %v102 = vpack.c.b16 %v74, %v70
  %v103 = vpack.c.b16 %v75, %v71
  %v104 = vpack.c.b16 %v80, %v76
  %v105 = vpack.c.b16 %v81, %v77
  %v106 = vpack.c.b16 %v82, %v78
  %v107 = vpack.c.b16 %v83, %v79
  %v108 = vpack.c.b16 %v88, %v84
  %v109 = vpack.c.b16 %v89, %v85
  %v110 = vpack.c.b16 %v90, %v86
  %v111 = vpack.c.b16 %v91, %v87
  %v112 = vpack.c.b16 %v96, %v92
  %v113 = vpack.c.b16 %v97, %v93
  %v114 = vpack.c.b16 %v98, %v94
  %v115 = vpack.c.b16 %v99, %v95
  %vm132 = vcmask 523264
  %v134 = vsel %vm132, %v50, 0
  %v137 = vsel %vm132, %v51, 0
  %139 = vmatpush.bf16.msra.mxu0 0
  %140 = vmatpush.bf16.msra.mxu0 0
  %141 = vmatpush.bf16.msra.mxu0 0
  %142 = vmatpush.bf16.msra.mxu0 0
  %143 = vmatpush.bf16.msra.mxu0 %v112
  %144 = vmatpush.bf16.msra.mxu0 %v108
  %145 = vmatpush.bf16.msra.mxu0 %v104
  %146 = vmatpush.bf16.msra.mxu0 %v100
  %147 = vmatmul.bf16.gmra.mxu0 %v134
  %v148 = vpop.f32.mrf.mxu0
  %v149 = vadd.f32 %v36, %v148
  %v150 = vpop.f32.mrf.mxu0
  %v151 = vadd.f32 %v36, %v150
  %152 = vmatmul.bf16.gmra.mxu0 %v137
  %v153 = vpop.f32.mrf.mxu0
  %v154 = vadd.f32 %v36, %v153
  %v155 = vpop.f32.mrf.mxu0
  %156 = vdwg.mxu0
  %157 = vmatpush.bf16.msra.mxu0 0
  %158 = vmatpush.bf16.msra.mxu0 0
  %159 = vmatpush.bf16.msra.mxu0 0
  %160 = vmatpush.bf16.msra.mxu0 0
  %161 = vmatpush.bf16.msra.mxu0 %v113
  %162 = vmatpush.bf16.msra.mxu0 %v109
  %163 = vmatpush.bf16.msra.mxu0 %v105
  %164 = vmatpush.bf16.msra.mxu0 %v101
  %165 = vmatmul.bf16.gmra.mxu0 %v134
  %v166 = vpop.f32.mrf.mxu0
  %v167 = vadd.f32 %v37, %v166
  %v168 = vpop.f32.mrf.mxu0
  %v169 = vadd.f32 %v37, %v168
  %170 = vmatmul.bf16.gmra.mxu0 %v137
  %v171 = vpop.f32.mrf.mxu0
  %v172 = vadd.f32 %v37, %v171
  %v173 = vpop.f32.mrf.mxu0
  %174 = vdwg.mxu0
  %175 = vmatpush.bf16.msra.mxu0 0
  %176 = vmatpush.bf16.msra.mxu0 0
  %177 = vmatpush.bf16.msra.mxu0 0
  %178 = vmatpush.bf16.msra.mxu0 0
  %179 = vmatpush.bf16.msra.mxu0 %v114
  %180 = vmatpush.bf16.msra.mxu0 %v110
  %181 = vmatpush.bf16.msra.mxu0 %v106
  %182 = vmatpush.bf16.msra.mxu0 %v102
  %183 = vmatmul.bf16.gmra.mxu0 %v134
  %v184 = vpop.f32.mrf.mxu0
  %v185 = vadd.f32 %v38, %v184
  %v186 = vpop.f32.mrf.mxu0
  %v187 = vadd.f32 %v38, %v186
  %188 = vmatmul.bf16.gmra.mxu0 %v137
  %v189 = vpop.f32.mrf.mxu0
  %v190 = vadd.f32 %v38, %v189
  %v191 = vpop.f32.mrf.mxu0
  %192 = vdwg.mxu0
  %193 = vmatpush.bf16.msra.mxu0 0
  %194 = vmatpush.bf16.msra.mxu0 0
  %195 = vmatpush.bf16.msra.mxu0 0
  %196 = vmatpush.bf16.msra.mxu0 0
  %197 = vmatpush.bf16.msra.mxu0 %v115
  %198 = vmatpush.bf16.msra.mxu0 %v111
  %199 = vmatpush.bf16.msra.mxu0 %v107
  %200 = vmatpush.bf16.msra.mxu0 %v103
  %201 = vmatmul.bf16.gmra.mxu0 %v134
  %v202 = vpop.f32.mrf.mxu0
  %v203 = vadd.f32 %v39, %v202
  %v204 = vpop.f32.mrf.mxu0
  %v205 = vadd.f32 %v39, %v204
  %206 = vmatmul.bf16.gmra.mxu0 %v137
  %v207 = vpop.f32.mrf.mxu0
  %v208 = vadd.f32 %v39, %v207
  %v209 = vpop.f32.mrf.mxu0
  %210 = vdwg.mxu0
  %vm211 = vcmp.ge.f32.partialorder %v149, 0.0
  %vm212 = vcmp.ge.f32.partialorder %v167, 0.0
  %vm213 = vcmp.ge.f32.partialorder %v185, 0.0
  %vm214 = vcmp.ge.f32.partialorder %v203, 0.0
  %vm215 = vcmp.ge.f32.partialorder %v151, 0.0
  %vm216 = vcmp.ge.f32.partialorder %v169, 0.0
  %vm217 = vcmp.ge.f32.partialorder %v187, 0.0
  %vm218 = vcmp.ge.f32.partialorder %v205, 0.0
  %vm219 = vcmp.ge.f32.partialorder %v154, 0.0
  %vm220 = vcmp.ge.f32.partialorder %v172, 0.0
  %vm221 = vcmp.ge.f32.partialorder %v190, 0.0
  %vm222 = vcmp.ge.f32.partialorder %v208, 0.0
  %v223 = vmul.f32 %v149, 0.1
  %v224 = vmul.f32 %v167, 0.1
  %v225 = vmul.f32 %v185, 0.1
  %v226 = vmul.f32 %v203, 0.1
  %v227 = vmul.f32 %v151, 0.1
  %v228 = vmul.f32 %v169, 0.1
  %v229 = vmul.f32 %v187, 0.1
  %v230 = vmul.f32 %v205, 0.1
  %v231 = vmul.f32 %v154, 0.1
  %v232 = vmul.f32 %v172, 0.1
  %v233 = vmul.f32 %v190, 0.1
  %v234 = vmul.f32 %v208, 0.1
  %v235 = vsel %vm211, %v149, %v223
  %v236 = vsel %vm212, %v167, %v224
  %v237 = vsel %vm213, %v185, %v225
  %v238 = vsel %vm214, %v203, %v226
  %v239 = vsel %vm215, %v151, %v227
  %v240 = vsel %vm216, %v169, %v228
  %v241 = vsel %vm217, %v187, %v229
  %v242 = vsel %vm218, %v205, %v230
  %v243 = vsel %vm219, %v154, %v231
  %v244 = vsel %vm220, %v172, %v232
  %v245 = vsel %vm221, %v190, %v233
  %v246 = vsel %vm222, %v208, %v234
  %247 = vst [vmem:[%s3] sm:$0xff] %v235
  %248 = vst [vmem:[%s3 + $0x8] sm:$0xff] %v236
  %249 = vst [vmem:[%s3 + $0x10] sm:$0xff] %v237
  %250 = vst [vmem:[%s3 + $0x18] sm:$0xff] %v238
  %251 = vst [vmem:[%s3 + $0x20] sm:$0xff] %v239
  %252 = vst [vmem:[%s3 + $0x28] sm:$0xff] %v240
  %253 = vst [vmem:[%s3 + $0x30] sm:$0xff] %v241
  %254 = vst [vmem:[%s3 + $0x38] sm:$0xff] %v242
  %255 = vst [vmem:[%s3 + $0x40] sm:$0xff] %v243
  %256 = vst [vmem:[%s3 + $0x48] sm:$0xff] %v244
  %257 = vst [vmem:[%s3 + $0x50] sm:$0xff] %v245
  %258 = vst [vmem:[%s3 + $0x58] sm:$0xff] %v246
  // Predicated region
  $region14: #{rnn_forward.20} parent=0 // pred_check
    _
  $region15: #{rnn_forward.20} parent=0 // pred_check_branch
    %260 = sbr.rel (0) target = $region17
  $region16: #{rnn_forward.20} parent=0 // pred_region
    _
  $region17: #{rnn_forward.20} parent=0 // pred_fallthru
    _
  // Predicated region
  $region18: #{rnn_forward.20} parent=0 // pred_check
    _
  $region19: #{rnn_forward.20} parent=0 // pred_check_branch
    %262 = sbr.rel (0) target = $region21
  $region20: #{rnn_forward.20} parent=0 // pred_region
    _
  $region21: #{rnn_forward.20} parent=0 // pred_fallthru
    _

// kernel: rnn_forward.21
$region0: #{rnn_forward.21}
  #allocation0 [shape = 'u32[]', space=smem, size = 0x4, offset = 0x4, fixed_abs, tag = 'smem constant byte address 0x4 - core index']
  #allocation1 [shape = 'u32[72,128]{1,0:T(1,128)}', space=vmem, size = 0x9000, scoped, tag = 'internal scratch']
  %s0 = inlined_call_operand.vmem [shape: bf16[2,128,512], index: 0, kind: input, shape index: {}]
  %s1 = inlined_call_operand.vmem [shape: bf16[128,128], index: 1, kind: input, shape index: {}]
  %s2 = inlined_call_operand.vmem [shape: bf16[128,1024], index: 2, kind: input, shape index: {}]
  %s3 = inlined_call_operand.vmem [shape: f32[2,128,128], index: 3, kind: output, shape index: {0}]
  %s4 = inlined_call_operand.vmem [shape: f32[2,8,128,128], index: 4, kind: output, shape index: {1}]
  %5 = xla_tuple %s3, %s4
  %s6 = sld [smem:[#allocation0]]
  $region53: #{rnn_forward.21} parent=0
    _
  %s8 = ssub.s32 1, %s6
  %s9 = scalar_select 0, %s8, %s6
  loop: start=0, step=1, limit=4
  $region2: #{rnn_forward.21} parent=0 // loop_pre_header
    _
  $region3: #{rnn_forward.21} parent=0 // loop_header
    %s11 = sphi 0, %s15
    %p12 = scmp.ge.s32.totalorder %s11, 4
    %s21 = sphi 0, %s23
    %s24 = sphi 0, %s21
    %s25 = sphi 0, %s24
    %s41 = sphi 0, %s25
    %s45 = sphi 0, %s45
    %s47 = sphi 0, %s45
    %s48 = sphi 0, %s47
    %s62 = sphi 0, %s48
    %s66 = sphi 0, %s66
    %s68 = sphi 0, %s66
    %s69 = sphi 0, %s68
    %s83 = sphi 0, %s69
    %s89 = sphi 0, %s91
    %s92 = sphi 0, %s89
    %s93 = sphi 0, %s92
    %s109 = sphi 0, %s93
    %s115 = sphi 0, %s117
    %s118 = sphi 0, %s115
    %s119 = sphi 0, %s118
    %s135 = sphi 0, %s119
  $region4: #{rnn_forward.21} parent=0 // loop_header_branch
    %14 = sbr.rel (%p12) target = $region8
  $region5: #{rnn_forward.21} parent=0 // loop_body
    %s16 = ssub.s32 %s11, 1
    %s17 = ssub.s32 %s11, 2
    %s18 = sadd.s32 %s11, 1
    %s19 = ssub.s32 %s11, %s18
    %p20 = scmp.eq.s32.totalorder %s19, 0
    %s22 = sadd.s32 %s21, 1
    %s23 = scalar_select %p20, %s21, %s22
    %p26 = pneg %p20
    %p27 = scmp.eq.s32.totalorder %s11, 1
    %p28 = por %p26, %p27
    %p29 = scmp.ne.s32.totalorder %s21, %s24
    %p30 = scmp.eq.s32.totalorder %s11, 0
    %p31 = por %p29, %p30
    %p32 = scmp.ne.s32.totalorder %s21, %s24
    %p33 = scmp.eq.s32.totalorder %s16, 1
    %p34 = por %p32, %p33
    %p35 = scmp.ne.s32.totalorder %s24, %s25
    %p36 = scmp.eq.s32.totalorder %s16, 0
    %p37 = por %p35, %p36
    %p38 = scmp.ne.s32.totalorder %s24, %s25
    %p39 = scmp.eq.s32.totalorder %s17, 1
    %p40 = por %p38, %p39
    %p42 = scmp.ne.s32.totalorder %s25, %s41
    %p43 = scmp.eq.s32.totalorder %s17, 0
    %p44 = por %p42, %p43
    %s46 = sadd.s32 %s45, 1
    %p49 = scmp.eq.s32.totalorder %s11, 1
    %p50 = scmp.ne.s32.totalorder %s45, %s47
    %p51 = scmp.eq.s32.totalorder %s11, 0
    %p52 = por %p50, %p51
    %p53 = scmp.ne.s32.totalorder %s45, %s47
    %p54 = scmp.eq.s32.totalorder %s16, 1
    %p55 = por %p53, %p54
    %p56 = scmp.ne.s32.totalorder %s47, %s48
    %p57 = scmp.eq.s32.totalorder %s16, 0
    %p58 = por %p56, %p57
    %p59 = scmp.ne.s32.totalorder %s47, %s48
    %p60 = scmp.eq.s32.totalorder %s17, 1
    %p61 = por %p59, %p60
    %p63 = scmp.ne.s32.totalorder %s48, %s62
    %p64 = scmp.eq.s32.totalorder %s17, 0
    %p65 = por %p63, %p64
    %s67 = sadd.s32 %s66, 1
    %p70 = scmp.eq.s32.totalorder %s11, 1
    %p71 = scmp.ne.s32.totalorder %s66, %s68
    %p72 = scmp.eq.s32.totalorder %s11, 0
    %p73 = por %p71, %p72
    %p74 = scmp.ne.s32.totalorder %s66, %s68
    %p75 = scmp.eq.s32.totalorder %s16, 1
    %p76 = por %p74, %p75
    %p77 = scmp.ne.s32.totalorder %s68, %s69
    %p78 = scmp.eq.s32.totalorder %s16, 0
    %p79 = por %p77, %p78
    %p80 = scmp.ne.s32.totalorder %s68, %s69
    %p81 = scmp.eq.s32.totalorder %s17, 1
    %p82 = por %p80, %p81
    %p84 = scmp.ne.s32.totalorder %s69, %s83
    %p85 = scmp.eq.s32.totalorder %s17, 0
    %p86 = por %p84, %p85
    %s87 = ssub.s32 %s11, %s18
    %p88 = scmp.eq.s32.totalorder %s87, 0
    %s90 = sadd.s32 %s89, 1
    %s91 = scalar_select %p88, %s89, %s90
    %p94 = pneg %p88
    %p95 = scmp.eq.s32.totalorder %s11, 1
    %p96 = por %p94, %p95
    %p97 = scmp.ne.s32.totalorder %s89, %s92
    %p98 = scmp.eq.s32.totalorder %s11, 0
    %p99 = por %p97, %p98
    %p100 = scmp.ne.s32.totalorder %s89, %s92
    %p101 = scmp.eq.s32.totalorder %s16, 1
    %p102 = por %p100, %p101
    %p103 = scmp.ne.s32.totalorder %s92, %s93
    %p104 = scmp.eq.s32.totalorder %s16, 0
    %p105 = por %p103, %p104
    %p106 = scmp.ne.s32.totalorder %s92, %s93
    %p107 = scmp.eq.s32.totalorder %s17, 1
    %p108 = por %p106, %p107
    %p110 = scmp.ne.s32.totalorder %s93, %s109
    %p111 = scmp.eq.s32.totalorder %s17, 0
    %p112 = por %p110, %p111
    %s113 = ssub.s32 %s11, %s18
    %p114 = scmp.eq.s32.totalorder %s113, 0
    %s116 = sadd.s32 %s115, 1
    %s117 = scalar_select %p114, %s115, %s116
    %p120 = pneg %p114
    %p121 = scmp.eq.s32.totalorder %s11, 1
    %p122 = por %p120, %p121
    %p123 = scmp.ne.s32.totalorder %s115, %s118
    %p124 = scmp.eq.s32.totalorder %s11, 0
    %p125 = por %p123, %p124
    %p126 = scmp.ne.s32.totalorder %s115, %s118
    %p127 = scmp.eq.s32.totalorder %s16, 1
    %p128 = por %p126, %p127
    %p129 = scmp.ne.s32.totalorder %s118, %s119
    %p130 = scmp.eq.s32.totalorder %s16, 0
    %p131 = por %p129, %p130
    %p132 = scmp.ne.s32.totalorder %s118, %s119
    %p133 = scmp.eq.s32.totalorder %s17, 1
    %p134 = por %p132, %p133
    %p136 = scmp.ne.s32.totalorder %s119, %s135
    %p137 = scmp.eq.s32.totalorder %s17, 0
    %p138 = por %p136, %p137
    %p139 = scmp.le.s32.totalorder 1, %s11
    %p140 = scmp.lt.s32.totalorder %s11, 3
    %p141 = pnand %p139, %p140
    %p142 = pneg %p141
    // Predicated region
    $region9: #{rnn_forward.21} parent=5 // pred_check
      _
    $region10: #{rnn_forward.21} parent=5 // pred_check_branch
      %144 = sbr.rel (%p141) target = $region12
    $region11: #{rnn_forward.21} parent=5 // pred_region
      %s145 = ssub.s32 %s11, 1
      // Predicated region
      $region13: #{rnn_forward.21} parent=11 // pred_check
        %p146 = pneg %p58
      $region14: #{rnn_forward.21} parent=11 // pred_check_branch
        %148 = sbr.rel (%p146) target = $region16
      $region15: #{rnn_forward.21} parent=11 // pred_region
        _
      $region16: #{rnn_forward.21} parent=11 // pred_fallthru
        _
      // Predicated region
      $region17: #{rnn_forward.21} parent=11 // pred_check
        %p149 = pneg %p79
      $region18: #{rnn_forward.21} parent=11 // pred_check_branch
        %151 = sbr.rel (%p149) target = $region20
      $region19: #{rnn_forward.21} parent=11 // pred_region
        _
      $region20: #{rnn_forward.21} parent=11 // pred_fallthru
        _
    $region12: #{rnn_forward.21} parent=5 // pred_fallthru
      _
    %p152 = scmp.lt.s32.totalorder %s11, 2
    // Predicated region
    $region21: #{rnn_forward.21} parent=5 // pred_check
      %p153 = pneg %p152
    $region22: #{rnn_forward.21} parent=5 // pred_check_branch
      %155 = sbr.rel (%p153) target = $region24
    $region23: #{rnn_forward.21} parent=5 // pred_region
      // Predicated region
      $region25: #{rnn_forward.21} parent=23 // pred_check
        %p156 = pneg %p31
      $region26: #{rnn_forward.21} parent=23 // pred_check_branch
        %158 = sbr.rel (%p156) target = $region28
      $region27: #{rnn_forward.21} parent=23 // pred_region
        %p159 = scmp.lt.s32.totalorder %s11, 1
        %s160 = scalar_select %p159, %s11, 1
        %s161 = smul.addr %s160, 64
        %s162 = smul.addr %s161, 4
        %s163 = scalar_lea.vmem %s0, %s162
      $region28: #{rnn_forward.21} parent=23 // pred_fallthru
        _
    $region24: #{rnn_forward.21} parent=5 // pred_fallthru
      _
    %p164 = scmp.le.s32.totalorder 1, %s11
    %p165 = scmp.lt.s32.totalorder %s11, 3
    %p166 = pnand %p164, %p165
    %p167 = pneg %p166
    // Predicated region
    $region29: #{rnn_forward.21} parent=5 // pred_check
      _
    $region30: #{rnn_forward.21} parent=5 // pred_check_branch
      %169 = sbr.rel (%p166) target = $region32
    $region31: #{rnn_forward.21} parent=5 // pred_region
      %s170 = ssub.s32 %s11, 1
      %p171 = scmp.lt.s32.totalorder %s16, 1
      %s172 = scalar_select %p171, %s16, 1
      %s173 = smul.addr %s172, 64
      %s174 = smul.addr %s173, 4
      %s175 = scalar_lea.vmem %s0, %s174
      %p176 = pneg %p37
      %p177 = pneg %p34
      %p178 = pneg %p58
      %p179 = pneg %p55
      %p180 = pneg %p79
      %p181 = pneg %p76
      %p182 = pneg %p105
      %p183 = pneg %p102
      %p184 = scmp.lt.s32.totalorder %s16, 1
      %s185 = scalar_select %p184, %s16, 1
      %s186 = smul.addr %s185, 16
      %s187 = smul.addr %s186, 8
      %s188 = scalar_lea.vmem %s3, %s187
      %p189 = pneg %p131
      %p190 = pneg %p128
      %p191 = scmp.lt.s32.totalorder %s16, 1
      %s192 = scalar_select %p191, %s16, 1
      %s193 = smul.addr %s192, 128
      %s194 = smul.addr %s193, 8
      %s195 = scalar_lea.vmem %s4, %s194
      %p196 = scmp.lt.s32.totalorder %s16, 1
      %s197 = scalar_select %p196, %s16, 1
      %s198 = smul.addr %s197, 64
      %s199 = smul.addr %s198, 4
      %s200 = scalar_lea.vmem %s0, %s199
      %p201 = scmp.lt.s32.totalorder %s16, 1
      %s202 = scalar_select %p201, %s16, 1
      %s203 = smul.addr %s202, 16
      %s204 = smul.addr %s203, 8
      %s205 = scalar_lea.vmem %s3, %s204
      %p206 = scmp.lt.s32.totalorder %s16, 1
      %s207 = scalar_select %p206, %s16, 1
      %s208 = smul.addr %s207, 128
      %s209 = smul.addr %s208, 8
      %s210 = scalar_lea.vmem %s4, %s209
      %v211 = vld [vmem:[%s200] sm:$0xff]
      %v212 = vld [vmem:[%s200 + $0x8] sm:$0xff]
      %v213 = vld [vmem:[%s200 + $0x10] sm:$0xff]
      %v214 = vld [vmem:[%s200 + $0x18] sm:$0xff]
      %v215 = vld [vmem:[%s200 + $0x20] sm:$0xff]
      %v216 = vld [vmem:[%s200 + $0x28] sm:$0xff]
      %v217 = vld [vmem:[%s200 + $0x30] sm:$0xff]
      %v218 = vld [vmem:[%s200 + $0x38] sm:$0xff]
      %v219 = vld [vmem:[%s200 + $0x40] sm:$0xff]
      %v220 = vld [vmem:[%s200 + $0x48] sm:$0xff]
      %v221 = vld [vmem:[%s200 + $0x50] sm:$0xff]
      %v222 = vld [vmem:[%s200 + $0x58] sm:$0xff]
      %v223 = vld [vmem:[%s200 + $0x60] sm:$0xff]
      %v224 = vld [vmem:[%s200 + $0x68] sm:$0xff]
      %v225 = vld [vmem:[%s200 + $0x70] sm:$0xff]
      %v226 = vld [vmem:[%s200 + $0x78] sm:$0xff]
      %v227 = vld [vmem:[%s200 + $0x80] sm:$0xff]
      %v228 = vld [vmem:[%s200 + $0x88] sm:$0xff]
      %v229 = vld [vmem:[%s200 + $0x90] sm:$0xff]
      %v230 = vld [vmem:[%s200 + $0x98] sm:$0xff]
      %v231 = vld [vmem:[%s200 + $0xa0] sm:$0xff]
      %v232 = vld [vmem:[%s200 + $0xa8] sm:$0xff]
      %v233 = vld [vmem:[%s200 + $0xb0] sm:$0xff]
      %v234 = vld [vmem:[%s200 + $0xb8] sm:$0xff]
      %v235 = vld [vmem:[%s200 + $0xc0] sm:$0xff]
      %v236 = vld [vmem:[%s200 + $0xc8] sm:$0xff]
      %v237 = vld [vmem:[%s200 + $0xd0] sm:$0xff]
      %v238 = vld [vmem:[%s200 + $0xd8] sm:$0xff]
      %v239 = vld [vmem:[%s200 + $0xe0] sm:$0xff]
      %v240 = vld [vmem:[%s200 + $0xe8] sm:$0xff]
      %v241 = vld [vmem:[%s200 + $0xf0] sm:$0xff]
      %v242 = vld [vmem:[%s200 + $0xf8] sm:$0xff]
      %v243 = vld [vmem:[%s1] sm:$0xf]
      %v244 = vld [vmem:[%s1 + $0x4] sm:$0xf]
      %v245 = vld [vmem:[%s1 + $0x8] sm:$0xf]
      %v246 = vld [vmem:[%s1 + $0xc] sm:$0xf]
      %v247 = vld [vmem:[%s1 + $0x10] sm:$0xf]
      %v248 = vld [vmem:[%s1 + $0x14] sm:$0xf]
      %v249 = vld [vmem:[%s1 + $0x18] sm:$0xf]
      %v250 = vld [vmem:[%s1 + $0x1c] sm:$0xf]
      %v251 = vld [vmem:[%s1 + $0x20] sm:$0xf]
      %v252 = vld [vmem:[%s1 + $0x24] sm:$0xf]
      %v253 = vld [vmem:[%s1 + $0x28] sm:$0xf]
      %v254 = vld [vmem:[%s1 + $0x2c] sm:$0xf]
      %v255 = vld [vmem:[%s1 + $0x30] sm:$0xf]
      %v256 = vld [vmem:[%s1 + $0x34] sm:$0xf]
      %v257 = vld [vmem:[%s1 + $0x38] sm:$0xf]
      %v258 = vld [vmem:[%s1 + $0x3c] sm:$0xf]
      %v275 = vunpack.c.l.b16 %v211
      %v276 = vunpack.c.l.b16 %v213
      %v277 = vunpack.c.l.b16 %v215
      %v278 = vunpack.c.l.b16 %v217
      %v279 = vunpack.c.l.b16 %v219
      %v280 = vunpack.c.l.b16 %v221
      %v281 = vunpack.c.l.b16 %v223
      %v282 = vunpack.c.l.b16 %v225
      %v283 = vunpack.c.l.b16 %v227
      %v284 = vunpack.c.l.b16 %v229
      %v285 = vunpack.c.l.b16 %v231
      %v286 = vunpack.c.l.b16 %v233
      %v287 = vunpack.c.l.b16 %v235
      %v288 = vunpack.c.l.b16 %v237
      %v289 = vunpack.c.l.b16 %v239
      %v290 = vunpack.c.l.b16 %v241
      %v291 = vpack.c.b16 %v276, %v275
      %v292 = vpack.c.b16 %v278, %v277
      %v293 = vpack.c.b16 %v280, %v279
      %v294 = vpack.c.b16 %v282, %v281
      %v295 = vpack.c.b16 %v284, %v283
      %v296 = vpack.c.b16 %v286, %v285
      %v297 = vpack.c.b16 %v288, %v287
      %v298 = vpack.c.b16 %v290, %v289
      %v323 = vunpack.c.l.b16 %v243
      %v324 = vunpack.c.l.b16 %v244
      %v325 = vunpack.c.l.b16 %v245
      %v326 = vunpack.c.l.b16 %v246
      %v327 = vunpack.c.l.b16 %v247
      %v328 = vunpack.c.l.b16 %v248
      %v329 = vunpack.c.l.b16 %v249
      %v330 = vunpack.c.l.b16 %v250
      %v331 = vunpack.c.l.b16 %v251
      %v332 = vunpack.c.l.b16 %v252
      %v333 = vunpack.c.l.b16 %v253
      %v334 = vunpack.c.l.b16 %v254
      %v335 = vunpack.c.l.b16 %v255
      %v336 = vunpack.c.l.b16 %v256
      %v337 = vunpack.c.l.b16 %v257
      %v338 = vunpack.c.l.b16 %v258
      %v339 = vpack.c.b16 %v324, %v323
      %v340 = vpack.c.b16 %v326, %v325
      %v341 = vpack.c.b16 %v328, %v327
      %v342 = vpack.c.b16 %v330, %v329
      %v343 = vpack.c.b16 %v332, %v331
      %v344 = vpack.c.b16 %v334, %v333
      %v345 = vpack.c.b16 %v336, %v335
      %v346 = vpack.c.b16 %v338, %v337
      %355 = vmatpush.bf16.msra.mxu0 %v346
      %356 = vmatpush.bf16.msra.mxu0 %v345
      %357 = vmatpush.bf16.msra.mxu0 %v344
      %358 = vmatpush.bf16.msra.mxu0 %v343
      %359 = vmatpush.bf16.msra.mxu0 %v342
      %360 = vmatpush.bf16.msra.mxu0 %v341
      %361 = vmatpush.bf16.msra.mxu0 %v340
      %362 = vmatpush.bf16.msra.mxu0 %v339
      %363 = vmatmul.bf16.gmra.mxu0 %v291
      %v364 = vpop.f32.mrf.mxu0
      %v365 = vadd.f32 0.0, %v364
      %v366 = vpop.f32.mrf.mxu0
      %v367 = vadd.f32 0.0, %v366
      %368 = vmatmul.bf16.gmra.mxu0 %v292
      %v369 = vpop.f32.mrf.mxu0
      %v370 = vadd.f32 0.0, %v369
      %v371 = vpop.f32.mrf.mxu0
      %v372 = vadd.f32 0.0, %v371
      %373 = vmatmul.bf16.gmra.mxu0 %v293
      %v374 = vpop.f32.mrf.mxu0
      %v375 = vadd.f32 0.0, %v374
      %v376 = vpop.f32.mrf.mxu0
      %v377 = vadd.f32 0.0, %v376
      %378 = vmatmul.bf16.gmra.mxu0 %v294
      %v379 = vpop.f32.mrf.mxu0
      %v380 = vadd.f32 0.0, %v379
      %v381 = vpop.f32.mrf.mxu0
      %v382 = vadd.f32 0.0, %v381
      %383 = vmatmul.bf16.gmra.mxu0 %v295
      %v384 = vpop.f32.mrf.mxu0
      %v385 = vadd.f32 0.0, %v384
      %v386 = vpop.f32.mrf.mxu0
      %v387 = vadd.f32 0.0, %v386
      %388 = vmatmul.bf16.gmra.mxu0 %v296
      %v389 = vpop.f32.mrf.mxu0
      %v390 = vadd.f32 0.0, %v389
      %v391 = vpop.f32.mrf.mxu0
      %v392 = vadd.f32 0.0, %v391
      %393 = vmatmul.bf16.gmra.mxu0 %v297
      %v394 = vpop.f32.mrf.mxu0
      %v395 = vadd.f32 0.0, %v394
      %v396 = vpop.f32.mrf.mxu0
      %v397 = vadd.f32 0.0, %v396
      %398 = vmatmul.bf16.gmra.mxu0 %v298
      %v399 = vpop.f32.mrf.mxu0
      %v400 = vadd.f32 0.0, %v399
      %v401 = vpop.f32.mrf.mxu0
      %v402 = vadd.f32 0.0, %v401
      %403 = vdwg.mxu0
      %v404 = vpack.c.bf16 %v367, %v365
      %v405 = vpack.c.bf16 %v372, %v370
      %v406 = vpack.c.bf16 %v377, %v375
      %v407 = vpack.c.bf16 %v382, %v380
      %v408 = vpack.c.bf16 %v387, %v385
      %v409 = vpack.c.bf16 %v392, %v390
      %v410 = vpack.c.bf16 %v397, %v395
      %v411 = vpack.c.bf16 %v402, %v400
      %v412 = vunpack.c.h.b16 %v211
      %v413 = vunpack.c.h.b16 %v213
      %v414 = vunpack.c.h.b16 %v215
      %v415 = vunpack.c.h.b16 %v217
      %v416 = vunpack.c.h.b16 %v219
      %v417 = vunpack.c.h.b16 %v221
      %v418 = vunpack.c.h.b16 %v223
      %v419 = vunpack.c.h.b16 %v225
      %v420 = vunpack.c.h.b16 %v227
      %v421 = vunpack.c.h.b16 %v229
      %v422 = vunpack.c.h.b16 %v231
      %v423 = vunpack.c.h.b16 %v233
      %v424 = vunpack.c.h.b16 %v235
      %v425 = vunpack.c.h.b16 %v237
      %v426 = vunpack.c.h.b16 %v239
      %v427 = vunpack.c.h.b16 %v241
      %v428 = vpack.c.b16 %v413, %v412
      %v429 = vpack.c.b16 %v415, %v414
      %v430 = vpack.c.b16 %v417, %v416
      %v431 = vpack.c.b16 %v419, %v418
      %v432 = vpack.c.b16 %v421, %v420
      %v433 = vpack.c.b16 %v423, %v422
      %v434 = vpack.c.b16 %v425, %v424
      %v435 = vpack.c.b16 %v427, %v426
      %444 = vmatpush.bf16.xpose.msra.mxu0 %v411
      %445 = vmatpush.bf16.xpose.msra.mxu0 %v410
      %446 = vmatpush.bf16.xpose.msra.mxu0 %v409
      %447 = vmatpush.bf16.xpose.msra.mxu0 %v408
      %448 = vmatpush.bf16.xpose.msra.mxu0 %v407
      %449 = vmatpush.bf16.xpose.msra.mxu0 %v406
      %450 = vmatpush.bf16.xpose.msra.mxu0 %v405
      %451 = vmatpush.bf16.xpose.msra.mxu0 %v404
      %452 = vmatmul.bf16.gmra.mxu0 %v428
      %v453 = vpop.f32.mrf.mxu0
      %v454 = vadd.f32 0.0, %v453
      %v455 = vpop.f32.mrf.mxu0
      %v456 = vadd.f32 0.0, %v455
      %457 = vmatmul.bf16.gmra.mxu0 %v429
      %v458 = vpop.f32.mrf.mxu0
      %v459 = vadd.f32 0.0, %v458
      %v460 = vpop.f32.mrf.mxu0
      %v461 = vadd.f32 0.0, %v460
      %462 = vmatmul.bf16.gmra.mxu0 %v430
      %v463 = vpop.f32.mrf.mxu0
      %v464 = vadd.f32 0.0, %v463
      %v465 = vpop.f32.mrf.mxu0
      %v466 = vadd.f32 0.0, %v465
      %467 = vmatmul.bf16.gmra.mxu0 %v431
      %v468 = vpop.f32.mrf.mxu0
      %v469 = vadd.f32 0.0, %v468
      %v470 = vpop.f32.mrf.mxu0
      %v471 = vadd.f32 0.0, %v470
      %472 = vmatmul.bf16.gmra.mxu0 %v432
      %v473 = vpop.f32.mrf.mxu0
      %v474 = vadd.f32 0.0, %v473
      %v475 = vpop.f32.mrf.mxu0
      %v476 = vadd.f32 0.0, %v475
      %477 = vmatmul.bf16.gmra.mxu0 %v433
      %v478 = vpop.f32.mrf.mxu0
      %v479 = vadd.f32 0.0, %v478
      %v480 = vpop.f32.mrf.mxu0
      %v481 = vadd.f32 0.0, %v480
      %482 = vmatmul.bf16.gmra.mxu0 %v434
      %v483 = vpop.f32.mrf.mxu0
      %v484 = vadd.f32 0.0, %v483
      %v485 = vpop.f32.mrf.mxu0
      %v486 = vadd.f32 0.0, %v485
      %487 = vmatmul.bf16.gmra.mxu0 %v435
      %v488 = vpop.f32.mrf.mxu0
      %v489 = vadd.f32 0.0, %v488
      %v490 = vpop.f32.mrf.mxu0
      %v491 = vadd.f32 0.0, %v490
      %492 = vdwg.mxu0
      %493 = vst [vmem:[%s205] sm:$0xff] %v454
      %494 = vst [vmem:[%s205 + $0x8] sm:$0xff] %v456
      %495 = vst [vmem:[%s205 + $0x10] sm:$0xff] %v459
      %496 = vst [vmem:[%s205 + $0x18] sm:$0xff] %v461
      %497 = vst [vmem:[%s205 + $0x20] sm:$0xff] %v464
      %498 = vst [vmem:[%s205 + $0x28] sm:$0xff] %v466
      %499 = vst [vmem:[%s205 + $0x30] sm:$0xff] %v469
      %500 = vst [vmem:[%s205 + $0x38] sm:$0xff] %v471
      %501 = vst [vmem:[%s205 + $0x40] sm:$0xff] %v474
      %502 = vst [vmem:[%s205 + $0x48] sm:$0xff] %v476
      %503 = vst [vmem:[%s205 + $0x50] sm:$0xff] %v479
      %504 = vst [vmem:[%s205 + $0x58] sm:$0xff] %v481
      %505 = vst [vmem:[%s205 + $0x60] sm:$0xff] %v484
      %506 = vst [vmem:[%s205 + $0x68] sm:$0xff] %v486
      %507 = vst [vmem:[%s205 + $0x70] sm:$0xff] %v489
      %508 = vst [vmem:[%s205 + $0x78] sm:$0xff] %v491
      %v509 = vld [vmem:[%s2] sm:$0xff]
      %v510 = vld [vmem:[%s2 + $0x8] sm:$0xff]
      %v511 = vld [vmem:[%s2 + $0x10] sm:$0xff]
      %v512 = vld [vmem:[%s2 + $0x18] sm:$0xff]
      %v513 = vld [vmem:[%s2 + $0x20] sm:$0xff]
      %v514 = vld [vmem:[%s2 + $0x28] sm:$0xff]
      %v515 = vld [vmem:[%s2 + $0x30] sm:$0xff]
      %v516 = vld [vmem:[%s2 + $0x38] sm:$0xff]
      %v517 = vld [vmem:[%s2 + $0x40] sm:$0xff]
      %v518 = vld [vmem:[%s2 + $0x48] sm:$0xff]
      %v519 = vld [vmem:[%s2 + $0x50] sm:$0xff]
      %v520 = vld [vmem:[%s2 + $0x58] sm:$0xff]
      %v521 = vld [vmem:[%s2 + $0x60] sm:$0xff]
      %v522 = vld [vmem:[%s2 + $0x68] sm:$0xff]
      %v523 = vld [vmem:[%s2 + $0x70] sm:$0xff]
      %v524 = vld [vmem:[%s2 + $0x78] sm:$0xff]
      %v525 = vld [vmem:[%s2 + $0x80] sm:$0xff]
      %v526 = vld [vmem:[%s2 + $0x88] sm:$0xff]
      %v527 = vld [vmem:[%s2 + $0x90] sm:$0xff]
      %v528 = vld [vmem:[%s2 + $0x98] sm:$0xff]
      %v529 = vld [vmem:[%s2 + $0xa0] sm:$0xff]
      %v530 = vld [vmem:[%s2 + $0xa8] sm:$0xff]
      %v531 = vld [vmem:[%s2 + $0xb0] sm:$0xff]
      %v532 = vld [vmem:[%s2 + $0xb8] sm:$0xff]
      %v533 = vld [vmem:[%s2 + $0xc0] sm:$0xff]
      %v534 = vld [vmem:[%s2 + $0xc8] sm:$0xff]
      %v535 = vld [vmem:[%s2 + $0xd0] sm:$0xff]
      %v536 = vld [vmem:[%s2 + $0xd8] sm:$0xff]
      %v537 = vld [vmem:[%s2 + $0xe0] sm:$0xff]
      %v538 = vld [vmem:[%s2 + $0xe8] sm:$0xff]
      %v539 = vld [vmem:[%s2 + $0xf0] sm:$0xff]
      %v540 = vld [vmem:[%s2 + $0xf8] sm:$0xff]
      %v541 = vld [vmem:[%s2 + $0x100] sm:$0xff]
      %v542 = vld [vmem:[%s2 + $0x108] sm:$0xff]
      %v543 = vld [vmem:[%s2 + $0x110] sm:$0xff]
      %v544 = vld [vmem:[%s2 + $0x118] sm:$0xff]
      %v545 = vld [vmem:[%s2 + $0x120] sm:$0xff]
      %v546 = vld [vmem:[%s2 + $0x128] sm:$0xff]
      %v547 = vld [vmem:[%s2 + $0x130] sm:$0xff]
      %v548 = vld [vmem:[%s2 + $0x138] sm:$0xff]
      %v549 = vld [vmem:[%s2 + $0x140] sm:$0xff]
      %v550 = vld [vmem:[%s2 + $0x148] sm:$0xff]
      %v551 = vld [vmem:[%s2 + $0x150] sm:$0xff]
      %v552 = vld [vmem:[%s2 + $0x158] sm:$0xff]
      %v553 = vld [vmem:[%s2 + $0x160] sm:$0xff]
      %v554 = vld [vmem:[%s2 + $0x168] sm:$0xff]
      %v555 = vld [vmem:[%s2 + $0x170] sm:$0xff]
      %v556 = vld [vmem:[%s2 + $0x178] sm:$0xff]
      %v557 = vld [vmem:[%s2 + $0x180] sm:$0xff]
      %v558 = vld [vmem:[%s2 + $0x188] sm:$0xff]
      %v559 = vld [vmem:[%s2 + $0x190] sm:$0xff]
      %v560 = vld [vmem:[%s2 + $0x198] sm:$0xff]
      %v561 = vld [vmem:[%s2 + $0x1a0] sm:$0xff]
      %v562 = vld [vmem:[%s2 + $0x1a8] sm:$0xff]
      %v563 = vld [vmem:[%s2 + $0x1b0] sm:$0xff]
      %v564 = vld [vmem:[%s2 + $0x1b8] sm:$0xff]
      %v565 = vld [vmem:[%s2 + $0x1c0] sm:$0xff]
      %v566 = vld [vmem:[%s2 + $0x1c8] sm:$0xff]
      %v567 = vld [vmem:[%s2 + $0x1d0] sm:$0xff]
      %v568 = vld [vmem:[%s2 + $0x1d8] sm:$0xff]
      %v569 = vld [vmem:[%s2 + $0x1e0] sm:$0xff]
      %v570 = vld [vmem:[%s2 + $0x1e8] sm:$0xff]
      %v571 = vld [vmem:[%s2 + $0x1f0] sm:$0xff]
      %v572 = vld [vmem:[%s2 + $0x1f8] sm:$0xff]
      %v589 = vunpack.c.l.b16 %v212
      %v590 = vunpack.c.l.b16 %v214
      %v591 = vunpack.c.l.b16 %v216
      %v592 = vunpack.c.l.b16 %v218
      %v593 = vunpack.c.l.b16 %v220
      %v594 = vunpack.c.l.b16 %v222
      %v595 = vunpack.c.l.b16 %v224
      %v596 = vunpack.c.l.b16 %v226
      %v597 = vunpack.c.l.b16 %v228
      %v598 = vunpack.c.l.b16 %v230
      %v599 = vunpack.c.l.b16 %v232
      %v600 = vunpack.c.l.b16 %v234
      %v601 = vunpack.c.l.b16 %v236
      %v602 = vunpack.c.l.b16 %v238
      %v603 = vunpack.c.l.b16 %v240
      %v604 = vunpack.c.l.b16 %v242
      %v605 = vpack.c.b16 %v590, %v589
      %v606 = vpack.c.b16 %v592, %v591
      %v607 = vpack.c.b16 %v594, %v593
      %v608 = vpack.c.b16 %v596, %v595
      %v609 = vpack.c.b16 %v598, %v597
      %v610 = vpack.c.b16 %v600, %v599
      %v611 = vpack.c.b16 %v602, %v601
      %v612 = vpack.c.b16 %v604, %v603
      %v685 = vunpack.c.l.b16 %v509
      %v686 = vunpack.c.h.b16 %v509
      %v687 = vunpack.c.l.b16 %v510
      %v688 = vunpack.c.h.b16 %v510
      %v689 = vunpack.c.l.b16 %v511
      %v690 = vunpack.c.h.b16 %v511
      %v691 = vunpack.c.l.b16 %v512
      %v692 = vunpack.c.h.b16 %v512
      %v693 = vunpack.c.l.b16 %v513
      %v694 = vunpack.c.h.b16 %v513
      %v695 = vunpack.c.l.b16 %v514
      %v696 = vunpack.c.h.b16 %v514
      %v697 = vunpack.c.l.b16 %v515
      %v698 = vunpack.c.h.b16 %v515
      %v699 = vunpack.c.l.b16 %v516
      %v700 = vunpack.c.h.b16 %v516
      %v701 = vunpack.c.l.b16 %v517
      %v702 = vunpack.c.h.b16 %v517
      %v703 = vunpack.c.l.b16 %v518
      %v704 = vunpack.c.h.b16 %v518
      %v705 = vunpack.c.l.b16 %v519
      %v706 = vunpack.c.h.b16 %v519
      %v707 = vunpack.c.l.b16 %v520
      %v708 = vunpack.c.h.b16 %v520
      %v709 = vunpack.c.l.b16 %v521
      %v710 = vunpack.c.h.b16 %v521
      %v711 = vunpack.c.l.b16 %v522
      %v712 = vunpack.c.h.b16 %v522
      %v713 = vunpack.c.l.b16 %v523
      %v714 = vunpack.c.h.b16 %v523
      %v715 = vunpack.c.l.b16 %v524
      %v716 = vunpack.c.h.b16 %v524
      %v717 = vunpack.c.l.b16 %v525
      %v718 = vunpack.c.h.b16 %v525
      %v719 = vunpack.c.l.b16 %v526
      %v720 = vunpack.c.h.b16 %v526
      %v721 = vunpack.c.l.b16 %v527
      %v722 = vunpack.c.h.b16 %v527
      %v723 = vunpack.c.l.b16 %v528
      %v724 = vunpack.c.h.b16 %v528
      %v725 = vunpack.c.l.b16 %v529
      %v726 = vunpack.c.h.b16 %v529
      %v727 = vunpack.c.l.b16 %v530
      %v728 = vunpack.c.h.b16 %v530
      %v729 = vunpack.c.l.b16 %v531
      %v730 = vunpack.c.h.b16 %v531
      %v731 = vunpack.c.l.b16 %v532
      %v732 = vunpack.c.h.b16 %v532
      %v733 = vunpack.c.l.b16 %v533
      %v734 = vunpack.c.h.b16 %v533
      %v735 = vunpack.c.l.b16 %v534
      %v736 = vunpack.c.h.b16 %v534
      %v737 = vunpack.c.l.b16 %v535
      %v738 = vunpack.c.h.b16 %v535
      %v739 = vunpack.c.l.b16 %v536
      %v740 = vunpack.c.h.b16 %v536
      %v741 = vunpack.c.l.b16 %v537
      %v742 = vunpack.c.h.b16 %v537
      %v743 = vunpack.c.l.b16 %v538
      %v744 = vunpack.c.h.b16 %v538
      %v745 = vunpack.c.l.b16 %v539
      %v746 = vunpack.c.h.b16 %v539
      %v747 = vunpack.c.l.b16 %v540
      %v748 = vunpack.c.h.b16 %v540
      %v749 = vunpack.c.l.b16 %v541
      %v750 = vunpack.c.h.b16 %v541
      %v751 = vunpack.c.l.b16 %v542
      %v752 = vunpack.c.h.b16 %v542
      %v753 = vunpack.c.l.b16 %v543
      %v754 = vunpack.c.h.b16 %v543
      %v755 = vunpack.c.l.b16 %v544
      %v756 = vunpack.c.h.b16 %v544
      %v757 = vunpack.c.l.b16 %v545
      %v758 = vunpack.c.h.b16 %v545
      %v759 = vunpack.c.l.b16 %v546
      %v760 = vunpack.c.h.b16 %v546
      %v761 = vunpack.c.l.b16 %v547
      %v762 = vunpack.c.h.b16 %v547
      %v763 = vunpack.c.l.b16 %v548
      %v764 = vunpack.c.h.b16 %v548
      %v765 = vunpack.c.l.b16 %v549
      %v766 = vunpack.c.h.b16 %v549
      %v767 = vunpack.c.l.b16 %v550
      %v768 = vunpack.c.h.b16 %v550
      %v769 = vunpack.c.l.b16 %v551
      %v770 = vunpack.c.h.b16 %v551
      %v771 = vunpack.c.l.b16 %v552
      %v772 = vunpack.c.h.b16 %v552
      %v773 = vunpack.c.l.b16 %v553
      %v774 = vunpack.c.h.b16 %v553
      %v775 = vunpack.c.l.b16 %v554
      %v776 = vunpack.c.h.b16 %v554
      %v777 = vunpack.c.l.b16 %v555
      %v778 = vunpack.c.h.b16 %v555
      %v779 = vunpack.c.l.b16 %v556
      %v780 = vunpack.c.h.b16 %v556
      %v781 = vunpack.c.l.b16 %v557
      %v782 = vunpack.c.h.b16 %v557
      %v783 = vunpack.c.l.b16 %v558
      %v784 = vunpack.c.h.b16 %v558
      %v785 = vunpack.c.l.b16 %v559
      %v786 = vunpack.c.h.b16 %v559
      %v787 = vunpack.c.l.b16 %v560
      %v788 = vunpack.c.h.b16 %v560
      %v789 = vunpack.c.l.b16 %v561
      %v790 = vunpack.c.h.b16 %v561
      %v791 = vunpack.c.l.b16 %v562
      %v792 = vunpack.c.h.b16 %v562
      %v793 = vunpack.c.l.b16 %v563
      %v794 = vunpack.c.h.b16 %v563
      %v795 = vunpack.c.l.b16 %v564
      %v796 = vunpack.c.h.b16 %v564
      %v797 = vunpack.c.l.b16 %v565
      %v798 = vunpack.c.h.b16 %v565
      %v799 = vunpack.c.l.b16 %v566
      %v800 = vunpack.c.h.b16 %v566
      %v801 = vunpack.c.l.b16 %v567
      %v802 = vunpack.c.h.b16 %v567
      %v803 = vunpack.c.l.b16 %v568
      %v804 = vunpack.c.h.b16 %v568
      %v805 = vunpack.c.l.b16 %v569
      %v806 = vunpack.c.h.b16 %v569
      %v807 = vunpack.c.l.b16 %v570
      %v808 = vunpack.c.h.b16 %v570
      %v809 = vunpack.c.l.b16 %v571
      %v810 = vunpack.c.h.b16 %v571
      %v811 = vunpack.c.l.b16 %v572
      %v812 = vunpack.c.h.b16 %v572
      %v813 = vpack.c.b16 %v693, %v685
      %v814 = vpack.c.b16 %v694, %v686
      %v815 = vpack.c.b16 %v695, %v687
      %v816 = vpack.c.b16 %v696, %v688
      %v817 = vpack.c.b16 %v697, %v689
      %v818 = vpack.c.b16 %v698, %v690
      %v819 = vpack.c.b16 %v699, %v691
      %v820 = vpack.c.b16 %v700, %v692
      %v821 = vpack.c.b16 %v709, %v701
      %v822 = vpack.c.b16 %v710, %v702
      %v823 = vpack.c.b16 %v711, %v703
      %v824 = vpack.c.b16 %v712, %v704
      %v825 = vpack.c.b16 %v713, %v705
      %v826 = vpack.c.b16 %v714, %v706
      %v827 = vpack.c.b16 %v715, %v707
      %v828 = vpack.c.b16 %v716, %v708
      %v829 = vpack.c.b16 %v725, %v717
      %v830 = vpack.c.b16 %v726, %v718
      %v831 = vpack.c.b16 %v727, %v719
      %v832 = vpack.c.b16 %v728, %v720
      %v833 = vpack.c.b16 %v729, %v721
      %v834 = vpack.c.b16 %v730, %v722
      %v835 = vpack.c.b16 %v731, %v723
      %v836 = vpack.c.b16 %v732, %v724
      %v837 = vpack.c.b16 %v741, %v733
      %v838 = vpack.c.b16 %v742, %v734
      %v839 = vpack.c.b16 %v743, %v735
      %v840 = vpack.c.b16 %v744, %v736
      %v841 = vpack.c.b16 %v745, %v737
      %v842 = vpack.c.b16 %v746, %v738
      %v843 = vpack.c.b16 %v747, %v739
      %v844 = vpack.c.b16 %v748, %v740
      %v845 = vpack.c.b16 %v757, %v749
      %v846 = vpack.c.b16 %v758, %v750
      %v847 = vpack.c.b16 %v759, %v751
      %v848 = vpack.c.b16 %v760, %v752
      %v849 = vpack.c.b16 %v761, %v753
      %v850 = vpack.c.b16 %v762, %v754
      %v851 = vpack.c.b16 %v763, %v755
      %v852 = vpack.c.b16 %v764, %v756
      %v853 = vpack.c.b16 %v773, %v765
      %v854 = vpack.c.b16 %v774, %v766
      %v855 = vpack.c.b16 %v775, %v767
      %v856 = vpack.c.b16 %v776, %v768
      %v857 = vpack.c.b16 %v777, %v769
      %v858 = vpack.c.b16 %v778, %v770
      %v859 = vpack.c.b16 %v779, %v771
      %v860 = vpack.c.b16 %v780, %v772
      %v861 = vpack.c.b16 %v789, %v781
      %v862 = vpack.c.b16 %v790, %v782
      %v863 = vpack.c.b16 %v791, %v783
      %v864 = vpack.c.b16 %v792, %v784
      %v865 = vpack.c.b16 %v793, %v785
      %v866 = vpack.c.b16 %v794, %v786
      %v867 = vpack.c.b16 %v795, %v787
      %v868 = vpack.c.b16 %v796, %v788
      %v869 = vpack.c.b16 %v805, %v797
      %v870 = vpack.c.b16 %v806, %v798
      %v871 = vpack.c.b16 %v807, %v799
      %v872 = vpack.c.b16 %v808, %v800
      %v873 = vpack.c.b16 %v809, %v801
      %v874 = vpack.c.b16 %v810, %v802
      %v875 = vpack.c.b16 %v811, %v803
      %v876 = vpack.c.b16 %v812, %v804
      %941 = vmatpush.bf16.msra.mxu0 %v869
      %942 = vmatpush.bf16.msra.mxu0 %v861
      %943 = vmatpush.bf16.msra.mxu0 %v853
      %944 = vmatpush.bf16.msra.mxu0 %v845
      %945 = vmatpush.bf16.msra.mxu0 %v837
      %946 = vmatpush.bf16.msra.mxu0 %v829
      %947 = vmatpush.bf16.msra.mxu0 %v821
      %948 = vmatpush.bf16.msra.mxu0 %v813
      %949 = vmatmul.bf16.gmra.mxu0 %v605
      %v950 = vpop.f32.mrf.mxu0
      %v951 = vadd.f32 0.0, %v950
      %v952 = vpop.f32.mrf.mxu0
      %v953 = vadd.f32 0.0, %v952
      %954 = vmatmul.bf16.gmra.mxu0 %v606
      %v955 = vpop.f32.mrf.mxu0
      %v956 = vadd.f32 0.0, %v955
      %v957 = vpop.f32.mrf.mxu0
      %v958 = vadd.f32 0.0, %v957
      %959 = vmatmul.bf16.gmra.mxu0 %v607
      %v960 = vpop.f32.mrf.mxu0
      %v961 = vadd.f32 0.0, %v960
      %v962 = vpop.f32.mrf.mxu0
      %v963 = vadd.f32 0.0, %v962
      %964 = vmatmul.bf16.gmra.mxu0 %v608
      %v965 = vpop.f32.mrf.mxu0
      %v966 = vadd.f32 0.0, %v965
      %v967 = vpop.f32.mrf.mxu0
      %v968 = vadd.f32 0.0, %v967
      %969 = vmatmul.bf16.gmra.mxu0 %v609
      %v970 = vpop.f32.mrf.mxu0
      %v971 = vadd.f32 0.0, %v970
      %v972 = vpop.f32.mrf.mxu0
      %v973 = vadd.f32 0.0, %v972
      %974 = vmatmul.bf16.gmra.mxu0 %v610
      %v975 = vpop.f32.mrf.mxu0
      %v976 = vadd.f32 0.0, %v975
      %v977 = vpop.f32.mrf.mxu0
      %v978 = vadd.f32 0.0, %v977
      %979 = vmatmul.bf16.gmra.mxu0 %v611
      %v980 = vpop.f32.mrf.mxu0
      %v981 = vadd.f32 0.0, %v980
      %v982 = vpop.f32.mrf.mxu0
      %v983 = vadd.f32 0.0, %v982
      %984 = vmatmul.bf16.gmra.mxu0 %v612
      %v985 = vpop.f32.mrf.mxu0
      %v986 = vadd.f32 0.0, %v985
      %v987 = vpop.f32.mrf.mxu0
      %v988 = vadd.f32 0.0, %v987
      %989 = vdwg.mxu0
      %990 = vmatpush.bf16.msra.mxu0 %v870
      %991 = vmatpush.bf16.msra.mxu0 %v862
      %992 = vmatpush.bf16.msra.mxu0 %v854
      %993 = vmatpush.bf16.msra.mxu0 %v846
      %994 = vmatpush.bf16.msra.mxu0 %v838
      %995 = vmatpush.bf16.msra.mxu0 %v830
      %996 = vmatpush.bf16.msra.mxu0 %v822
      %997 = vmatpush.bf16.msra.mxu0 %v814
      %998 = vmatmul.bf16.gmra.mxu0 %v605
      %v999 = vpop.f32.mrf.mxu0
      %v1000 = vadd.f32 0.0, %v999
      %v1001 = vpop.f32.mrf.mxu0
      %v1002 = vadd.f32 0.0, %v1001
      %1003 = vmatmul.bf16.gmra.mxu0 %v606
      %v1004 = vpop.f32.mrf.mxu0
      %v1005 = vadd.f32 0.0, %v1004
      %v1006 = vpop.f32.mrf.mxu0
      %v1007 = vadd.f32 0.0, %v1006
      %1008 = vmatmul.bf16.gmra.mxu0 %v607
      %v1009 = vpop.f32.mrf.mxu0
      %v1010 = vadd.f32 0.0, %v1009
      %v1011 = vpop.f32.mrf.mxu0
      %v1012 = vadd.f32 0.0, %v1011
      %1013 = vmatmul.bf16.gmra.mxu0 %v608
      %v1014 = vpop.f32.mrf.mxu0
      %v1015 = vadd.f32 0.0, %v1014
      %v1016 = vpop.f32.mrf.mxu0
      %v1017 = vadd.f32 0.0, %v1016
      %1018 = vmatmul.bf16.gmra.mxu0 %v609
      %v1019 = vpop.f32.mrf.mxu0
      %v1020 = vadd.f32 0.0, %v1019
      %v1021 = vpop.f32.mrf.mxu0
      %v1022 = vadd.f32 0.0, %v1021
      %1023 = vmatmul.bf16.gmra.mxu0 %v610
      %v1024 = vpop.f32.mrf.mxu0
      %v1025 = vadd.f32 0.0, %v1024
      %v1026 = vpop.f32.mrf.mxu0
      %v1027 = vadd.f32 0.0, %v1026
      %1028 = vmatmul.bf16.gmra.mxu0 %v611
      %v1029 = vpop.f32.mrf.mxu0
      %v1030 = vadd.f32 0.0, %v1029
      %v1031 = vpop.f32.mrf.mxu0
      %v1032 = vadd.f32 0.0, %v1031
      %1033 = vmatmul.bf16.gmra.mxu0 %v612
      %v1034 = vpop.f32.mrf.mxu0
      %v1035 = vadd.f32 0.0, %v1034
      %v1036 = vpop.f32.mrf.mxu0
      %v1037 = vadd.f32 0.0, %v1036
      %1038 = vdwg.mxu0
      %1039 = vmatpush.bf16.msra.mxu0 %v871
      %1040 = vmatpush.bf16.msra.mxu0 %v863
      %1041 = vmatpush.bf16.msra.mxu0 %v855
      %1042 = vmatpush.bf16.msra.mxu0 %v847
      %1043 = vmatpush.bf16.msra.mxu0 %v839
      %1044 = vmatpush.bf16.msra.mxu0 %v831
      %1045 = vmatpush.bf16.msra.mxu0 %v823
      %1046 = vmatpush.bf16.msra.mxu0 %v815
      %1047 = vmatmul.bf16.gmra.mxu0 %v605
      %v1048 = vpop.f32.mrf.mxu0
      %v1049 = vadd.f32 0.0, %v1048
      %v1050 = vpop.f32.mrf.mxu0
      %v1051 = vadd.f32 0.0, %v1050
      %1052 = vmatmul.bf16.gmra.mxu0 %v606
      %v1053 = vpop.f32.mrf.mxu0
      %v1054 = vadd.f32 0.0, %v1053
      %v1055 = vpop.f32.mrf.mxu0
      %v1056 = vadd.f32 0.0, %v1055
      %1057 = vmatmul.bf16.gmra.mxu0 %v607
      %v1058 = vpop.f32.mrf.mxu0
      %v1059 = vadd.f32 0.0, %v1058
      %v1060 = vpop.f32.mrf.mxu0
      %v1061 = vadd.f32 0.0, %v1060
      %1062 = vmatmul.bf16.gmra.mxu0 %v608
      %v1063 = vpop.f32.mrf.mxu0
      %v1064 = vadd.f32 0.0, %v1063
      %v1065 = vpop.f32.mrf.mxu0
      %v1066 = vadd.f32 0.0, %v1065
      %1067 = vmatmul.bf16.gmra.mxu0 %v609
      %v1068 = vpop.f32.mrf.mxu0
      %v1069 = vadd.f32 0.0, %v1068
      %v1070 = vpop.f32.mrf.mxu0
      %v1071 = vadd.f32 0.0, %v1070
      %1072 = vmatmul.bf16.gmra.mxu0 %v610
      %v1073 = vpop.f32.mrf.mxu0
      %v1074 = vadd.f32 0.0, %v1073
      %v1075 = vpop.f32.mrf.mxu0
      %v1076 = vadd.f32 0.0, %v1075
      %1077 = vmatmul.bf16.gmra.mxu0 %v611
      %v1078 = vpop.f32.mrf.mxu0
      %v1079 = vadd.f32 0.0, %v1078
      %v1080 = vpop.f32.mrf.mxu0
      %v1081 = vadd.f32 0.0, %v1080
      %1082 = vmatmul.bf16.gmra.mxu0 %v612
      %v1083 = vpop.f32.mrf.mxu0
      %v1084 = vadd.f32 0.0, %v1083
      %v1085 = vpop.f32.mrf.mxu0
      %v1086 = vadd.f32 0.0, %v1085
      %1087 = vdwg.mxu0
      %1088 = vmatpush.bf16.msra.mxu0 %v872
      %1089 = vmatpush.bf16.msra.mxu0 %v864
      %1090 = vmatpush.bf16.msra.mxu0 %v856
      %1091 = vmatpush.bf16.msra.mxu0 %v848
      %1092 = vmatpush.bf16.msra.mxu0 %v840
      %1093 = vmatpush.bf16.msra.mxu0 %v832
      %1094 = vmatpush.bf16.msra.mxu0 %v824
      %1095 = vmatpush.bf16.msra.mxu0 %v816
      %1096 = vmatmul.bf16.gmra.mxu0 %v605
      %v1097 = vpop.f32.mrf.mxu0
      %v1098 = vadd.f32 0.0, %v1097
      %v1099 = vpop.f32.mrf.mxu0
      %v1100 = vadd.f32 0.0, %v1099
      %1101 = vmatmul.bf16.gmra.mxu0 %v606
      %v1102 = vpop.f32.mrf.mxu0
      %v1103 = vadd.f32 0.0, %v1102
      %v1104 = vpop.f32.mrf.mxu0
      %v1105 = vadd.f32 0.0, %v1104
      %1106 = vmatmul.bf16.gmra.mxu0 %v607
      %v1107 = vpop.f32.mrf.mxu0
      %v1108 = vadd.f32 0.0, %v1107
      %v1109 = vpop.f32.mrf.mxu0
      %v1110 = vadd.f32 0.0, %v1109
      %1111 = vmatmul.bf16.gmra.mxu0 %v608
      %v1112 = vpop.f32.mrf.mxu0
      %v1113 = vadd.f32 0.0, %v1112
      %v1114 = vpop.f32.mrf.mxu0
      %v1115 = vadd.f32 0.0, %v1114
      %1116 = vmatmul.bf16.gmra.mxu0 %v609
      %v1117 = vpop.f32.mrf.mxu0
      %v1118 = vadd.f32 0.0, %v1117
      %v1119 = vpop.f32.mrf.mxu0
      %v1120 = vadd.f32 0.0, %v1119
      %1121 = vmatmul.bf16.gmra.mxu0 %v610
      %v1122 = vpop.f32.mrf.mxu0
      %v1123 = vadd.f32 0.0, %v1122
      %v1124 = vpop.f32.mrf.mxu0
      %v1125 = vadd.f32 0.0, %v1124
      %1126 = vmatmul.bf16.gmra.mxu0 %v611
      %v1127 = vpop.f32.mrf.mxu0
      %v1128 = vadd.f32 0.0, %v1127
      %v1129 = vpop.f32.mrf.mxu0
      %v1130 = vadd.f32 0.0, %v1129
      %1131 = vmatmul.bf16.gmra.mxu0 %v612
      %v1132 = vpop.f32.mrf.mxu0
      %v1133 = vadd.f32 0.0, %v1132
      %v1134 = vpop.f32.mrf.mxu0
      %v1135 = vadd.f32 0.0, %v1134
      %1136 = vdwg.mxu0
      %1137 = vmatpush.bf16.msra.mxu0 %v873
      %1138 = vmatpush.bf16.msra.mxu0 %v865
      %1139 = vmatpush.bf16.msra.mxu0 %v857
      %1140 = vmatpush.bf16.msra.mxu0 %v849
      %1141 = vmatpush.bf16.msra.mxu0 %v841
      %1142 = vmatpush.bf16.msra.mxu0 %v833
      %1143 = vmatpush.bf16.msra.mxu0 %v825
      %1144 = vmatpush.bf16.msra.mxu0 %v817
      %1145 = vmatmul.bf16.gmra.mxu0 %v605
      %v1146 = vpop.f32.mrf.mxu0
      %v1147 = vadd.f32 0.0, %v1146
      %v1148 = vpop.f32.mrf.mxu0
      %v1149 = vadd.f32 0.0, %v1148
      %1150 = vmatmul.bf16.gmra.mxu0 %v606
      %v1151 = vpop.f32.mrf.mxu0
      %v1152 = vadd.f32 0.0, %v1151
      %v1153 = vpop.f32.mrf.mxu0
      %v1154 = vadd.f32 0.0, %v1153
      %1155 = vmatmul.bf16.gmra.mxu0 %v607
      %v1156 = vpop.f32.mrf.mxu0
      %v1157 = vadd.f32 0.0, %v1156
      %v1158 = vpop.f32.mrf.mxu0
      %v1159 = vadd.f32 0.0, %v1158
      %1160 = vmatmul.bf16.gmra.mxu0 %v608
      %v1161 = vpop.f32.mrf.mxu0
      %v1162 = vadd.f32 0.0, %v1161
      %v1163 = vpop.f32.mrf.mxu0
      %v1164 = vadd.f32 0.0, %v1163
      %1165 = vmatmul.bf16.gmra.mxu0 %v609
      %v1166 = vpop.f32.mrf.mxu0
      %v1167 = vadd.f32 0.0, %v1166
      %v1168 = vpop.f32.mrf.mxu0
      %v1169 = vadd.f32 0.0, %v1168
      %1170 = vmatmul.bf16.gmra.mxu0 %v610
      %v1171 = vpop.f32.mrf.mxu0
      %v1172 = vadd.f32 0.0, %v1171
      %v1173 = vpop.f32.mrf.mxu0
      %v1174 = vadd.f32 0.0, %v1173
      %1175 = vmatmul.bf16.gmra.mxu0 %v611
      %v1176 = vpop.f32.mrf.mxu0
      %v1177 = vadd.f32 0.0, %v1176
      %v1178 = vpop.f32.mrf.mxu0
      %v1179 = vadd.f32 0.0, %v1178
      %1180 = vmatmul.bf16.gmra.mxu0 %v612
      %v1181 = vpop.f32.mrf.mxu0
      %v1182 = vadd.f32 0.0, %v1181
      %v1183 = vpop.f32.mrf.mxu0
      %v1184 = vadd.f32 0.0, %v1183
      %1185 = vdwg.mxu0
      %1186 = vmatpush.bf16.msra.mxu0 %v874
      %1187 = vmatpush.bf16.msra.mxu0 %v866
      %1188 = vmatpush.bf16.msra.mxu0 %v858
      %1189 = vmatpush.bf16.msra.mxu0 %v850
      %1190 = vmatpush.bf16.msra.mxu0 %v842
      %1191 = vmatpush.bf16.msra.mxu0 %v834
      %1192 = vmatpush.bf16.msra.mxu0 %v826
      %1193 = vmatpush.bf16.msra.mxu0 %v818
      %1194 = vmatmul.bf16.gmra.mxu0 %v605
      %v1195 = vpop.f32.mrf.mxu0
      %v1196 = vadd.f32 0.0, %v1195
      %v1197 = vpop.f32.mrf.mxu0
      %v1198 = vadd.f32 0.0, %v1197
      %1199 = vmatmul.bf16.gmra.mxu0 %v606
      %v1200 = vpop.f32.mrf.mxu0
      %v1201 = vadd.f32 0.0, %v1200
      %v1202 = vpop.f32.mrf.mxu0
      %v1203 = vadd.f32 0.0, %v1202
      %1204 = vmatmul.bf16.gmra.mxu0 %v607
      %v1205 = vpop.f32.mrf.mxu0
      %v1206 = vadd.f32 0.0, %v1205
      %v1207 = vpop.f32.mrf.mxu0
      %v1208 = vadd.f32 0.0, %v1207
      %1209 = vmatmul.bf16.gmra.mxu0 %v608
      %v1210 = vpop.f32.mrf.mxu0
      %v1211 = vadd.f32 0.0, %v1210
      %v1212 = vpop.f32.mrf.mxu0
      %v1213 = vadd.f32 0.0, %v1212
      %1214 = vmatmul.bf16.gmra.mxu0 %v609
      %v1215 = vpop.f32.mrf.mxu0
      %v1216 = vadd.f32 0.0, %v1215
      %v1217 = vpop.f32.mrf.mxu0
      %v1218 = vadd.f32 0.0, %v1217
      %1219 = vmatmul.bf16.gmra.mxu0 %v610
      %v1220 = vpop.f32.mrf.mxu0
      %v1221 = vadd.f32 0.0, %v1220
      %v1222 = vpop.f32.mrf.mxu0
      %v1223 = vadd.f32 0.0, %v1222
      %1224 = vmatmul.bf16.gmra.mxu0 %v611
      %v1225 = vpop.f32.mrf.mxu0
      %v1226 = vadd.f32 0.0, %v1225
      %v1227 = vpop.f32.mrf.mxu0
      %v1228 = vadd.f32 0.0, %v1227
      %1229 = vmatmul.bf16.gmra.mxu0 %v612
      %v1230 = vpop.f32.mrf.mxu0
      %v1231 = vadd.f32 0.0, %v1230
      %v1232 = vpop.f32.mrf.mxu0
      %v1233 = vadd.f32 0.0, %v1232
      %1234 = vdwg.mxu0
      %1235 = vmatpush.bf16.msra.mxu0 %v875
      %1236 = vmatpush.bf16.msra.mxu0 %v867
      %1237 = vmatpush.bf16.msra.mxu0 %v859
      %1238 = vmatpush.bf16.msra.mxu0 %v851
      %1239 = vmatpush.bf16.msra.mxu0 %v843
      %1240 = vmatpush.bf16.msra.mxu0 %v835
      %1241 = vmatpush.bf16.msra.mxu0 %v827
      %1242 = vmatpush.bf16.msra.mxu0 %v819
      %1243 = vmatmul.bf16.gmra.mxu0 %v605
      %v1244 = vpop.f32.mrf.mxu0
      %v1245 = vadd.f32 0.0, %v1244
      %v1246 = vpop.f32.mrf.mxu0
      %v1247 = vadd.f32 0.0, %v1246
      %1248 = vmatmul.bf16.gmra.mxu0 %v606
      %v1249 = vpop.f32.mrf.mxu0
      %v1250 = vadd.f32 0.0, %v1249
      %v1251 = vpop.f32.mrf.mxu0
      %v1252 = vadd.f32 0.0, %v1251
      %1253 = vmatmul.bf16.gmra.mxu0 %v607
      %v1254 = vpop.f32.mrf.mxu0
      %v1255 = vadd.f32 0.0, %v1254
      %v1256 = vpop.f32.mrf.mxu0
      %v1257 = vadd.f32 0.0, %v1256
      %1258 = vmatmul.bf16.gmra.mxu0 %v608
      %v1259 = vpop.f32.mrf.mxu0
      %v1260 = vadd.f32 0.0, %v1259
      %v1261 = vpop.f32.mrf.mxu0
      %v1262 = vadd.f32 0.0, %v1261
      %1263 = vmatmul.bf16.gmra.mxu0 %v609
      %v1264 = vpop.f32.mrf.mxu0
      %v1265 = vadd.f32 0.0, %v1264
      %v1266 = vpop.f32.mrf.mxu0
      %v1267 = vadd.f32 0.0, %v1266
      %1268 = vmatmul.bf16.gmra.mxu0 %v610
      %v1269 = vpop.f32.mrf.mxu0
      %v1270 = vadd.f32 0.0, %v1269
      %v1271 = vpop.f32.mrf.mxu0
      %v1272 = vadd.f32 0.0, %v1271
      %1273 = vmatmul.bf16.gmra.mxu0 %v611
      %v1274 = vpop.f32.mrf.mxu0
      %v1275 = vadd.f32 0.0, %v1274
      %v1276 = vpop.f32.mrf.mxu0
      %v1277 = vadd.f32 0.0, %v1276
      %1278 = vmatmul.bf16.gmra.mxu0 %v612
      %v1279 = vpop.f32.mrf.mxu0
      %v1280 = vadd.f32 0.0, %v1279
      %v1281 = vpop.f32.mrf.mxu0
      %v1282 = vadd.f32 0.0, %v1281
      %1283 = vdwg.mxu0
      %1284 = vmatpush.bf16.msra.mxu0 %v876
      %1285 = vmatpush.bf16.msra.mxu0 %v868
      %1286 = vmatpush.bf16.msra.mxu0 %v860
      %1287 = vmatpush.bf16.msra.mxu0 %v852
      %1288 = vmatpush.bf16.msra.mxu0 %v844
      %1289 = vmatpush.bf16.msra.mxu0 %v836
      %1290 = vmatpush.bf16.msra.mxu0 %v828
      %1291 = vmatpush.bf16.msra.mxu0 %v820
      %1292 = vmatmul.bf16.gmra.mxu0 %v605
      %v1293 = vpop.f32.mrf.mxu0
      %v1294 = vadd.f32 0.0, %v1293
      %v1295 = vpop.f32.mrf.mxu0
      %v1296 = vadd.f32 0.0, %v1295
      %1297 = vmatmul.bf16.gmra.mxu0 %v606
      %v1298 = vpop.f32.mrf.mxu0
      %v1299 = vadd.f32 0.0, %v1298
      %v1300 = vpop.f32.mrf.mxu0
      %v1301 = vadd.f32 0.0, %v1300
      %1302 = vmatmul.bf16.gmra.mxu0 %v607
      %v1303 = vpop.f32.mrf.mxu0
      %v1304 = vadd.f32 0.0, %v1303
      %v1305 = vpop.f32.mrf.mxu0
      %v1306 = vadd.f32 0.0, %v1305
      %1307 = vmatmul.bf16.gmra.mxu0 %v608
      %v1308 = vpop.f32.mrf.mxu0
      %v1309 = vadd.f32 0.0, %v1308
      %v1310 = vpop.f32.mrf.mxu0
      %v1311 = vadd.f32 0.0, %v1310
      %1312 = vmatmul.bf16.gmra.mxu0 %v609
      %v1313 = vpop.f32.mrf.mxu0
      %v1314 = vadd.f32 0.0, %v1313
      %v1315 = vpop.f32.mrf.mxu0
      %v1316 = vadd.f32 0.0, %v1315
      %1317 = vmatmul.bf16.gmra.mxu0 %v610
      %v1318 = vpop.f32.mrf.mxu0
      %v1319 = vadd.f32 0.0, %v1318
      %v1320 = vpop.f32.mrf.mxu0
      %v1321 = vadd.f32 0.0, %v1320
      %1322 = vmatmul.bf16.gmra.mxu0 %v611
      %v1323 = vpop.f32.mrf.mxu0
      %v1324 = vadd.f32 0.0, %v1323
      %v1325 = vpop.f32.mrf.mxu0
      %v1326 = vadd.f32 0.0, %v1325
      %1327 = vmatmul.bf16.gmra.mxu0 %v612
      %v1328 = vpop.f32.mrf.mxu0
      %v1329 = vadd.f32 0.0, %v1328
      %v1330 = vpop.f32.mrf.mxu0
      %v1331 = vadd.f32 0.0, %v1330
      %1332 = vdwg.mxu0
      %v1333 = vpack.c.bf16 %v1000, %v951
      %v1334 = vpack.c.bf16 %v1098, %v1049
      %v1335 = vpack.c.bf16 %v1196, %v1147
      %v1336 = vpack.c.bf16 %v1294, %v1245
      %v1337 = vpack.c.bf16 %v1002, %v953
      %v1338 = vpack.c.bf16 %v1100, %v1051
      %v1339 = vpack.c.bf16 %v1198, %v1149
      %v1340 = vpack.c.bf16 %v1296, %v1247
      %v1341 = vpack.c.bf16 %v1005, %v956
      %v1342 = vpack.c.bf16 %v1103, %v1054
      %v1343 = vpack.c.bf16 %v1201, %v1152
      %v1344 = vpack.c.bf16 %v1299, %v1250
      %v1345 = vpack.c.bf16 %v1007, %v958
      %v1346 = vpack.c.bf16 %v1105, %v1056
      %v1347 = vpack.c.bf16 %v1203, %v1154
      %v1348 = vpack.c.bf16 %v1301, %v1252
      %v1349 = vpack.c.bf16 %v1010, %v961
      %v1350 = vpack.c.bf16 %v1108, %v1059
      %v1351 = vpack.c.bf16 %v1206, %v1157
      %v1352 = vpack.c.bf16 %v1304, %v1255
      %v1353 = vpack.c.bf16 %v1012, %v963
      %v1354 = vpack.c.bf16 %v1110, %v1061
      %v1355 = vpack.c.bf16 %v1208, %v1159
      %v1356 = vpack.c.bf16 %v1306, %v1257
      %v1357 = vpack.c.bf16 %v1015, %v966
      %v1358 = vpack.c.bf16 %v1113, %v1064
      %v1359 = vpack.c.bf16 %v1211, %v1162
      %v1360 = vpack.c.bf16 %v1309, %v1260
      %v1361 = vpack.c.bf16 %v1017, %v968
      %v1362 = vpack.c.bf16 %v1115, %v1066
      %v1363 = vpack.c.bf16 %v1213, %v1164
      %v1364 = vpack.c.bf16 %v1311, %v1262
      %v1365 = vpack.c.bf16 %v1020, %v971
      %v1366 = vpack.c.bf16 %v1118, %v1069
      %v1367 = vpack.c.bf16 %v1216, %v1167
      %v1368 = vpack.c.bf16 %v1314, %v1265
      %v1369 = vpack.c.bf16 %v1022, %v973
      %v1370 = vpack.c.bf16 %v1120, %v1071
      %v1371 = vpack.c.bf16 %v1218, %v1169
      %v1372 = vpack.c.bf16 %v1316, %v1267
      %v1373 = vpack.c.bf16 %v1025, %v976
      %v1374 = vpack.c.bf16 %v1123, %v1074
      %v1375 = vpack.c.bf16 %v1221, %v1172
      %v1376 = vpack.c.bf16 %v1319, %v1270
      %v1377 = vpack.c.bf16 %v1027, %v978
      %v1378 = vpack.c.bf16 %v1125, %v1076
      %v1379 = vpack.c.bf16 %v1223, %v1174
      %v1380 = vpack.c.bf16 %v1321, %v1272
      %v1381 = vpack.c.bf16 %v1030, %v981
      %v1382 = vpack.c.bf16 %v1128, %v1079
      %v1383 = vpack.c.bf16 %v1226, %v1177
      %v1384 = vpack.c.bf16 %v1324, %v1275
      %v1385 = vpack.c.bf16 %v1032, %v983
      %v1386 = vpack.c.bf16 %v1130, %v1081
      %v1387 = vpack.c.bf16 %v1228, %v1179
      %v1388 = vpack.c.bf16 %v1326, %v1277
      %v1389 = vpack.c.bf16 %v1035, %v986
      %v1390 = vpack.c.bf16 %v1133, %v1084
      %v1391 = vpack.c.bf16 %v1231, %v1182
      %v1392 = vpack.c.bf16 %v1329, %v1280
      %v1393 = vpack.c.bf16 %v1037, %v988
      %v1394 = vpack.c.bf16 %v1135, %v1086
      %v1395 = vpack.c.bf16 %v1233, %v1184
      %v1396 = vpack.c.bf16 %v1331, %v1282
      %v1397 = vunpack.c.h.b16 %v212
      %v1398 = vunpack.c.h.b16 %v214
      %v1399 = vunpack.c.h.b16 %v216
      %v1400 = vunpack.c.h.b16 %v218
      %v1401 = vunpack.c.h.b16 %v220
      %v1402 = vunpack.c.h.b16 %v222
      %v1403 = vunpack.c.h.b16 %v224
      %v1404 = vunpack.c.h.b16 %v226
      %v1405 = vunpack.c.h.b16 %v228
      %v1406 = vunpack.c.h.b16 %v230
      %v1407 = vunpack.c.h.b16 %v232
      %v1408 = vunpack.c.h.b16 %v234
      %v1409 = vunpack.c.h.b16 %v236
      %v1410 = vunpack.c.h.b16 %v238
      %v1411 = vunpack.c.h.b16 %v240
      %v1412 = vunpack.c.h.b16 %v242
      %v1413 = vpack.c.b16 %v1398, %v1397
      %v1414 = vpack.c.b16 %v1400, %v1399
      %v1415 = vpack.c.b16 %v1402, %v1401
      %v1416 = vpack.c.b16 %v1404, %v1403
      %v1417 = vpack.c.b16 %v1406, %v1405
      %v1418 = vpack.c.b16 %v1408, %v1407
      %v1419 = vpack.c.b16 %v1410, %v1409
      %v1420 = vpack.c.b16 %v1412, %v1411
      %v1445 = vunpack.c.l.b16 %v1333
      %v1446 = vunpack.c.l.b16 %v1337
      %v1447 = vunpack.c.l.b16 %v1341
      %v1448 = vunpack.c.l.b16 %v1345
      %v1449 = vunpack.c.l.b16 %v1349
      %v1450 = vunpack.c.l.b16 %v1353
      %v1451 = vunpack.c.l.b16 %v1357
      %v1452 = vunpack.c.l.b16 %v1361
      %v1453 = vunpack.c.l.b16 %v1365
      %v1454 = vunpack.c.l.b16 %v1369
      %v1455 = vunpack.c.l.b16 %v1373
      %v1456 = vunpack.c.l.b16 %v1377
      %v1457 = vunpack.c.l.b16 %v1381
      %v1458 = vunpack.c.l.b16 %v1385
      %v1459 = vunpack.c.l.b16 %v1389
      %v1460 = vunpack.c.l.b16 %v1393
      %v1461 = vpack.c.b16 %v1446, %v1445
      %v1462 = vpack.c.b16 %v1448, %v1447
      %v1463 = vpack.c.b16 %v1450, %v1449
      %v1464 = vpack.c.b16 %v1452, %v1451
      %v1465 = vpack.c.b16 %v1454, %v1453
      %v1466 = vpack.c.b16 %v1456, %v1455
      %v1467 = vpack.c.b16 %v1458, %v1457
      %v1468 = vpack.c.b16 %v1460, %v1459
      %1477 = vmatpush.bf16.xpose.msra.mxu0 %v1468
      %1478 = vmatpush.bf16.xpose.msra.mxu0 %v1467
      %1479 = vmatpush.bf16.xpose.msra.mxu0 %v1466
      %1480 = vmatpush.bf16.xpose.msra.mxu0 %v1465
      %1481 = vmatpush.bf16.xpose.msra.mxu0 %v1464
      %1482 = vmatpush.bf16.xpose.msra.mxu0 %v1463
      %1483 = vmatpush.bf16.xpose.msra.mxu0 %v1462
      %1484 = vmatpush.bf16.xpose.msra.mxu0 %v1461
      %1485 = vmatmul.bf16.gmra.mxu0 %v1413
      %v1486 = vpop.f32.mrf.mxu0
      %v1487 = vadd.f32 0.0, %v1486
      %v1488 = vpop.f32.mrf.mxu0
      %v1489 = vadd.f32 0.0, %v1488
      %1490 = vmatmul.bf16.gmra.mxu0 %v1414
      %v1491 = vpop.f32.mrf.mxu0
      %v1492 = vadd.f32 0.0, %v1491
      %v1493 = vpop.f32.mrf.mxu0
      %v1494 = vadd.f32 0.0, %v1493
      %1495 = vmatmul.bf16.gmra.mxu0 %v1415
      %v1496 = vpop.f32.mrf.mxu0
      %v1497 = vadd.f32 0.0, %v1496
      %v1498 = vpop.f32.mrf.mxu0
      %v1499 = vadd.f32 0.0, %v1498
      %1500 = vmatmul.bf16.gmra.mxu0 %v1416
      %v1501 = vpop.f32.mrf.mxu0
      %v1502 = vadd.f32 0.0, %v1501
      %v1503 = vpop.f32.mrf.mxu0
      %v1504 = vadd.f32 0.0, %v1503
      %1505 = vmatmul.bf16.gmra.mxu0 %v1417
      %v1506 = vpop.f32.mrf.mxu0
      %v1507 = vadd.f32 0.0, %v1506
      %v1508 = vpop.f32.mrf.mxu0
      %v1509 = vadd.f32 0.0, %v1508
      %1510 = vmatmul.bf16.gmra.mxu0 %v1418
      %v1511 = vpop.f32.mrf.mxu0
      %v1512 = vadd.f32 0.0, %v1511
      %v1513 = vpop.f32.mrf.mxu0
      %v1514 = vadd.f32 0.0, %v1513
      %1515 = vmatmul.bf16.gmra.mxu0 %v1419
      %v1516 = vpop.f32.mrf.mxu0
      %v1517 = vadd.f32 0.0, %v1516
      %v1518 = vpop.f32.mrf.mxu0
      %v1519 = vadd.f32 0.0, %v1518
      %1520 = vmatmul.bf16.gmra.mxu0 %v1420
      %v1521 = vpop.f32.mrf.mxu0
      %v1522 = vadd.f32 0.0, %v1521
      %v1523 = vpop.f32.mrf.mxu0
      %v1524 = vadd.f32 0.0, %v1523
      %1525 = vdwg.mxu0
      %1526 = vst [vmem:[%s210] sm:$0xff] %v1487
      %1527 = vst [vmem:[%s210 + $0x8] sm:$0xff] %v1489
      %1528 = vst [vmem:[%s210 + $0x10] sm:$0xff] %v1492
      %1529 = vst [vmem:[%s210 + $0x18] sm:$0xff] %v1494
      %1530 = vst [vmem:[%s210 + $0x20] sm:$0xff] %v1497
      %1531 = vst [vmem:[%s210 + $0x28] sm:$0xff] %v1499
      %1532 = vst [vmem:[%s210 + $0x30] sm:$0xff] %v1502
      %1533 = vst [vmem:[%s210 + $0x38] sm:$0xff] %v1504
      %1534 = vst [vmem:[%s210 + $0x40] sm:$0xff] %v1507
      %1535 = vst [vmem:[%s210 + $0x48] sm:$0xff] %v1509
      %1536 = vst [vmem:[%s210 + $0x50] sm:$0xff] %v1512
      %1537 = vst [vmem:[%s210 + $0x58] sm:$0xff] %v1514
      %1538 = vst [vmem:[%s210 + $0x60] sm:$0xff] %v1517
      %1539 = vst [vmem:[%s210 + $0x68] sm:$0xff] %v1519
      %1540 = vst [vmem:[%s210 + $0x70] sm:$0xff] %v1522
      %1541 = vst [vmem:[%s210 + $0x78] sm:$0xff] %v1524
      %v1542 = vunpack.c.h.b16 %v1333
      %v1543 = vunpack.c.h.b16 %v1337
      %v1544 = vunpack.c.h.b16 %v1341
      %v1545 = vunpack.c.h.b16 %v1345
      %v1546 = vunpack.c.h.b16 %v1349
      %v1547 = vunpack.c.h.b16 %v1353
      %v1548 = vunpack.c.h.b16 %v1357
      %v1549 = vunpack.c.h.b16 %v1361
      %v1550 = vunpack.c.h.b16 %v1365
      %v1551 = vunpack.c.h.b16 %v1369
      %v1552 = vunpack.c.h.b16 %v1373
      %v1553 = vunpack.c.h.b16 %v1377
      %v1554 = vunpack.c.h.b16 %v1381
      %v1555 = vunpack.c.h.b16 %v1385
      %v1556 = vunpack.c.h.b16 %v1389
      %v1557 = vunpack.c.h.b16 %v1393
      %v1558 = vpack.c.b16 %v1543, %v1542
      %v1559 = vpack.c.b16 %v1545, %v1544
      %v1560 = vpack.c.b16 %v1547, %v1546
      %v1561 = vpack.c.b16 %v1549, %v1548
      %v1562 = vpack.c.b16 %v1551, %v1550
      %v1563 = vpack.c.b16 %v1553, %v1552
      %v1564 = vpack.c.b16 %v1555, %v1554
      %v1565 = vpack.c.b16 %v1557, %v1556
      %1574 = vmatpush.bf16.xpose.msra.mxu0 %v1565
      %1575 = vmatpush.bf16.xpose.msra.mxu0 %v1564
      %1576 = vmatpush.bf16.xpose.msra.mxu0 %v1563
      %1577 = vmatpush.bf16.xpose.msra.mxu0 %v1562
      %1578 = vmatpush.bf16.xpose.msra.mxu0 %v1561
      %1579 = vmatpush.bf16.xpose.msra.mxu0 %v1560
      %1580 = vmatpush.bf16.xpose.msra.mxu0 %v1559
      %1581 = vmatpush.bf16.xpose.msra.mxu0 %v1558
      %1582 = vmatmul.bf16.gmra.mxu0 %v1413
      %v1583 = vpop.f32.mrf.mxu0
      %v1584 = vadd.f32 0.0, %v1583
      %v1585 = vpop.f32.mrf.mxu0
      %v1586 = vadd.f32 0.0, %v1585
      %1587 = vmatmul.bf16.gmra.mxu0 %v1414
      %v1588 = vpop.f32.mrf.mxu0
      %v1589 = vadd.f32 0.0, %v1588
      %v1590 = vpop.f32.mrf.mxu0
      %v1591 = vadd.f32 0.0, %v1590
      %1592 = vmatmul.bf16.gmra.mxu0 %v1415
      %v1593 = vpop.f32.mrf.mxu0
      %v1594 = vadd.f32 0.0, %v1593
      %v1595 = vpop.f32.mrf.mxu0
      %v1596 = vadd.f32 0.0, %v1595
      %1597 = vmatmul.bf16.gmra.mxu0 %v1416
      %v1598 = vpop.f32.mrf.mxu0
      %v1599 = vadd.f32 0.0, %v1598
      %v1600 = vpop.f32.mrf.mxu0
      %v1601 = vadd.f32 0.0, %v1600
      %1602 = vmatmul.bf16.gmra.mxu0 %v1417
      %v1603 = vpop.f32.mrf.mxu0
      %v1604 = vadd.f32 0.0, %v1603
      %v1605 = vpop.f32.mrf.mxu0
      %v1606 = vadd.f32 0.0, %v1605
      %1607 = vmatmul.bf16.gmra.mxu0 %v1418
      %v1608 = vpop.f32.mrf.mxu0
      %v1609 = vadd.f32 0.0, %v1608
      %v1610 = vpop.f32.mrf.mxu0
      %v1611 = vadd.f32 0.0, %v1610
      %1612 = vmatmul.bf16.gmra.mxu0 %v1419
      %v1613 = vpop.f32.mrf.mxu0
      %v1614 = vadd.f32 0.0, %v1613
      %v1615 = vpop.f32.mrf.mxu0
      %v1616 = vadd.f32 0.0, %v1615
      %1617 = vmatmul.bf16.gmra.mxu0 %v1420
      %v1618 = vpop.f32.mrf.mxu0
      %v1619 = vadd.f32 0.0, %v1618
      %v1620 = vpop.f32.mrf.mxu0
      %v1621 = vadd.f32 0.0, %v1620
      %1622 = vdwg.mxu0
      %s1623 = scalar_lea.vmem %s210, 128
      %1624 = vst [vmem:[%s1623] sm:$0xff] %v1584
      %1625 = vst [vmem:[%s1623 + $0x8] sm:$0xff] %v1586
      %1626 = vst [vmem:[%s1623 + $0x10] sm:$0xff] %v1589
      %1627 = vst [vmem:[%s1623 + $0x18] sm:$0xff] %v1591
      %1628 = vst [vmem:[%s1623 + $0x20] sm:$0xff] %v1594
      %1629 = vst [vmem:[%s1623 + $0x28] sm:$0xff] %v1596
      %1630 = vst [vmem:[%s1623 + $0x30] sm:$0xff] %v1599
      %1631 = vst [vmem:[%s1623 + $0x38] sm:$0xff] %v1601
      %1632 = vst [vmem:[%s1623 + $0x40] sm:$0xff] %v1604
      %1633 = vst [vmem:[%s1623 + $0x48] sm:$0xff] %v1606
      %1634 = vst [vmem:[%s1623 + $0x50] sm:$0xff] %v1609
      %1635 = vst [vmem:[%s1623 + $0x58] sm:$0xff] %v1611
      %1636 = vst [vmem:[%s1623 + $0x60] sm:$0xff] %v1614
      %1637 = vst [vmem:[%s1623 + $0x68] sm:$0xff] %v1616
      %1638 = vst [vmem:[%s1623 + $0x70] sm:$0xff] %v1619
      %1639 = vst [vmem:[%s1623 + $0x78] sm:$0xff] %v1621
      %v1656 = vunpack.c.l.b16 %v1334
      %v1657 = vunpack.c.l.b16 %v1338
      %v1658 = vunpack.c.l.b16 %v1342
      %v1659 = vunpack.c.l.b16 %v1346
      %v1660 = vunpack.c.l.b16 %v1350
      %v1661 = vunpack.c.l.b16 %v1354
      %v1662 = vunpack.c.l.b16 %v1358
      %v1663 = vunpack.c.l.b16 %v1362
      %v1664 = vunpack.c.l.b16 %v1366
      %v1665 = vunpack.c.l.b16 %v1370
      %v1666 = vunpack.c.l.b16 %v1374
      %v1667 = vunpack.c.l.b16 %v1378
      %v1668 = vunpack.c.l.b16 %v1382
      %v1669 = vunpack.c.l.b16 %v1386
      %v1670 = vunpack.c.l.b16 %v1390
      %v1671 = vunpack.c.l.b16 %v1394
      %v1672 = vpack.c.b16 %v1657, %v1656
      %v1673 = vpack.c.b16 %v1659, %v1658
      %v1674 = vpack.c.b16 %v1661, %v1660
      %v1675 = vpack.c.b16 %v1663, %v1662
      %v1676 = vpack.c.b16 %v1665, %v1664
      %v1677 = vpack.c.b16 %v1667, %v1666
      %v1678 = vpack.c.b16 %v1669, %v1668
      %v1679 = vpack.c.b16 %v1671, %v1670
      %1688 = vmatpush.bf16.xpose.msra.mxu0 %v1679
      %1689 = vmatpush.bf16.xpose.msra.mxu0 %v1678
      %1690 = vmatpush.bf16.xpose.msra.mxu0 %v1677
      %1691 = vmatpush.bf16.xpose.msra.mxu0 %v1676
      %1692 = vmatpush.bf16.xpose.msra.mxu0 %v1675
      %1693 = vmatpush.bf16.xpose.msra.mxu0 %v1674
      %1694 = vmatpush.bf16.xpose.msra.mxu0 %v1673
      %1695 = vmatpush.bf16.xpose.msra.mxu0 %v1672
      %1696 = vmatmul.bf16.gmra.mxu0 %v1413
      %v1697 = vpop.f32.mrf.mxu0
      %v1698 = vadd.f32 0.0, %v1697
      %v1699 = vpop.f32.mrf.mxu0
      %v1700 = vadd.f32 0.0, %v1699
      %1701 = vmatmul.bf16.gmra.mxu0 %v1414
      %v1702 = vpop.f32.mrf.mxu0
      %v1703 = vadd.f32 0.0, %v1702
      %v1704 = vpop.f32.mrf.mxu0
      %v1705 = vadd.f32 0.0, %v1704
      %1706 = vmatmul.bf16.gmra.mxu0 %v1415
      %v1707 = vpop.f32.mrf.mxu0
      %v1708 = vadd.f32 0.0, %v1707
      %v1709 = vpop.f32.mrf.mxu0
      %v1710 = vadd.f32 0.0, %v1709
      %1711 = vmatmul.bf16.gmra.mxu0 %v1416
      %v1712 = vpop.f32.mrf.mxu0
      %v1713 = vadd.f32 0.0, %v1712
      %v1714 = vpop.f32.mrf.mxu0
      %v1715 = vadd.f32 0.0, %v1714
      %1716 = vmatmul.bf16.gmra.mxu0 %v1417
      %v1717 = vpop.f32.mrf.mxu0
      %v1718 = vadd.f32 0.0, %v1717
      %v1719 = vpop.f32.mrf.mxu0
      %v1720 = vadd.f32 0.0, %v1719
      %1721 = vmatmul.bf16.gmra.mxu0 %v1418
      %v1722 = vpop.f32.mrf.mxu0
      %v1723 = vadd.f32 0.0, %v1722
      %v1724 = vpop.f32.mrf.mxu0
      %v1725 = vadd.f32 0.0, %v1724
      %1726 = vmatmul.bf16.gmra.mxu0 %v1419
      %v1727 = vpop.f32.mrf.mxu0
      %v1728 = vadd.f32 0.0, %v1727
      %v1729 = vpop.f32.mrf.mxu0
      %v1730 = vadd.f32 0.0, %v1729
      %1731 = vmatmul.bf16.gmra.mxu0 %v1420
      %v1732 = vpop.f32.mrf.mxu0
      %v1733 = vadd.f32 0.0, %v1732
      %v1734 = vpop.f32.mrf.mxu0
      %v1735 = vadd.f32 0.0, %v1734
      %1736 = vdwg.mxu0
      %s1737 = scalar_lea.vmem %s210, 256
      %1738 = vst [vmem:[%s1737] sm:$0xff] %v1698
      %1739 = vst [vmem:[%s1737 + $0x8] sm:$0xff] %v1700
      %1740 = vst [vmem:[%s1737 + $0x10] sm:$0xff] %v1703
      %1741 = vst [vmem:[%s1737 + $0x18] sm:$0xff] %v1705
      %1742 = vst [vmem:[%s1737 + $0x20] sm:$0xff] %v1708
      %1743 = vst [vmem:[%s1737 + $0x28] sm:$0xff] %v1710
      %1744 = vst [vmem:[%s1737 + $0x30] sm:$0xff] %v1713
      %1745 = vst [vmem:[%s1737 + $0x38] sm:$0xff] %v1715
      %1746 = vst [vmem:[%s1737 + $0x40] sm:$0xff] %v1718
      %1747 = vst [vmem:[%s1737 + $0x48] sm:$0xff] %v1720
      %1748 = vst [vmem:[%s1737 + $0x50] sm:$0xff] %v1723
      %1749 = vst [vmem:[%s1737 + $0x58] sm:$0xff] %v1725
      %1750 = vst [vmem:[%s1737 + $0x60] sm:$0xff] %v1728
      %1751 = vst [vmem:[%s1737 + $0x68] sm:$0xff] %v1730
      %1752 = vst [vmem:[%s1737 + $0x70] sm:$0xff] %v1733
      %1753 = vst [vmem:[%s1737 + $0x78] sm:$0xff] %v1735
      %v1754 = vunpack.c.h.b16 %v1334
      %v1755 = vunpack.c.h.b16 %v1338
      %v1756 = vunpack.c.h.b16 %v1342
      %v1757 = vunpack.c.h.b16 %v1346
      %v1758 = vunpack.c.h.b16 %v1350
      %v1759 = vunpack.c.h.b16 %v1354
      %v1760 = vunpack.c.h.b16 %v1358
      %v1761 = vunpack.c.h.b16 %v1362
      %v1762 = vunpack.c.h.b16 %v1366
      %v1763 = vunpack.c.h.b16 %v1370
      %v1764 = vunpack.c.h.b16 %v1374
      %v1765 = vunpack.c.h.b16 %v1378
      %v1766 = vunpack.c.h.b16 %v1382
      %v1767 = vunpack.c.h.b16 %v1386
      %v1768 = vunpack.c.h.b16 %v1390
      %v1769 = vunpack.c.h.b16 %v1394
      %v1770 = vpack.c.b16 %v1755, %v1754
      %v1771 = vpack.c.b16 %v1757, %v1756
      %v1772 = vpack.c.b16 %v1759, %v1758
      %v1773 = vpack.c.b16 %v1761, %v1760
      %v1774 = vpack.c.b16 %v1763, %v1762
      %v1775 = vpack.c.b16 %v1765, %v1764
      %v1776 = vpack.c.b16 %v1767, %v1766
      %v1777 = vpack.c.b16 %v1769, %v1768
      %1786 = vmatpush.bf16.xpose.msra.mxu0 %v1777
      %1787 = vmatpush.bf16.xpose.msra.mxu0 %v1776
      %1788 = vmatpush.bf16.xpose.msra.mxu0 %v1775
      %1789 = vmatpush.bf16.xpose.msra.mxu0 %v1774
      %1790 = vmatpush.bf16.xpose.msra.mxu0 %v1773
      %1791 = vmatpush.bf16.xpose.msra.mxu0 %v1772
      %1792 = vmatpush.bf16.xpose.msra.mxu0 %v1771
      %1793 = vmatpush.bf16.xpose.msra.mxu0 %v1770
      %1794 = vmatmul.bf16.gmra.mxu0 %v1413
      %v1795 = vpop.f32.mrf.mxu0
      %v1796 = vadd.f32 0.0, %v1795
      %v1797 = vpop.f32.mrf.mxu0
      %v1798 = vadd.f32 0.0, %v1797
      %1799 = vmatmul.bf16.gmra.mxu0 %v1414
      %v1800 = vpop.f32.mrf.mxu0
      %v1801 = vadd.f32 0.0, %v1800
      %v1802 = vpop.f32.mrf.mxu0
      %v1803 = vadd.f32 0.0, %v1802
      %1804 = vmatmul.bf16.gmra.mxu0 %v1415
      %v1805 = vpop.f32.mrf.mxu0
      %v1806 = vadd.f32 0.0, %v1805
      %v1807 = vpop.f32.mrf.mxu0
      %v1808 = vadd.f32 0.0, %v1807
      %1809 = vmatmul.bf16.gmra.mxu0 %v1416
      %v1810 = vpop.f32.mrf.mxu0
      %v1811 = vadd.f32 0.0, %v1810
      %v1812 = vpop.f32.mrf.mxu0
      %v1813 = vadd.f32 0.0, %v1812
      %1814 = vmatmul.bf16.gmra.mxu0 %v1417
      %v1815 = vpop.f32.mrf.mxu0
      %v1816 = vadd.f32 0.0, %v1815
      %v1817 = vpop.f32.mrf.mxu0
      %v1818 = vadd.f32 0.0, %v1817
      %1819 = vmatmul.bf16.gmra.mxu0 %v1418
      %v1820 = vpop.f32.mrf.mxu0
      %v1821 = vadd.f32 0.0, %v1820
      %v1822 = vpop.f32.mrf.mxu0
      %v1823 = vadd.f32 0.0, %v1822
      %1824 = vmatmul.bf16.gmra.mxu0 %v1419
      %v1825 = vpop.f32.mrf.mxu0
      %v1826 = vadd.f32 0.0, %v1825
      %v1827 = vpop.f32.mrf.mxu0
      %v1828 = vadd.f32 0.0, %v1827
      %1829 = vmatmul.bf16.gmra.mxu0 %v1420
      %v1830 = vpop.f32.mrf.mxu0
      %v1831 = vadd.f32 0.0, %v1830
      %v1832 = vpop.f32.mrf.mxu0
      %v1833 = vadd.f32 0.0, %v1832
      %1834 = vdwg.mxu0
      %s1835 = scalar_lea.vmem %s210, 384
      %1836 = vst [vmem:[%s1835] sm:$0xff] %v1796
      %1837 = vst [vmem:[%s1835 + $0x8] sm:$0xff] %v1798
      %1838 = vst [vmem:[%s1835 + $0x10] sm:$0xff] %v1801
      %1839 = vst [vmem:[%s1835 + $0x18] sm:$0xff] %v1803
      %1840 = vst [vmem:[%s1835 + $0x20] sm:$0xff] %v1806
      %1841 = vst [vmem:[%s1835 + $0x28] sm:$0xff] %v1808
      %1842 = vst [vmem:[%s1835 + $0x30] sm:$0xff] %v1811
      %1843 = vst [vmem:[%s1835 + $0x38] sm:$0xff] %v1813
      %1844 = vst [vmem:[%s1835 + $0x40] sm:$0xff] %v1816
      %1845 = vst [vmem:[%s1835 + $0x48] sm:$0xff] %v1818
      %1846 = vst [vmem:[%s1835 + $0x50] sm:$0xff] %v1821
      %1847 = vst [vmem:[%s1835 + $0x58] sm:$0xff] %v1823
      %1848 = vst [vmem:[%s1835 + $0x60] sm:$0xff] %v1826
      %1849 = vst [vmem:[%s1835 + $0x68] sm:$0xff] %v1828
      %1850 = vst [vmem:[%s1835 + $0x70] sm:$0xff] %v1831
      %1851 = vst [vmem:[%s1835 + $0x78] sm:$0xff] %v1833
      %v1868 = vunpack.c.l.b16 %v1335
      %v1869 = vunpack.c.l.b16 %v1339
      %v1870 = vunpack.c.l.b16 %v1343
      %v1871 = vunpack.c.l.b16 %v1347
      %v1872 = vunpack.c.l.b16 %v1351
      %v1873 = vunpack.c.l.b16 %v1355
      %v1874 = vunpack.c.l.b16 %v1359
      %v1875 = vunpack.c.l.b16 %v1363
      %v1876 = vunpack.c.l.b16 %v1367
      %v1877 = vunpack.c.l.b16 %v1371
      %v1878 = vunpack.c.l.b16 %v1375
      %v1879 = vunpack.c.l.b16 %v1379
      %v1880 = vunpack.c.l.b16 %v1383
      %v1881 = vunpack.c.l.b16 %v1387
      %v1882 = vunpack.c.l.b16 %v1391
      %v1883 = vunpack.c.l.b16 %v1395
      %v1884 = vpack.c.b16 %v1869, %v1868
      %v1885 = vpack.c.b16 %v1871, %v1870
      %v1886 = vpack.c.b16 %v1873, %v1872
      %v1887 = vpack.c.b16 %v1875, %v1874
      %v1888 = vpack.c.b16 %v1877, %v1876
      %v1889 = vpack.c.b16 %v1879, %v1878
      %v1890 = vpack.c.b16 %v1881, %v1880
      %v1891 = vpack.c.b16 %v1883, %v1882
      %1900 = vmatpush.bf16.xpose.msra.mxu0 %v1891
      %1901 = vmatpush.bf16.xpose.msra.mxu0 %v1890
      %1902 = vmatpush.bf16.xpose.msra.mxu0 %v1889
      %1903 = vmatpush.bf16.xpose.msra.mxu0 %v1888
      %1904 = vmatpush.bf16.xpose.msra.mxu0 %v1887
      %1905 = vmatpush.bf16.xpose.msra.mxu0 %v1886
      %1906 = vmatpush.bf16.xpose.msra.mxu0 %v1885
      %1907 = vmatpush.bf16.xpose.msra.mxu0 %v1884
      %1908 = vmatmul.bf16.gmra.mxu0 %v1413
      %v1909 = vpop.f32.mrf.mxu0
      %v1910 = vadd.f32 0.0, %v1909
      %v1911 = vpop.f32.mrf.mxu0
      %v1912 = vadd.f32 0.0, %v1911
      %1913 = vmatmul.bf16.gmra.mxu0 %v1414
      %v1914 = vpop.f32.mrf.mxu0
      %v1915 = vadd.f32 0.0, %v1914
      %v1916 = vpop.f32.mrf.mxu0
      %v1917 = vadd.f32 0.0, %v1916
      %1918 = vmatmul.bf16.gmra.mxu0 %v1415
      %v1919 = vpop.f32.mrf.mxu0
      %v1920 = vadd.f32 0.0, %v1919
      %v1921 = vpop.f32.mrf.mxu0
      %v1922 = vadd.f32 0.0, %v1921
      %1923 = vmatmul.bf16.gmra.mxu0 %v1416
      %v1924 = vpop.f32.mrf.mxu0
      %v1925 = vadd.f32 0.0, %v1924
      %v1926 = vpop.f32.mrf.mxu0
      %v1927 = vadd.f32 0.0, %v1926
      %1928 = vmatmul.bf16.gmra.mxu0 %v1417
      %v1929 = vpop.f32.mrf.mxu0
      %v1930 = vadd.f32 0.0, %v1929
      %v1931 = vpop.f32.mrf.mxu0
      %v1932 = vadd.f32 0.0, %v1931
      %1933 = vmatmul.bf16.gmra.mxu0 %v1418
      %v1934 = vpop.f32.mrf.mxu0
      %v1935 = vadd.f32 0.0, %v1934
      %v1936 = vpop.f32.mrf.mxu0
      %v1937 = vadd.f32 0.0, %v1936
      %1938 = vmatmul.bf16.gmra.mxu0 %v1419
      %v1939 = vpop.f32.mrf.mxu0
      %v1940 = vadd.f32 0.0, %v1939
      %v1941 = vpop.f32.mrf.mxu0
      %v1942 = vadd.f32 0.0, %v1941
      %1943 = vmatmul.bf16.gmra.mxu0 %v1420
      %v1944 = vpop.f32.mrf.mxu0
      %v1945 = vadd.f32 0.0, %v1944
      %v1946 = vpop.f32.mrf.mxu0
      %v1947 = vadd.f32 0.0, %v1946
      %1948 = vdwg.mxu0
      %s1949 = scalar_lea.vmem %s210, 512
      %1950 = vst [vmem:[%s1949] sm:$0xff] %v1910
      %1951 = vst [vmem:[%s1949 + $0x8] sm:$0xff] %v1912
      %1952 = vst [vmem:[%s1949 + $0x10] sm:$0xff] %v1915
      %1953 = vst [vmem:[%s1949 + $0x18] sm:$0xff] %v1917
      %1954 = vst [vmem:[%s1949 + $0x20] sm:$0xff] %v1920
      %1955 = vst [vmem:[%s1949 + $0x28] sm:$0xff] %v1922
      %1956 = vst [vmem:[%s1949 + $0x30] sm:$0xff] %v1925
      %1957 = vst [vmem:[%s1949 + $0x38] sm:$0xff] %v1927
      %1958 = vst [vmem:[%s1949 + $0x40] sm:$0xff] %v1930
      %1959 = vst [vmem:[%s1949 + $0x48] sm:$0xff] %v1932
      %1960 = vst [vmem:[%s1949 + $0x50] sm:$0xff] %v1935
      %1961 = vst [vmem:[%s1949 + $0x58] sm:$0xff] %v1937
      %1962 = vst [vmem:[%s1949 + $0x60] sm:$0xff] %v1940
      %1963 = vst [vmem:[%s1949 + $0x68] sm:$0xff] %v1942
      %1964 = vst [vmem:[%s1949 + $0x70] sm:$0xff] %v1945
      %1965 = vst [vmem:[%s1949 + $0x78] sm:$0xff] %v1947
      %v1966 = vunpack.c.h.b16 %v1335
      %v1967 = vunpack.c.h.b16 %v1339
      %v1968 = vunpack.c.h.b16 %v1343
      %v1969 = vunpack.c.h.b16 %v1347
      %v1970 = vunpack.c.h.b16 %v1351
      %v1971 = vunpack.c.h.b16 %v1355
      %v1972 = vunpack.c.h.b16 %v1359
      %v1973 = vunpack.c.h.b16 %v1363
      %v1974 = vunpack.c.h.b16 %v1367
      %v1975 = vunpack.c.h.b16 %v1371
      %v1976 = vunpack.c.h.b16 %v1375
      %v1977 = vunpack.c.h.b16 %v1379
      %v1978 = vunpack.c.h.b16 %v1383
      %v1979 = vunpack.c.h.b16 %v1387
      %v1980 = vunpack.c.h.b16 %v1391
      %v1981 = vunpack.c.h.b16 %v1395
      %v1982 = vpack.c.b16 %v1967, %v1966
      %v1983 = vpack.c.b16 %v1969, %v1968
      %v1984 = vpack.c.b16 %v1971, %v1970
      %v1985 = vpack.c.b16 %v1973, %v1972
      %v1986 = vpack.c.b16 %v1975, %v1974
      %v1987 = vpack.c.b16 %v1977, %v1976
      %v1988 = vpack.c.b16 %v1979, %v1978
      %v1989 = vpack.c.b16 %v1981, %v1980
      %1998 = vmatpush.bf16.xpose.msra.mxu0 %v1989
      %1999 = vmatpush.bf16.xpose.msra.mxu0 %v1988
      %2000 = vmatpush.bf16.xpose.msra.mxu0 %v1987
      %2001 = vmatpush.bf16.xpose.msra.mxu0 %v1986
      %2002 = vmatpush.bf16.xpose.msra.mxu0 %v1985
      %2003 = vmatpush.bf16.xpose.msra.mxu0 %v1984
      %2004 = vmatpush.bf16.xpose.msra.mxu0 %v1983
      %2005 = vmatpush.bf16.xpose.msra.mxu0 %v1982
      %2006 = vmatmul.bf16.gmra.mxu0 %v1413
      %v2007 = vpop.f32.mrf.mxu0
      %v2008 = vadd.f32 0.0, %v2007
      %v2009 = vpop.f32.mrf.mxu0
      %v2010 = vadd.f32 0.0, %v2009
      %2011 = vmatmul.bf16.gmra.mxu0 %v1414
      %v2012 = vpop.f32.mrf.mxu0
      %v2013 = vadd.f32 0.0, %v2012
      %v2014 = vpop.f32.mrf.mxu0
      %v2015 = vadd.f32 0.0, %v2014
      %2016 = vmatmul.bf16.gmra.mxu0 %v1415
      %v2017 = vpop.f32.mrf.mxu0
      %v2018 = vadd.f32 0.0, %v2017
      %v2019 = vpop.f32.mrf.mxu0
      %v2020 = vadd.f32 0.0, %v2019
      %2021 = vmatmul.bf16.gmra.mxu0 %v1416
      %v2022 = vpop.f32.mrf.mxu0
      %v2023 = vadd.f32 0.0, %v2022
      %v2024 = vpop.f32.mrf.mxu0
      %v2025 = vadd.f32 0.0, %v2024
      %2026 = vmatmul.bf16.gmra.mxu0 %v1417
      %v2027 = vpop.f32.mrf.mxu0
      %v2028 = vadd.f32 0.0, %v2027
      %v2029 = vpop.f32.mrf.mxu0
      %v2030 = vadd.f32 0.0, %v2029
      %2031 = vmatmul.bf16.gmra.mxu0 %v1418
      %v2032 = vpop.f32.mrf.mxu0
      %v2033 = vadd.f32 0.0, %v2032
      %v2034 = vpop.f32.mrf.mxu0
      %v2035 = vadd.f32 0.0, %v2034
      %2036 = vmatmul.bf16.gmra.mxu0 %v1419
      %v2037 = vpop.f32.mrf.mxu0
      %v2038 = vadd.f32 0.0, %v2037
      %v2039 = vpop.f32.mrf.mxu0
      %v2040 = vadd.f32 0.0, %v2039
      %2041 = vmatmul.bf16.gmra.mxu0 %v1420
      %v2042 = vpop.f32.mrf.mxu0
      %v2043 = vadd.f32 0.0, %v2042
      %v2044 = vpop.f32.mrf.mxu0
      %v2045 = vadd.f32 0.0, %v2044
      %2046 = vdwg.mxu0
      %s2047 = scalar_lea.vmem %s210, 640
      %2048 = vst [vmem:[%s2047] sm:$0xff] %v2008
      %2049 = vst [vmem:[%s2047 + $0x8] sm:$0xff] %v2010
      %2050 = vst [vmem:[%s2047 + $0x10] sm:$0xff] %v2013
      %2051 = vst [vmem:[%s2047 + $0x18] sm:$0xff] %v2015
      %2052 = vst [vmem:[%s2047 + $0x20] sm:$0xff] %v2018
      %2053 = vst [vmem:[%s2047 + $0x28] sm:$0xff] %v2020
      %2054 = vst [vmem:[%s2047 + $0x30] sm:$0xff] %v2023
      %2055 = vst [vmem:[%s2047 + $0x38] sm:$0xff] %v2025
      %2056 = vst [vmem:[%s2047 + $0x40] sm:$0xff] %v2028
      %2057 = vst [vmem:[%s2047 + $0x48] sm:$0xff] %v2030
      %2058 = vst [vmem:[%s2047 + $0x50] sm:$0xff] %v2033
      %2059 = vst [vmem:[%s2047 + $0x58] sm:$0xff] %v2035
      %2060 = vst [vmem:[%s2047 + $0x60] sm:$0xff] %v2038
      %2061 = vst [vmem:[%s2047 + $0x68] sm:$0xff] %v2040
      %2062 = vst [vmem:[%s2047 + $0x70] sm:$0xff] %v2043
      %2063 = vst [vmem:[%s2047 + $0x78] sm:$0xff] %v2045
      %v2080 = vunpack.c.l.b16 %v1336
      %v2081 = vunpack.c.l.b16 %v1340
      %v2082 = vunpack.c.l.b16 %v1344
      %v2083 = vunpack.c.l.b16 %v1348
      %v2084 = vunpack.c.l.b16 %v1352
      %v2085 = vunpack.c.l.b16 %v1356
      %v2086 = vunpack.c.l.b16 %v1360
      %v2087 = vunpack.c.l.b16 %v1364
      %v2088 = vunpack.c.l.b16 %v1368
      %v2089 = vunpack.c.l.b16 %v1372
      %v2090 = vunpack.c.l.b16 %v1376
      %v2091 = vunpack.c.l.b16 %v1380
      %v2092 = vunpack.c.l.b16 %v1384
      %v2093 = vunpack.c.l.b16 %v1388
      %v2094 = vunpack.c.l.b16 %v1392
      %v2095 = vunpack.c.l.b16 %v1396
      %v2096 = vpack.c.b16 %v2081, %v2080
      %v2097 = vpack.c.b16 %v2083, %v2082
      %v2098 = vpack.c.b16 %v2085, %v2084
      %v2099 = vpack.c.b16 %v2087, %v2086
      %v2100 = vpack.c.b16 %v2089, %v2088
      %v2101 = vpack.c.b16 %v2091, %v2090
      %v2102 = vpack.c.b16 %v2093, %v2092
      %v2103 = vpack.c.b16 %v2095, %v2094
      %2112 = vmatpush.bf16.xpose.msra.mxu0 %v2103
      %2113 = vmatpush.bf16.xpose.msra.mxu0 %v2102
      %2114 = vmatpush.bf16.xpose.msra.mxu0 %v2101
      %2115 = vmatpush.bf16.xpose.msra.mxu0 %v2100
      %2116 = vmatpush.bf16.xpose.msra.mxu0 %v2099
      %2117 = vmatpush.bf16.xpose.msra.mxu0 %v2098
      %2118 = vmatpush.bf16.xpose.msra.mxu0 %v2097
      %2119 = vmatpush.bf16.xpose.msra.mxu0 %v2096
      %2120 = vmatmul.bf16.gmra.mxu0 %v1413
      %v2121 = vpop.f32.mrf.mxu0
      %v2122 = vadd.f32 0.0, %v2121
      %v2123 = vpop.f32.mrf.mxu0
      %v2124 = vadd.f32 0.0, %v2123
      %2125 = vmatmul.bf16.gmra.mxu0 %v1414
      %v2126 = vpop.f32.mrf.mxu0
      %v2127 = vadd.f32 0.0, %v2126
      %v2128 = vpop.f32.mrf.mxu0
      %v2129 = vadd.f32 0.0, %v2128
      %2130 = vmatmul.bf16.gmra.mxu0 %v1415
      %v2131 = vpop.f32.mrf.mxu0
      %v2132 = vadd.f32 0.0, %v2131
      %v2133 = vpop.f32.mrf.mxu0
      %v2134 = vadd.f32 0.0, %v2133
      %2135 = vmatmul.bf16.gmra.mxu0 %v1416
      %v2136 = vpop.f32.mrf.mxu0
      %v2137 = vadd.f32 0.0, %v2136
      %v2138 = vpop.f32.mrf.mxu0
      %v2139 = vadd.f32 0.0, %v2138
      %2140 = vmatmul.bf16.gmra.mxu0 %v1417
      %v2141 = vpop.f32.mrf.mxu0
      %v2142 = vadd.f32 0.0, %v2141
      %v2143 = vpop.f32.mrf.mxu0
      %v2144 = vadd.f32 0.0, %v2143
      %2145 = vmatmul.bf16.gmra.mxu0 %v1418
      %v2146 = vpop.f32.mrf.mxu0
      %v2147 = vadd.f32 0.0, %v2146
      %v2148 = vpop.f32.mrf.mxu0
      %v2149 = vadd.f32 0.0, %v2148
      %2150 = vmatmul.bf16.gmra.mxu0 %v1419
      %v2151 = vpop.f32.mrf.mxu0
      %v2152 = vadd.f32 0.0, %v2151
      %v2153 = vpop.f32.mrf.mxu0
      %v2154 = vadd.f32 0.0, %v2153
      %2155 = vmatmul.bf16.gmra.mxu0 %v1420
      %v2156 = vpop.f32.mrf.mxu0
      %v2157 = vadd.f32 0.0, %v2156
      %v2158 = vpop.f32.mrf.mxu0
      %v2159 = vadd.f32 0.0, %v2158
      %2160 = vdwg.mxu0
      %s2161 = scalar_lea.vmem %s210, 768
      %2162 = vst [vmem:[%s2161] sm:$0xff] %v2122
      %2163 = vst [vmem:[%s2161 + $0x8] sm:$0xff] %v2124
      %2164 = vst [vmem:[%s2161 + $0x10] sm:$0xff] %v2127
      %2165 = vst [vmem:[%s2161 + $0x18] sm:$0xff] %v2129
      %2166 = vst [vmem:[%s2161 + $0x20] sm:$0xff] %v2132
      %2167 = vst [vmem:[%s2161 + $0x28] sm:$0xff] %v2134
      %2168 = vst [vmem:[%s2161 + $0x30] sm:$0xff] %v2137
      %2169 = vst [vmem:[%s2161 + $0x38] sm:$0xff] %v2139
      %2170 = vst [vmem:[%s2161 + $0x40] sm:$0xff] %v2142
      %2171 = vst [vmem:[%s2161 + $0x48] sm:$0xff] %v2144
      %2172 = vst [vmem:[%s2161 + $0x50] sm:$0xff] %v2147
      %2173 = vst [vmem:[%s2161 + $0x58] sm:$0xff] %v2149
      %2174 = vst [vmem:[%s2161 + $0x60] sm:$0xff] %v2152
      %2175 = vst [vmem:[%s2161 + $0x68] sm:$0xff] %v2154
      %2176 = vst [vmem:[%s2161 + $0x70] sm:$0xff] %v2157
      %2177 = vst [vmem:[%s2161 + $0x78] sm:$0xff] %v2159
      %v2178 = vunpack.c.h.b16 %v1336
      %v2179 = vunpack.c.h.b16 %v1340
      %v2180 = vunpack.c.h.b16 %v1344
      %v2181 = vunpack.c.h.b16 %v1348
      %v2182 = vunpack.c.h.b16 %v1352
      %v2183 = vunpack.c.h.b16 %v1356
      %v2184 = vunpack.c.h.b16 %v1360
      %v2185 = vunpack.c.h.b16 %v1364
      %v2186 = vunpack.c.h.b16 %v1368
      %v2187 = vunpack.c.h.b16 %v1372
      %v2188 = vunpack.c.h.b16 %v1376
      %v2189 = vunpack.c.h.b16 %v1380
      %v2190 = vunpack.c.h.b16 %v1384
      %v2191 = vunpack.c.h.b16 %v1388
      %v2192 = vunpack.c.h.b16 %v1392
      %v2193 = vunpack.c.h.b16 %v1396
      %v2194 = vpack.c.b16 %v2179, %v2178
      %v2195 = vpack.c.b16 %v2181, %v2180
      %v2196 = vpack.c.b16 %v2183, %v2182
      %v2197 = vpack.c.b16 %v2185, %v2184
      %v2198 = vpack.c.b16 %v2187, %v2186
      %v2199 = vpack.c.b16 %v2189, %v2188
      %v2200 = vpack.c.b16 %v2191, %v2190
      %v2201 = vpack.c.b16 %v2193, %v2192
      %2210 = vmatpush.bf16.xpose.msra.mxu0 %v2201
      %2211 = vmatpush.bf16.xpose.msra.mxu0 %v2200
      %2212 = vmatpush.bf16.xpose.msra.mxu0 %v2199
      %2213 = vmatpush.bf16.xpose.msra.mxu0 %v2198
      %2214 = vmatpush.bf16.xpose.msra.mxu0 %v2197
      %2215 = vmatpush.bf16.xpose.msra.mxu0 %v2196
      %2216 = vmatpush.bf16.xpose.msra.mxu0 %v2195
      %2217 = vmatpush.bf16.xpose.msra.mxu0 %v2194
      %2218 = vmatmul.bf16.gmra.mxu0 %v1413
      %v2219 = vpop.f32.mrf.mxu0
      %v2220 = vadd.f32 0.0, %v2219
      %v2221 = vpop.f32.mrf.mxu0
      %v2222 = vadd.f32 0.0, %v2221
      %2223 = vmatmul.bf16.gmra.mxu0 %v1414
      %v2224 = vpop.f32.mrf.mxu0
      %v2225 = vadd.f32 0.0, %v2224
      %v2226 = vpop.f32.mrf.mxu0
      %v2227 = vadd.f32 0.0, %v2226
      %2228 = vmatmul.bf16.gmra.mxu0 %v1415
      %v2229 = vpop.f32.mrf.mxu0
      %v2230 = vadd.f32 0.0, %v2229
      %v2231 = vpop.f32.mrf.mxu0
      %v2232 = vadd.f32 0.0, %v2231
      %2233 = vmatmul.bf16.gmra.mxu0 %v1416
      %v2234 = vpop.f32.mrf.mxu0
      %v2235 = vadd.f32 0.0, %v2234
      %v2236 = vpop.f32.mrf.mxu0
      %v2237 = vadd.f32 0.0, %v2236
      %2238 = vmatmul.bf16.gmra.mxu0 %v1417
      %v2239 = vpop.f32.mrf.mxu0
      %v2240 = vadd.f32 0.0, %v2239
      %v2241 = vpop.f32.mrf.mxu0
      %v2242 = vadd.f32 0.0, %v2241
      %2243 = vmatmul.bf16.gmra.mxu0 %v1418
      %v2244 = vpop.f32.mrf.mxu0
      %v2245 = vadd.f32 0.0, %v2244
      %v2246 = vpop.f32.mrf.mxu0
      %v2247 = vadd.f32 0.0, %v2246
      %2248 = vmatmul.bf16.gmra.mxu0 %v1419
      %v2249 = vpop.f32.mrf.mxu0
      %v2250 = vadd.f32 0.0, %v2249
      %v2251 = vpop.f32.mrf.mxu0
      %v2252 = vadd.f32 0.0, %v2251
      %2253 = vmatmul.bf16.gmra.mxu0 %v1420
      %v2254 = vpop.f32.mrf.mxu0
      %v2255 = vadd.f32 0.0, %v2254
      %v2256 = vpop.f32.mrf.mxu0
      %v2257 = vadd.f32 0.0, %v2256
      %2258 = vdwg.mxu0
      %s2259 = scalar_lea.vmem %s210, 896
      %2260 = vst [vmem:[%s2259] sm:$0xff] %v2220
      %2261 = vst [vmem:[%s2259 + $0x8] sm:$0xff] %v2222
      %2262 = vst [vmem:[%s2259 + $0x10] sm:$0xff] %v2225
      %2263 = vst [vmem:[%s2259 + $0x18] sm:$0xff] %v2227
      %2264 = vst [vmem:[%s2259 + $0x20] sm:$0xff] %v2230
      %2265 = vst [vmem:[%s2259 + $0x28] sm:$0xff] %v2232
      %2266 = vst [vmem:[%s2259 + $0x30] sm:$0xff] %v2235
      %2267 = vst [vmem:[%s2259 + $0x38] sm:$0xff] %v2237
      %2268 = vst [vmem:[%s2259 + $0x40] sm:$0xff] %v2240
      %2269 = vst [vmem:[%s2259 + $0x48] sm:$0xff] %v2242
      %2270 = vst [vmem:[%s2259 + $0x50] sm:$0xff] %v2245
      %2271 = vst [vmem:[%s2259 + $0x58] sm:$0xff] %v2247
      %2272 = vst [vmem:[%s2259 + $0x60] sm:$0xff] %v2250
      %2273 = vst [vmem:[%s2259 + $0x68] sm:$0xff] %v2252
      %2274 = vst [vmem:[%s2259 + $0x70] sm:$0xff] %v2255
      %2275 = vst [vmem:[%s2259 + $0x78] sm:$0xff] %v2257
      %p2276 = scmp.lt.s32.totalorder %s16, 1
      %s2277 = scalar_select %p2276, %s16, 1
      %s2278 = smul.addr %s2277, 16
      %s2279 = smul.addr %s2278, 8
      %s2280 = scalar_lea.vmem %s3, %s2279
      %p2281 = scmp.lt.s32.totalorder %s16, 1
      %s2282 = scalar_select %p2281, %s16, 1
      %s2283 = smul.addr %s2282, 128
      %s2284 = smul.addr %s2283, 8
      %s2285 = scalar_lea.vmem %s4, %s2284
      // Predicated region
      $region33: #{rnn_forward.21} parent=31 // pred_check
        %p2286 = pneg %p102
      $region34: #{rnn_forward.21} parent=31 // pred_check_branch
        %2288 = sbr.rel (%p2286) target = $region36
      $region35: #{rnn_forward.21} parent=31 // pred_region
        _
      $region36: #{rnn_forward.21} parent=31 // pred_fallthru
        _
      // Predicated region
      $region37: #{rnn_forward.21} parent=31 // pred_check
        %p2289 = pneg %p128
      $region38: #{rnn_forward.21} parent=31 // pred_check_branch
        %2291 = sbr.rel (%p2289) target = $region40
      $region39: #{rnn_forward.21} parent=31 // pred_region
        _
      $region40: #{rnn_forward.21} parent=31 // pred_fallthru
        _
    $region32: #{rnn_forward.21} parent=5 // pred_fallthru
      _
    %p2292 = scmp.le.s32.totalorder 2, %s11
    // Predicated region
    $region41: #{rnn_forward.21} parent=5 // pred_check
      %p2293 = pneg %p2292
    $region42: #{rnn_forward.21} parent=5 // pred_check_branch
      %2295 = sbr.rel (%p2293) target = $region44
    $region43: #{rnn_forward.21} parent=5 // pred_region
      %s2296 = ssub.s32 %s11, 2
      // Predicated region
      $region45: #{rnn_forward.21} parent=43 // pred_check
        %p2297 = pneg %p108
      $region46: #{rnn_forward.21} parent=43 // pred_check_branch
        %2299 = sbr.rel (%p2297) target = $region48
      $region47: #{rnn_forward.21} parent=43 // pred_region
        %p2300 = scmp.lt.s32.totalorder %s17, 1
        %s2301 = scalar_select %p2300, %s17, 1
        %s2302 = smul.addr %s2301, 16
        %s2303 = smul.addr %s2302, 8
        %s2304 = scalar_lea.vmem %s3, %s2303
      $region48: #{rnn_forward.21} parent=43 // pred_fallthru
        _
      // Predicated region
      $region49: #{rnn_forward.21} parent=43 // pred_check
        %p2305 = pneg %p134
      $region50: #{rnn_forward.21} parent=43 // pred_check_branch
        %2307 = sbr.rel (%p2305) target = $region52
      $region51: #{rnn_forward.21} parent=43 // pred_region
        %p2308 = scmp.lt.s32.totalorder %s17, 1
        %s2309 = scalar_select %p2308, %s17, 1
        %s2310 = smul.addr %s2309, 128
        %s2311 = smul.addr %s2310, 8
        %s2312 = scalar_lea.vmem %s4, %s2311
      $region52: #{rnn_forward.21} parent=43 // pred_fallthru
        _
    $region44: #{rnn_forward.21} parent=5 // pred_fallthru
      _
  $region6: #{rnn_forward.21} parent=0 // loop_footer
    %s15 = sadd.s32 1, %s11
  $region7: #{rnn_forward.21} parent=0 // loop_footer_branch
    %10 = sbr.rel target = $region3
  $region8: #{rnn_forward.21} parent=0 // loop_exit
    _

</llo_original>
